<compile_context>
chip_gen: v7x
topology: tpu7x:2x2x1
jax: 0.10.0
libtpu: 0.0.40
codegen_flags: <defaults>
</compile_context>

<pallas_src>
import functools

import jax
import jax.numpy as jnp
from jax.experimental import pallas as pl
from jax.experimental.pallas import tpu as pltpu


# ------------------------------------------------------------------ utilities

def _round_up(x, m):
    return (x + m - 1) // m * m


def _choose_tile_m(m):
    m8 = _round_up(m, 8)
    return m8 if m8 <= 512 else 512


# ------------------------------------------------------------ Pallas kernels

def _mm_bias_kernel(x_ref, w_ref, b_ref, o_ref, *, relu):
    acc = jnp.dot(x_ref[...], w_ref[...], preferred_element_type=jnp.float32)
    out = acc + b_ref[...]
    if relu:
        out = jnp.maximum(out, 0.0)
    o_ref[...] = out.astype(o_ref.dtype)


def _mm_bias_res_relu_kernel(x_ref, w_ref, b_ref, r_ref, o_ref):
    acc = jnp.dot(x_ref[...], w_ref[...], preferred_element_type=jnp.float32)
    out = acc + b_ref[...] + r_ref[...].astype(jnp.float32)
    o_ref[...] = jnp.maximum(out, 0.0).astype(o_ref.dtype)


def fused_matmul(x, w, bias, *, relu, residual=None, out_dtype=jnp.float32):
    """act( x @ w + bias [+ residual] ) with an M-tiled, pipelined Pallas grid.

    x: (M, K) float (cast to bf16), w: (K, N) bf16 (BN scale pre-folded),
    bias: (1, N) f32, residual: (M, N) f32 or None.
    K and N stay unpadded (block == full array dim); only M is padded to the tile.
    """
    M, K = x.shape
    K2, N = w.shape
    assert K == K2, (K, K2)

    tile_m = _choose_tile_m(M)
    Mp = _round_up(M, tile_m)
    grid_m = Mp // tile_m

    xp = x.astype(jnp.bfloat16)
    if Mp != M:
        xp = jnp.pad(xp, ((0, Mp - M), (0, 0)))
    wb = w.astype(jnp.bfloat16)
    b2 = bias.reshape(1, N).astype(jnp.float32)

    in_specs = [
        pl.BlockSpec((tile_m, K), lambda i: (i, 0)),   # activation tile (pipelined)
        pl.BlockSpec((K, N), lambda i: (0, 0)),        # weights (grid-invariant)
        pl.BlockSpec((1, N), lambda i: (0, 0)),        # bias (grid-invariant)
    ]
    args = [xp, wb, b2]

    out_bytes = Mp * N * jnp.dtype(out_dtype).itemsize
    bytes_accessed = Mp * K * 2 + K * N * 2 + N * 4 + out_bytes

    if residual is not None:
        rp = residual.astype(jnp.float32)
        if Mp != M:
            rp = jnp.pad(rp, ((0, Mp - M), (0, 0)))
        in_specs.append(pl.BlockSpec((tile_m, N), lambda i: (i, 0)))
        args.append(rp)
        bytes_accessed += Mp * N * 4
        kernel = _mm_bias_res_relu_kernel
    else:
        kernel = functools.partial(_mm_bias_kernel, relu=relu)

    out = pl.pallas_call(
        kernel,
        out_shape=jax.ShapeDtypeStruct((Mp, N), out_dtype),
        grid=(grid_m,),
        in_specs=in_specs,
        out_specs=pl.BlockSpec((tile_m, N), lambda i: (i, 0)),
        compiler_params=pltpu.CompilerParams(
            dimension_semantics=("parallel",),
            vmem_limit_bytes=32 * 1024 * 1024,
        ),
        cost_estimate=pl.CostEstimate(
            flops=2 * Mp * K * N,
            transcendentals=0,
            bytes_accessed=int(bytes_accessed),
        ),
    )(*args)

    if Mp != M:
        out = out[:M]
    return out


# --------------------------------------------------------- conv-layer helpers

def conv3x3_fused(x, w_mat, bias, *, stride=1, relu=True, residual=None,
                  out_dtype=jnp.float32):
    """3x3 conv (padding=1) + folded BN + optional residual + optional ReLU.

    x: NHWC, w_mat: (9*Cin, Cout) prepped bf16, bias: (1, Cout) f32.
    """
    N, H, W, C = x.shape
    Cout = w_mat.shape[1]
    xp = jnp.pad(x, ((0, 0), (1, 1), (1, 1), (0, 0)))
    Ho = (H + 2 - 3) // stride + 1
    Wo = (W + 2 - 3) // stride + 1
    cols = []
    for dy in range(3):
        for dx in range(3):
            cols.append(xp[:, dy:dy + (Ho - 1) * stride + 1:stride,
                           dx:dx + (Wo - 1) * stride + 1:stride, :])
    patches = jnp.concatenate(cols, axis=-1).reshape(N * Ho * Wo, 9 * C)
    r2 = residual.reshape(N * Ho * Wo, Cout) if residual is not None else None
    y = fused_matmul(patches, w_mat, bias, relu=relu, residual=r2,
                     out_dtype=out_dtype)
    return y.reshape(N, Ho, Wo, Cout)


def conv1x1_fused(x, w_mat, bias, *, stride=1, relu=False,
                  out_dtype=jnp.float32):
    """1x1 conv (+ folded BN) as a pure channel matmul. x: NHWC, w_mat: (Cin, Cout)."""
    if stride > 1:
        x = x[:, ::stride, ::stride, :]
    N, H, W, C = x.shape
    Cout = w_mat.shape[1]
    y = fused_matmul(x.reshape(N * H * W, C), w_mat, bias, relu=relu,
                     out_dtype=out_dtype)
    return y.reshape(N, H, W, Cout)


# --------------------------------------------------------------- param setup

def make_raw_params(key, n_input, n_output, downsample):
    """Raw parameters in PyTorch layout (Conv2d OIHW weights + BN running stats)."""
    keys = list(jax.random.split(key, 16))

    def nk():
        return keys.pop()

    def conv_w(cout, cin, k):
        return 0.05 * jax.random.normal(nk(), (cout, cin, k, k), jnp.float32)

    def bn_p(c):
        return {
            "gamma": 1.0 + 0.1 * jax.random.normal(nk(), (c,), jnp.float32),
            "beta": 0.1 * jax.random.normal(nk(), (c,), jnp.float32),
            "mean": 0.1 * jax.random.normal(nk(), (c,), jnp.float32),
            "var": 1.0 + 0.1 * jnp.abs(jax.random.normal(nk(), (c,), jnp.float32)),
        }

    p = {
        "conv1_w": conv_w(n_output, n_input, 3), "bn1": bn_p(n_output),
        "conv2_w": conv_w(n_output, n_output, 3), "bn2": bn_p(n_output),
    }
    if downsample:
        p["ds_conv_w"] = conv_w(n_output, n_input, 1)
        p["ds_bn"] = bn_p(n_output)
    else:
        p["id_conv_w"] = conv_w(n_output, n_input, 1)
    return p


def _fold_bn(bn, eps=1e-5):
    scale = bn["gamma"] * jax.lax.rsqrt(bn["var"] + eps)
    bias = bn["beta"] - bn["mean"] * scale
    return scale, bias


def _prep_w3x3(w, scale):
    # torch (Cout, Cin, 3, 3) -> (ky, kx, Cin, Cout) -> (9*Cin, Cout); fold BN scale.
    cout = w.shape[0]
    w2 = jnp.transpose(w, (2, 3, 1, 0)).reshape(-1, cout)
    if scale is not None:
        w2 = w2 * scale[None, :]
    return w2.astype(jnp.bfloat16)


def _prep_w1x1(w, scale):
    # torch (Cout, Cin, 1, 1) -> (Cin, Cout); fold BN scale.
    w2 = jnp.transpose(w[:, :, 0, 0], (1, 0))
    if scale is not None:
        w2 = w2 * scale[None, :]
    return w2.astype(jnp.bfloat16)


def prepare_params(raw, downsample, eps=1e-5):
    """One-time prep: fold BN, reshape to matmul layout, cast weights to bf16."""
    s1, b1 = _fold_bn(raw["bn1"], eps)
    s2, b2 = _fold_bn(raw["bn2"], eps)
    p = {
        "w1": _prep_w3x3(raw["conv1_w"], s1),
        "b1": b1.reshape(1, -1).astype(jnp.float32),
        "w2": _prep_w3x3(raw["conv2_w"], s2),
        "b2": b2.reshape(1, -1).astype(jnp.float32),
    }
    if downsample:
        sd, bd = _fold_bn(raw["ds_bn"], eps)
        p["wi"] = _prep_w1x1(raw["ds_conv_w"], sd)
        p["bi"] = bd.reshape(1, -1).astype(jnp.float32)
    else:
        cout = raw["id_conv_w"].shape[0]
        p["wi"] = _prep_w1x1(raw["id_conv_w"], None)
        p["bi"] = jnp.zeros((1, cout), jnp.float32)
    return p


# ------------------------------------------------------------- forward passes

def residual_unit_forward(params, x_nchw, *, downsample):
    """ResidualUnit.forward: relu(bn2(conv2(relu(bn1(conv1(x))))) + identity(x))."""
    # NCHW -> NHWC, cast once to bf16 (halves all activation HBM/VMEM traffic).
    x = jnp.transpose(x_nchw, (0, 2, 3, 1)).astype(jnp.bfloat16)
    stride = 2 if downsample else 1

    # conv1 + bn1 + relu (fused), bf16 intermediate activation
    h = conv3x3_fused(x, params["w1"], params["b1"], stride=stride, relu=True,
                      out_dtype=jnp.bfloat16)

    # identity path: downsample (1x1 stride-2 conv + BN) or identity_channels (1x1 conv)
    identity = conv1x1_fused(x, params["wi"], params["bi"], stride=stride,
                             relu=False, out_dtype=jnp.float32)

    # conv2 + bn2 + residual add + final relu, all fused in one kernel
    out = conv3x3_fused(h, params["w2"], params["b2"], stride=1, relu=True,
                        residual=identity, out_dtype=jnp.float32)

    # back to NCHW
    return jnp.transpose(out, (0, 3, 1, 2))


# ---------------------------------------------------- pure-JAX reference check

def reference_forward(raw, x_nchw, downsample, eps=1e-5):
    def conv(x, w, stride, pad):
        return jax.lax.conv_general_dilated(
            x, w, window_strides=(stride, stride),
            padding=((pad, pad), (pad, pad)),
            dimension_numbers=("NCHW", "OIHW", "NCHW"))

    def bn(x, p):
        s = p["gamma"] / jnp.sqrt(p["var"] + eps)
        b = p["beta"] - p["mean"] * s
        return x * s[None, :, None, None] + b[None, :, None, None]

    stride = 2 if downsample else 1
    h = jax.nn.relu(bn(conv(x_nchw, raw["conv1_w"], stride, 1), raw["bn1"]))
    y = bn(conv(h, raw["conv2_w"], 1, 1), raw["bn2"])
    if downsample:
        identity = bn(conv(x_nchw, raw["ds_conv_w"], 2, 0), raw["ds_bn"])
    else:
        identity = conv(x_nchw, raw["id_conv_w"], 1, 0)
    return jax.nn.relu(y + identity)


# ----------------------------------------------------------------------- main

if __name__ == "__main__":
    root = jax.random.PRNGKey(0)
    kx, kp0, kp1 = jax.random.split(root, 3)

    n_input, n_output = 4, 32
    x = jax.random.normal(kx, (2, n_input, 16, 16), jnp.float32)  # NCHW

    for downsample, kp in ((False, kp0), (True, kp1)):
        raw = make_raw_params(kp, n_input, n_output, downsample)
        params = prepare_params(raw, downsample)

        fwd = jax.jit(functools.partial(residual_unit_forward,
                                        downsample=downsample))
        out = jax.block_until_ready(fwd(params, x))

        hw = (8, 8) if downsample else (16, 16)
        assert out.shape == (2, n_output) + hw, out.shape
        assert bool(jnp.all(jnp.isfinite(out)))

        ref = reference_forward(raw, x, downsample)
        # bf16 matmul inputs vs f32 reference -> loose absolute tolerance.
        max_err = float(jnp.max(jnp.abs(out - ref)))
        assert max_err < 0.15, max_err

    print("KERNEL_OK")
</pallas_src>

<mosaic_0001>
module attributes {stable_mosaic.version = 11 : i64} {
  func.func @_mm_bias_kernel(%arg0: i32, %arg1: memref<512x36xbf16, #tpu.memory_space<vmem>>, %arg2: memref<36x32xbf16, #tpu.memory_space<vmem>>, %arg3: memref<1x32xf32, #tpu.memory_space<vmem>>, %arg4: memref<512x32xbf16, #tpu.memory_space<vmem>>) attributes {dimension_semantics = [#tpu.dimension_semantics<parallel>], iteration_bounds = array<i64: 1>, scalar_prefetch = 0 : i64, scratch_operands = 0 : i64, tpu.core_type = #tpu.core_type<tc>, window_params = [{transform_indices = @transform_0, window_bounds = array<i64: 512, 36>}, {pipeline_mode = #tpu.pipeline_mode<synchronous>, transform_indices = @transform_1, window_bounds = array<i64: 36, 32>}, {pipeline_mode = #tpu.pipeline_mode<synchronous>, transform_indices = @transform_2, window_bounds = array<i64: 1, 32>}, {transform_indices = @transform_3, window_bounds = array<i64: 512, 32>}]} {
    %c0 = arith.constant 0 : index
    %c0_0 = arith.constant 0 : index
    %0 = vector.load %arg1[%c0, %c0_0] : memref<512x36xbf16, #tpu.memory_space<vmem>>, vector<512x36xbf16>
    %c0_1 = arith.constant 0 : index
    %c0_2 = arith.constant 0 : index
    %1 = vector.load %arg2[%c0_1, %c0_2] : memref<36x32xbf16, #tpu.memory_space<vmem>>, vector<36x32xbf16>
    %cst = arith.constant dense<0.000000e+00> : vector<512x32xf32>
    %2 = tpu.matmul %0, %1, %cst {dimension_numbers = #tpu.dot_dimension_numbers<[1], [0], [0], [1], [0, 0, 1, 1], [], []>} : vector<512x36xbf16>, vector<36x32xbf16>, vector<512x32xf32> -> vector<512x32xf32>
    %c0_3 = arith.constant 0 : index
    %c0_4 = arith.constant 0 : index
    %3 = vector.load %arg3[%c0_3, %c0_4] : memref<1x32xf32, #tpu.memory_space<vmem>>, vector<1x32xf32>
    %4 = vector.broadcast %3 : vector<1x32xf32> to vector<512x32xf32>
    %5 = arith.addf %2, %4 : vector<512x32xf32>
    %cst_5 = arith.constant 0.000000e+00 : f32
    %6 = vector.broadcast %cst_5 : f32 to vector<512x32xf32>
    %7 = arith.maximumf %5, %6 : vector<512x32xf32>
    %8 = arith.truncf %7 : vector<512x32xf32> to vector<512x32xbf16>
    %c0_6 = arith.constant 0 : index
    %c0_7 = arith.constant 0 : index
    %9 = vector.load %arg4[%c0_6, %c0_7] : memref<512x32xbf16, #tpu.memory_space<vmem>>, vector<512x32xbf16>
    tpu.vector_store %arg4[%c0_6, %c0_7], %8 {strides = array<i32>} : memref<512x32xbf16, #tpu.memory_space<vmem>>, vector<512x32xbf16>,
    return
  }
  func.func @transform_0(%arg0: i32) -> (i32, i32) {
    %c0_i32 = arith.constant 0 : i32
    %c0_i32_0 = arith.constant 0 : i32
    return %arg0, %c0_i32 : i32, i32
  }
  func.func @transform_1(%arg0: i32) -> (i32, i32) {
    %c0_i32 = arith.constant 0 : i32
    %c0_i32_0 = arith.constant 0 : i32
    %c0_i32_1 = arith.constant 0 : i32
    return %c0_i32, %c0_i32_0 : i32, i32
  }
  func.func @transform_2(%arg0: i32) -> (i32, i32) {
    %c0_i32 = arith.constant 0 : i32
    %c0_i32_0 = arith.constant 0 : i32
    %c0_i32_1 = arith.constant 0 : i32
    return %c0_i32, %c0_i32_0 : i32, i32
  }
  func.func @transform_3(%arg0: i32) -> (i32, i32) {
    %c0_i32 = arith.constant 0 : i32
    %c0_i32_0 = arith.constant 0 : i32
    return %arg0, %c0_i32 : i32, i32
  }
}

module attributes {stable_mosaic.version = 11 : i64} {
  func.func @_mm_bias_kernel(%arg0: i32, %arg1: memref<512x4xbf16, #tpu.memory_space<vmem>>, %arg2: memref<4x32xbf16, #tpu.memory_space<vmem>>, %arg3: memref<1x32xf32, #tpu.memory_space<vmem>>, %arg4: memref<512x32xf32, #tpu.memory_space<vmem>>) attributes {dimension_semantics = [#tpu.dimension_semantics<parallel>], iteration_bounds = array<i64: 1>, scalar_prefetch = 0 : i64, scratch_operands = 0 : i64, tpu.core_type = #tpu.core_type<tc>, window_params = [{transform_indices = @transform_0, window_bounds = array<i64: 512, 4>}, {pipeline_mode = #tpu.pipeline_mode<synchronous>, transform_indices = @transform_1, window_bounds = array<i64: 4, 32>}, {pipeline_mode = #tpu.pipeline_mode<synchronous>, transform_indices = @transform_2, window_bounds = array<i64: 1, 32>}, {transform_indices = @transform_3, window_bounds = array<i64: 512, 32>}]} {
    %c0 = arith.constant 0 : index
    %c0_0 = arith.constant 0 : index
    %0 = vector.load %arg1[%c0, %c0_0] : memref<512x4xbf16, #tpu.memory_space<vmem>>, vector<512x4xbf16>
    %c0_1 = arith.constant 0 : index
    %c0_2 = arith.constant 0 : index
    %1 = vector.load %arg2[%c0_1, %c0_2] : memref<4x32xbf16, #tpu.memory_space<vmem>>, vector<4x32xbf16>
    %cst = arith.constant dense<0.000000e+00> : vector<512x32xf32>
    %2 = tpu.matmul %0, %1, %cst {dimension_numbers = #tpu.dot_dimension_numbers<[1], [0], [0], [1], [0, 0, 1, 1], [], []>} : vector<512x4xbf16>, vector<4x32xbf16>, vector<512x32xf32> -> vector<512x32xf32>
    %c0_3 = arith.constant 0 : index
    %c0_4 = arith.constant 0 : index
    %3 = vector.load %arg3[%c0_3, %c0_4] : memref<1x32xf32, #tpu.memory_space<vmem>>, vector<1x32xf32>
    %4 = vector.broadcast %3 : vector<1x32xf32> to vector<512x32xf32>
    %5 = arith.addf %2, %4 : vector<512x32xf32>
    %c0_5 = arith.constant 0 : index
    %c0_6 = arith.constant 0 : index
    %6 = vector.load %arg4[%c0_5, %c0_6] : memref<512x32xf32, #tpu.memory_space<vmem>>, vector<512x32xf32>
    tpu.vector_store %arg4[%c0_5, %c0_6], %5 {strides = array<i32>} : memref<512x32xf32, #tpu.memory_space<vmem>>, vector<512x32xf32>,
    return
  }
  func.func @transform_0(%arg0: i32) -> (i32, i32) {
    %c0_i32 = arith.constant 0 : i32
    %c0_i32_0 = arith.constant 0 : i32
    return %arg0, %c0_i32 : i32, i32
  }
  func.func @transform_1(%arg0: i32) -> (i32, i32) {
    %c0_i32 = arith.constant 0 : i32
    %c0_i32_0 = arith.constant 0 : i32
    %c0_i32_1 = arith.constant 0 : i32
    return %c0_i32, %c0_i32_0 : i32, i32
  }
  func.func @transform_2(%arg0: i32) -> (i32, i32) {
    %c0_i32 = arith.constant 0 : i32
    %c0_i32_0 = arith.constant 0 : i32
    %c0_i32_1 = arith.constant 0 : i32
    return %c0_i32, %c0_i32_0 : i32, i32
  }
  func.func @transform_3(%arg0: i32) -> (i32, i32) {
    %c0_i32 = arith.constant 0 : i32
    %c0_i32_0 = arith.constant 0 : i32
    return %arg0, %c0_i32 : i32, i32
  }
}

module attributes {stable_mosaic.version = 11 : i64} {
  func.func @_mm_bias_res_relu_kernel(%arg0: i32, %arg1: memref<512x288xbf16, #tpu.memory_space<vmem>>, %arg2: memref<288x32xbf16, #tpu.memory_space<vmem>>, %arg3: memref<1x32xf32, #tpu.memory_space<vmem>>, %arg4: memref<512x32xf32, #tpu.memory_space<vmem>>, %arg5: memref<512x32xf32, #tpu.memory_space<vmem>>) attributes {dimension_semantics = [#tpu.dimension_semantics<parallel>], iteration_bounds = array<i64: 1>, scalar_prefetch = 0 : i64, scratch_operands = 0 : i64, tpu.core_type = #tpu.core_type<tc>, window_params = [{transform_indices = @transform_0, window_bounds = array<i64: 512, 288>}, {pipeline_mode = #tpu.pipeline_mode<synchronous>, transform_indices = @transform_1, window_bounds = array<i64: 288, 32>}, {pipeline_mode = #tpu.pipeline_mode<synchronous>, transform_indices = @transform_2, window_bounds = array<i64: 1, 32>}, {transform_indices = @transform_3, window_bounds = array<i64: 512, 32>}, {transform_indices = @transform_4, window_bounds = array<i64: 512, 32>}]} {
    %c0 = arith.constant 0 : index
    %c0_0 = arith.constant 0 : index
    %0 = vector.load %arg1[%c0, %c0_0] : memref<512x288xbf16, #tpu.memory_space<vmem>>, vector<512x288xbf16>
    %c0_1 = arith.constant 0 : index
    %c0_2 = arith.constant 0 : index
    %1 = vector.load %arg2[%c0_1, %c0_2] : memref<288x32xbf16, #tpu.memory_space<vmem>>, vector<288x32xbf16>
    %cst = arith.constant dense<0.000000e+00> : vector<512x32xf32>
    %2 = tpu.matmul %0, %1, %cst {dimension_numbers = #tpu.dot_dimension_numbers<[1], [0], [0], [1], [0, 0, 1, 1], [], []>} : vector<512x288xbf16>, vector<288x32xbf16>, vector<512x32xf32> -> vector<512x32xf32>
    %c0_3 = arith.constant 0 : index
    %c0_4 = arith.constant 0 : index
    %3 = vector.load %arg3[%c0_3, %c0_4] : memref<1x32xf32, #tpu.memory_space<vmem>>, vector<1x32xf32>
    %4 = vector.broadcast %3 : vector<1x32xf32> to vector<512x32xf32>
    %5 = arith.addf %2, %4 : vector<512x32xf32>
    %c0_5 = arith.constant 0 : index
    %c0_6 = arith.constant 0 : index
    %6 = vector.load %arg4[%c0_5, %c0_6] : memref<512x32xf32, #tpu.memory_space<vmem>>, vector<512x32xf32>
    %7 = arith.addf %5, %6 : vector<512x32xf32>
    %cst_7 = arith.constant 0.000000e+00 : f32
    %8 = vector.broadcast %cst_7 : f32 to vector<512x32xf32>
    %9 = arith.maximumf %7, %8 : vector<512x32xf32>
    %c0_8 = arith.constant 0 : index
    %c0_9 = arith.constant 0 : index
    %10 = vector.load %arg5[%c0_8, %c0_9] : memref<512x32xf32, #tpu.memory_space<vmem>>, vector<512x32xf32>
    tpu.vector_store %arg5[%c0_8, %c0_9], %9 {strides = array<i32>} : memref<512x32xf32, #tpu.memory_space<vmem>>, vector<512x32xf32>,
    return
  }
  func.func @transform_0(%arg0: i32) -> (i32, i32) {
    %c0_i32 = arith.constant 0 : i32
    %c0_i32_0 = arith.constant 0 : i32
    return %arg0, %c0_i32 : i32, i32
  }
  func.func @transform_1(%arg0: i32) -> (i32, i32) {
    %c0_i32 = arith.constant 0 : i32
    %c0_i32_0 = arith.constant 0 : i32
    %c0_i32_1 = arith.constant 0 : i32
    return %c0_i32, %c0_i32_0 : i32, i32
  }
  func.func @transform_2(%arg0: i32) -> (i32, i32) {
    %c0_i32 = arith.constant 0 : i32
    %c0_i32_0 = arith.constant 0 : i32
    %c0_i32_1 = arith.constant 0 : i32
    return %c0_i32, %c0_i32_0 : i32, i32
  }
  func.func @transform_3(%arg0: i32) -> (i32, i32) {
    %c0_i32 = arith.constant 0 : i32
    %c0_i32_0 = arith.constant 0 : i32
    return %arg0, %c0_i32 : i32, i32
  }
  func.func @transform_4(%arg0: i32) -> (i32, i32) {
    %c0_i32 = arith.constant 0 : i32
    %c0_i32_0 = arith.constant 0 : i32
    return %arg0, %c0_i32 : i32, i32
  }
}

</mosaic_0001>

<llo_original>
// kernel: residual_unit_forward.4
$region0: #{residual_unit_forward.4}
  #allocation0 [shape = 'u32[]', space=smem, size = 0x4, offset = 0x4, fixed_abs, tag = 'smem constant byte address 0x4 - core index']
  #allocation1 [shape = 'u32[144,128]{1,0:T(1,128)}', space=vmem, size = 0x12000, scoped, tag = 'internal scratch']
  %s0 = inlined_call_operand.vmem [shape: bf16[512,4], index: 0, kind: input, shape index: {}]
  %s1 = inlined_call_operand.vmem [shape: bf16[4,32], index: 1, kind: input, shape index: {}]
  %s2 = inlined_call_operand.vmem [shape: f32[1,32], index: 2, kind: input, shape index: {}]
  %s3 = inlined_call_operand.vmem [shape: f32[512,32], index: 3, kind: output, shape index: {}]
  %s4 = sld [smem:[#allocation0]]
  $region22: #{residual_unit_forward.4} parent=0
    _
  %s6 = ssub.s32 1, %s4
  %s7 = scalar_select 0, %s6, %s4
  // Predicated region
  $region2: #{residual_unit_forward.4} parent=0 // pred_check
    _
  $region3: #{residual_unit_forward.4} parent=0 // pred_check_branch
    %9 = sbr.rel (0) target = $region5
  $region4: #{residual_unit_forward.4} parent=0 // pred_region
    _
  $region5: #{residual_unit_forward.4} parent=0 // pred_fallthru
    _
  // Predicated region
  $region6: #{residual_unit_forward.4} parent=0 // pred_check
    _
  $region7: #{residual_unit_forward.4} parent=0 // pred_check_branch
    %11 = sbr.rel (0) target = $region9
  $region8: #{residual_unit_forward.4} parent=0 // pred_region
    _
  $region9: #{residual_unit_forward.4} parent=0 // pred_fallthru
    _
  // Predicated region
  $region10: #{residual_unit_forward.4} parent=0 // pred_check
    _
  $region11: #{residual_unit_forward.4} parent=0 // pred_check_branch
    %13 = sbr.rel (0) target = $region13
  $region12: #{residual_unit_forward.4} parent=0 // pred_region
    _
  $region13: #{residual_unit_forward.4} parent=0 // pred_fallthru
    _
  %v15 = vld [vmem:[%s0] sm:$0xf]
  %v16 = vld [vmem:[%s0 + $0x4] sm:$0xf]
  %v17 = vld [vmem:[%s0 + $0x8] sm:$0xf]
  %v18 = vld [vmem:[%s0 + $0xc] sm:$0xf]
  %v19 = vld [vmem:[%s0 + $0x10] sm:$0xf]
  %v20 = vld [vmem:[%s0 + $0x14] sm:$0xf]
  %v21 = vld [vmem:[%s0 + $0x18] sm:$0xf]
  %v22 = vld [vmem:[%s0 + $0x1c] sm:$0xf]
  %v23 = vld [vmem:[%s0 + $0x20] sm:$0xf]
  %v24 = vld [vmem:[%s0 + $0x24] sm:$0xf]
  %v25 = vld [vmem:[%s0 + $0x28] sm:$0xf]
  %v26 = vld [vmem:[%s0 + $0x2c] sm:$0xf]
  %v27 = vld [vmem:[%s0 + $0x30] sm:$0xf]
  %v28 = vld [vmem:[%s0 + $0x34] sm:$0xf]
  %v29 = vld [vmem:[%s0 + $0x38] sm:$0xf]
  %v30 = vld [vmem:[%s0 + $0x3c] sm:$0xf]
  %v31 = vld [vmem:[%s0 + $0x40] sm:$0xf]
  %v32 = vld [vmem:[%s0 + $0x44] sm:$0xf]
  %v33 = vld [vmem:[%s0 + $0x48] sm:$0xf]
  %v34 = vld [vmem:[%s0 + $0x4c] sm:$0xf]
  %v35 = vld [vmem:[%s0 + $0x50] sm:$0xf]
  %v36 = vld [vmem:[%s0 + $0x54] sm:$0xf]
  %v37 = vld [vmem:[%s0 + $0x58] sm:$0xf]
  %v38 = vld [vmem:[%s0 + $0x5c] sm:$0xf]
  %v39 = vld [vmem:[%s0 + $0x60] sm:$0xf]
  %v40 = vld [vmem:[%s0 + $0x64] sm:$0xf]
  %v41 = vld [vmem:[%s0 + $0x68] sm:$0xf]
  %v42 = vld [vmem:[%s0 + $0x6c] sm:$0xf]
  %v43 = vld [vmem:[%s0 + $0x70] sm:$0xf]
  %v44 = vld [vmem:[%s0 + $0x74] sm:$0xf]
  %v45 = vld [vmem:[%s0 + $0x78] sm:$0xf]
  %v46 = vld [vmem:[%s0 + $0x7c] sm:$0xf]
  %v47 = vld [vmem:[%s0 + $0x80] sm:$0xf]
  %v48 = vld [vmem:[%s0 + $0x84] sm:$0xf]
  %v49 = vld [vmem:[%s0 + $0x88] sm:$0xf]
  %v50 = vld [vmem:[%s0 + $0x8c] sm:$0xf]
  %v51 = vld [vmem:[%s0 + $0x90] sm:$0xf]
  %v52 = vld [vmem:[%s0 + $0x94] sm:$0xf]
  %v53 = vld [vmem:[%s0 + $0x98] sm:$0xf]
  %v54 = vld [vmem:[%s0 + $0x9c] sm:$0xf]
  %v55 = vld [vmem:[%s0 + $0xa0] sm:$0xf]
  %v56 = vld [vmem:[%s0 + $0xa4] sm:$0xf]
  %v57 = vld [vmem:[%s0 + $0xa8] sm:$0xf]
  %v58 = vld [vmem:[%s0 + $0xac] sm:$0xf]
  %v59 = vld [vmem:[%s0 + $0xb0] sm:$0xf]
  %v60 = vld [vmem:[%s0 + $0xb4] sm:$0xf]
  %v61 = vld [vmem:[%s0 + $0xb8] sm:$0xf]
  %v62 = vld [vmem:[%s0 + $0xbc] sm:$0xf]
  %v63 = vld [vmem:[%s0 + $0xc0] sm:$0xf]
  %v64 = vld [vmem:[%s0 + $0xc4] sm:$0xf]
  %v65 = vld [vmem:[%s0 + $0xc8] sm:$0xf]
  %v66 = vld [vmem:[%s0 + $0xcc] sm:$0xf]
  %v67 = vld [vmem:[%s0 + $0xd0] sm:$0xf]
  %v68 = vld [vmem:[%s0 + $0xd4] sm:$0xf]
  %v69 = vld [vmem:[%s0 + $0xd8] sm:$0xf]
  %v70 = vld [vmem:[%s0 + $0xdc] sm:$0xf]
  %v71 = vld [vmem:[%s0 + $0xe0] sm:$0xf]
  %v72 = vld [vmem:[%s0 + $0xe4] sm:$0xf]
  %v73 = vld [vmem:[%s0 + $0xe8] sm:$0xf]
  %v74 = vld [vmem:[%s0 + $0xec] sm:$0xf]
  %v75 = vld [vmem:[%s0 + $0xf0] sm:$0xf]
  %v76 = vld [vmem:[%s0 + $0xf4] sm:$0xf]
  %v77 = vld [vmem:[%s0 + $0xf8] sm:$0xf]
  %v78 = vld [vmem:[%s0 + $0xfc] sm:$0xf]
  %v79 = vld [vmem:[%s1] sm:$0x3]
  %v80 = vld [vmem:[%s2] sm:$0x1]
  %v82 = vlaneseq
  %v83 = vshrl.u32 %v82, 7
  %v84 = vsub.s32 0, %v83
  %v85 = vrot.slane %v80, %v84
  %v151 = vunpack.c.l.b16 %v15
  %v152 = vunpack.c.l.b16 %v16
  %v153 = vunpack.c.l.b16 %v17
  %v154 = vunpack.c.l.b16 %v18
  %v155 = vunpack.c.l.b16 %v19
  %v156 = vunpack.c.l.b16 %v20
  %v157 = vunpack.c.l.b16 %v21
  %v158 = vunpack.c.l.b16 %v22
  %v159 = vunpack.c.l.b16 %v23
  %v160 = vunpack.c.l.b16 %v24
  %v161 = vunpack.c.l.b16 %v25
  %v162 = vunpack.c.l.b16 %v26
  %v163 = vunpack.c.l.b16 %v27
  %v164 = vunpack.c.l.b16 %v28
  %v165 = vunpack.c.l.b16 %v29
  %v166 = vunpack.c.l.b16 %v30
  %v167 = vunpack.c.l.b16 %v31
  %v168 = vunpack.c.l.b16 %v32
  %v169 = vunpack.c.l.b16 %v33
  %v170 = vunpack.c.l.b16 %v34
  %v171 = vunpack.c.l.b16 %v35
  %v172 = vunpack.c.l.b16 %v36
  %v173 = vunpack.c.l.b16 %v37
  %v174 = vunpack.c.l.b16 %v38
  %v175 = vunpack.c.l.b16 %v39
  %v176 = vunpack.c.l.b16 %v40
  %v177 = vunpack.c.l.b16 %v41
  %v178 = vunpack.c.l.b16 %v42
  %v179 = vunpack.c.l.b16 %v43
  %v180 = vunpack.c.l.b16 %v44
  %v181 = vunpack.c.l.b16 %v45
  %v182 = vunpack.c.l.b16 %v46
  %v183 = vunpack.c.l.b16 %v47
  %v184 = vunpack.c.l.b16 %v48
  %v185 = vunpack.c.l.b16 %v49
  %v186 = vunpack.c.l.b16 %v50
  %v187 = vunpack.c.l.b16 %v51
  %v188 = vunpack.c.l.b16 %v52
  %v189 = vunpack.c.l.b16 %v53
  %v190 = vunpack.c.l.b16 %v54
  %v191 = vunpack.c.l.b16 %v55
  %v192 = vunpack.c.l.b16 %v56
  %v193 = vunpack.c.l.b16 %v57
  %v194 = vunpack.c.l.b16 %v58
  %v195 = vunpack.c.l.b16 %v59
  %v196 = vunpack.c.l.b16 %v60
  %v197 = vunpack.c.l.b16 %v61
  %v198 = vunpack.c.l.b16 %v62
  %v199 = vunpack.c.l.b16 %v63
  %v200 = vunpack.c.l.b16 %v64
  %v201 = vunpack.c.l.b16 %v65
  %v202 = vunpack.c.l.b16 %v66
  %v203 = vunpack.c.l.b16 %v67
  %v204 = vunpack.c.l.b16 %v68
  %v205 = vunpack.c.l.b16 %v69
  %v206 = vunpack.c.l.b16 %v70
  %v207 = vunpack.c.l.b16 %v71
  %v208 = vunpack.c.l.b16 %v72
  %v209 = vunpack.c.l.b16 %v73
  %v210 = vunpack.c.l.b16 %v74
  %v211 = vunpack.c.l.b16 %v75
  %v212 = vunpack.c.l.b16 %v76
  %v213 = vunpack.c.l.b16 %v77
  %v214 = vunpack.c.l.b16 %v78
  %v215 = vpack.c.b16 %v152, %v151
  %v216 = vpack.c.b16 %v154, %v153
  %v217 = vpack.c.b16 %v156, %v155
  %v218 = vpack.c.b16 %v158, %v157
  %v219 = vpack.c.b16 %v160, %v159
  %v220 = vpack.c.b16 %v162, %v161
  %v221 = vpack.c.b16 %v164, %v163
  %v222 = vpack.c.b16 %v166, %v165
  %v223 = vpack.c.b16 %v168, %v167
  %v224 = vpack.c.b16 %v170, %v169
  %v225 = vpack.c.b16 %v172, %v171
  %v226 = vpack.c.b16 %v174, %v173
  %v227 = vpack.c.b16 %v176, %v175
  %v228 = vpack.c.b16 %v178, %v177
  %v229 = vpack.c.b16 %v180, %v179
  %v230 = vpack.c.b16 %v182, %v181
  %v231 = vpack.c.b16 %v184, %v183
  %v232 = vpack.c.b16 %v186, %v185
  %v233 = vpack.c.b16 %v188, %v187
  %v234 = vpack.c.b16 %v190, %v189
  %v235 = vpack.c.b16 %v192, %v191
  %v236 = vpack.c.b16 %v194, %v193
  %v237 = vpack.c.b16 %v196, %v195
  %v238 = vpack.c.b16 %v198, %v197
  %v239 = vpack.c.b16 %v200, %v199
  %v240 = vpack.c.b16 %v202, %v201
  %v241 = vpack.c.b16 %v204, %v203
  %v242 = vpack.c.b16 %v206, %v205
  %v243 = vpack.c.b16 %v208, %v207
  %v244 = vpack.c.b16 %v210, %v209
  %v245 = vpack.c.b16 %v212, %v211
  %v246 = vpack.c.b16 %v214, %v213
  %vm247 = vcmask 31744
  %v249 = vsel %vm247, %v215, 0
  %v252 = vsel %vm247, %v216, 0
  %v255 = vsel %vm247, %v217, 0
  %v258 = vsel %vm247, %v218, 0
  %v261 = vsel %vm247, %v219, 0
  %v264 = vsel %vm247, %v220, 0
  %v267 = vsel %vm247, %v221, 0
  %v270 = vsel %vm247, %v222, 0
  %v273 = vsel %vm247, %v223, 0
  %v276 = vsel %vm247, %v224, 0
  %v279 = vsel %vm247, %v225, 0
  %v282 = vsel %vm247, %v226, 0
  %v285 = vsel %vm247, %v227, 0
  %v288 = vsel %vm247, %v228, 0
  %v291 = vsel %vm247, %v229, 0
  %v294 = vsel %vm247, %v230, 0
  %v297 = vsel %vm247, %v231, 0
  %v300 = vsel %vm247, %v232, 0
  %v303 = vsel %vm247, %v233, 0
  %v306 = vsel %vm247, %v234, 0
  %v309 = vsel %vm247, %v235, 0
  %v312 = vsel %vm247, %v236, 0
  %v315 = vsel %vm247, %v237, 0
  %v318 = vsel %vm247, %v238, 0
  %v321 = vsel %vm247, %v239, 0
  %v324 = vsel %vm247, %v240, 0
  %v327 = vsel %vm247, %v241, 0
  %v330 = vsel %vm247, %v242, 0
  %v333 = vsel %vm247, %v243, 0
  %v336 = vsel %vm247, %v244, 0
  %v339 = vsel %vm247, %v245, 0
  %v342 = vsel %vm247, %v246, 0
  %vm344 = vcmask 1041408
  %v346 = vsel %vm344, %v79, 0
  %348 = vmatprep.subr.bf16.mxu0 0
  %349 = vmatpush1.bf16.msra.mxu0 %v346
  %350 = vmatprep.subr.bf16.mxu0 0
  %351 = vmatpush1.bf16.msra.mxu0 0
  %352 = vmatprep.subr.bf16.mxu0 0
  %353 = vmatpush1.bf16.msra.mxu0 0
  %354 = vmatprep.subr.bf16.mxu0 0
  %355 = vmatpush1.bf16.msra.mxu0 0
  %356 = vmatprep.subr.bf16.mxu0 0
  %357 = vmatpush1.bf16.msra.mxu0 0
  %358 = vmatprep.subr.bf16.mxu0 0
  %359 = vmatpush1.bf16.msra.mxu0 0
  %360 = vmatprep.subr.bf16.mxu0 0
  %361 = vmatpush1.bf16.msra.mxu0 0
  %362 = vmatprep.subr.bf16.mxu0 0
  %363 = vmatpush1.bf16.msra.mxu0 0
  %364 = vmatprep.subr.bf16.mxu0 0
  %365 = vmatpush1.bf16.msra.mxu0 0
  %366 = vmatprep.subr.bf16.mxu0 0
  %367 = vmatpush1.bf16.msra.mxu0 0
  %368 = vmatprep.subr.bf16.mxu0 0
  %369 = vmatpush1.bf16.msra.mxu0 0
  %370 = vmatprep.subr.bf16.mxu0 0
  %371 = vmatpush1.bf16.msra.mxu0 0
  %372 = vmatprep.subr.bf16.mxu0 0
  %373 = vmatpush1.bf16.msra.mxu0 0
  %374 = vmatprep.subr.bf16.mxu0 0
  %375 = vmatpush1.bf16.msra.mxu0 0
  %376 = vmatprep.subr.bf16.mxu0 0
  %377 = vmatpush1.bf16.msra.mxu0 0
  %378 = vmatprep.subr.bf16.mxu0 0
  %379 = vmatpush1.bf16.msra.mxu0 0
  %380 = vmatprep.mubr.bf16.mxu0 0
  %381 = vmatmul.mubr.bf16.gmra.mrb[0].mxu0 %v249
  %v382 = vpop.f32.mrb[0].mxu0
  %v383 = vadd.f32 %v85, %v382
  %v384 = vpop.f32.mrb[0].mxu0
  %v385 = vpop.f32.mrb[0].mxu0
  %v386 = vadd.f32 %v85, %v385
  %v387 = vpop.f32.mrb[0].mxu0
  %388 = vmatprep.mubr.bf16.mxu0 0
  %389 = vmatmul.mubr.bf16.gmra.mrb[0].mxu0 %v252
  %v390 = vpop.f32.mrb[0].mxu0
  %v391 = vadd.f32 %v85, %v390
  %v392 = vpop.f32.mrb[0].mxu0
  %v393 = vpop.f32.mrb[0].mxu0
  %v394 = vadd.f32 %v85, %v393
  %v395 = vpop.f32.mrb[0].mxu0
  %396 = vmatprep.mubr.bf16.mxu0 0
  %397 = vmatmul.mubr.bf16.gmra.mrb[0].mxu0 %v255
  %v398 = vpop.f32.mrb[0].mxu0
  %v399 = vadd.f32 %v85, %v398
  %v400 = vpop.f32.mrb[0].mxu0
  %v401 = vpop.f32.mrb[0].mxu0
  %v402 = vadd.f32 %v85, %v401
  %v403 = vpop.f32.mrb[0].mxu0
  %404 = vmatprep.mubr.bf16.mxu0 0
  %405 = vmatmul.mubr.bf16.gmra.mrb[0].mxu0 %v258
  %v406 = vpop.f32.mrb[0].mxu0
  %v407 = vadd.f32 %v85, %v406
  %v408 = vpop.f32.mrb[0].mxu0
  %v409 = vpop.f32.mrb[0].mxu0
  %v410 = vadd.f32 %v85, %v409
  %v411 = vpop.f32.mrb[0].mxu0
  %412 = vmatprep.mubr.bf16.mxu0 0
  %413 = vmatmul.mubr.bf16.gmra.mrb[0].mxu0 %v261
  %v414 = vpop.f32.mrb[0].mxu0
  %v415 = vadd.f32 %v85, %v414
  %v416 = vpop.f32.mrb[0].mxu0
  %v417 = vpop.f32.mrb[0].mxu0
  %v418 = vadd.f32 %v85, %v417
  %v419 = vpop.f32.mrb[0].mxu0
  %420 = vmatprep.mubr.bf16.mxu0 0
  %421 = vmatmul.mubr.bf16.gmra.mrb[0].mxu0 %v264
  %v422 = vpop.f32.mrb[0].mxu0
  %v423 = vadd.f32 %v85, %v422
  %v424 = vpop.f32.mrb[0].mxu0
  %v425 = vpop.f32.mrb[0].mxu0
  %v426 = vadd.f32 %v85, %v425
  %v427 = vpop.f32.mrb[0].mxu0
  %428 = vmatprep.mubr.bf16.mxu0 0
  %429 = vmatmul.mubr.bf16.gmra.mrb[0].mxu0 %v267
  %v430 = vpop.f32.mrb[0].mxu0
  %v431 = vadd.f32 %v85, %v430
  %v432 = vpop.f32.mrb[0].mxu0
  %v433 = vpop.f32.mrb[0].mxu0
  %v434 = vadd.f32 %v85, %v433
  %v435 = vpop.f32.mrb[0].mxu0
  %436 = vmatprep.mubr.bf16.mxu0 0
  %437 = vmatmul.mubr.bf16.gmra.mrb[0].mxu0 %v270
  %v438 = vpop.f32.mrb[0].mxu0
  %v439 = vadd.f32 %v85, %v438
  %v440 = vpop.f32.mrb[0].mxu0
  %v441 = vpop.f32.mrb[0].mxu0
  %v442 = vadd.f32 %v85, %v441
  %v443 = vpop.f32.mrb[0].mxu0
  %444 = vmatprep.mubr.bf16.mxu0 0
  %445 = vmatmul.mubr.bf16.gmra.mrb[0].mxu0 %v273
  %v446 = vpop.f32.mrb[0].mxu0
  %v447 = vadd.f32 %v85, %v446
  %v448 = vpop.f32.mrb[0].mxu0
  %v449 = vpop.f32.mrb[0].mxu0
  %v450 = vadd.f32 %v85, %v449
  %v451 = vpop.f32.mrb[0].mxu0
  %452 = vmatprep.mubr.bf16.mxu0 0
  %453 = vmatmul.mubr.bf16.gmra.mrb[0].mxu0 %v276
  %v454 = vpop.f32.mrb[0].mxu0
  %v455 = vadd.f32 %v85, %v454
  %v456 = vpop.f32.mrb[0].mxu0
  %v457 = vpop.f32.mrb[0].mxu0
  %v458 = vadd.f32 %v85, %v457
  %v459 = vpop.f32.mrb[0].mxu0
  %460 = vmatprep.mubr.bf16.mxu0 0
  %461 = vmatmul.mubr.bf16.gmra.mrb[0].mxu0 %v279
  %v462 = vpop.f32.mrb[0].mxu0
  %v463 = vadd.f32 %v85, %v462
  %v464 = vpop.f32.mrb[0].mxu0
  %v465 = vpop.f32.mrb[0].mxu0
  %v466 = vadd.f32 %v85, %v465
  %v467 = vpop.f32.mrb[0].mxu0
  %468 = vmatprep.mubr.bf16.mxu0 0
  %469 = vmatmul.mubr.bf16.gmra.mrb[0].mxu0 %v282
  %v470 = vpop.f32.mrb[0].mxu0
  %v471 = vadd.f32 %v85, %v470
  %v472 = vpop.f32.mrb[0].mxu0
  %v473 = vpop.f32.mrb[0].mxu0
  %v474 = vadd.f32 %v85, %v473
  %v475 = vpop.f32.mrb[0].mxu0
  %476 = vmatprep.mubr.bf16.mxu0 0
  %477 = vmatmul.mubr.bf16.gmra.mrb[0].mxu0 %v285
  %v478 = vpop.f32.mrb[0].mxu0
  %v479 = vadd.f32 %v85, %v478
  %v480 = vpop.f32.mrb[0].mxu0
  %v481 = vpop.f32.mrb[0].mxu0
  %v482 = vadd.f32 %v85, %v481
  %v483 = vpop.f32.mrb[0].mxu0
  %484 = vmatprep.mubr.bf16.mxu0 0
  %485 = vmatmul.mubr.bf16.gmra.mrb[0].mxu0 %v288
  %v486 = vpop.f32.mrb[0].mxu0
  %v487 = vadd.f32 %v85, %v486
  %v488 = vpop.f32.mrb[0].mxu0
  %v489 = vpop.f32.mrb[0].mxu0
  %v490 = vadd.f32 %v85, %v489
  %v491 = vpop.f32.mrb[0].mxu0
  %492 = vmatprep.mubr.bf16.mxu0 0
  %493 = vmatmul.mubr.bf16.gmra.mrb[0].mxu0 %v291
  %v494 = vpop.f32.mrb[0].mxu0
  %v495 = vadd.f32 %v85, %v494
  %v496 = vpop.f32.mrb[0].mxu0
  %v497 = vpop.f32.mrb[0].mxu0
  %v498 = vadd.f32 %v85, %v497
  %v499 = vpop.f32.mrb[0].mxu0
  %500 = vmatprep.mubr.bf16.mxu0 0
  %501 = vmatmul.mubr.bf16.gmra.mrb[0].mxu0 %v294
  %v502 = vpop.f32.mrb[0].mxu0
  %v503 = vadd.f32 %v85, %v502
  %v504 = vpop.f32.mrb[0].mxu0
  %v505 = vpop.f32.mrb[0].mxu0
  %v506 = vadd.f32 %v85, %v505
  %v507 = vpop.f32.mrb[0].mxu0
  %508 = vmatprep.mubr.bf16.mxu0 0
  %509 = vmatmul.mubr.bf16.gmra.mrb[0].mxu0 %v297
  %v510 = vpop.f32.mrb[0].mxu0
  %v511 = vadd.f32 %v85, %v510
  %v512 = vpop.f32.mrb[0].mxu0
  %v513 = vpop.f32.mrb[0].mxu0
  %v514 = vadd.f32 %v85, %v513
  %v515 = vpop.f32.mrb[0].mxu0
  %516 = vmatprep.mubr.bf16.mxu0 0
  %517 = vmatmul.mubr.bf16.gmra.mrb[0].mxu0 %v300
  %v518 = vpop.f32.mrb[0].mxu0
  %v519 = vadd.f32 %v85, %v518
  %v520 = vpop.f32.mrb[0].mxu0
  %v521 = vpop.f32.mrb[0].mxu0
  %v522 = vadd.f32 %v85, %v521
  %v523 = vpop.f32.mrb[0].mxu0
  %524 = vmatprep.mubr.bf16.mxu0 0
  %525 = vmatmul.mubr.bf16.gmra.mrb[0].mxu0 %v303
  %v526 = vpop.f32.mrb[0].mxu0
  %v527 = vadd.f32 %v85, %v526
  %v528 = vpop.f32.mrb[0].mxu0
  %v529 = vpop.f32.mrb[0].mxu0
  %v530 = vadd.f32 %v85, %v529
  %v531 = vpop.f32.mrb[0].mxu0
  %532 = vmatprep.mubr.bf16.mxu0 0
  %533 = vmatmul.mubr.bf16.gmra.mrb[0].mxu0 %v306
  %v534 = vpop.f32.mrb[0].mxu0
  %v535 = vadd.f32 %v85, %v534
  %v536 = vpop.f32.mrb[0].mxu0
  %v537 = vpop.f32.mrb[0].mxu0
  %v538 = vadd.f32 %v85, %v537
  %v539 = vpop.f32.mrb[0].mxu0
  %540 = vmatprep.mubr.bf16.mxu0 0
  %541 = vmatmul.mubr.bf16.gmra.mrb[0].mxu0 %v309
  %v542 = vpop.f32.mrb[0].mxu0
  %v543 = vadd.f32 %v85, %v542
  %v544 = vpop.f32.mrb[0].mxu0
  %v545 = vpop.f32.mrb[0].mxu0
  %v546 = vadd.f32 %v85, %v545
  %v547 = vpop.f32.mrb[0].mxu0
  %548 = vmatprep.mubr.bf16.mxu0 0
  %549 = vmatmul.mubr.bf16.gmra.mrb[0].mxu0 %v312
  %v550 = vpop.f32.mrb[0].mxu0
  %v551 = vadd.f32 %v85, %v550
  %v552 = vpop.f32.mrb[0].mxu0
  %v553 = vpop.f32.mrb[0].mxu0
  %v554 = vadd.f32 %v85, %v553
  %v555 = vpop.f32.mrb[0].mxu0
  %556 = vmatprep.mubr.bf16.mxu0 0
  %557 = vmatmul.mubr.bf16.gmra.mrb[0].mxu0 %v315
  %v558 = vpop.f32.mrb[0].mxu0
  %v559 = vadd.f32 %v85, %v558
  %v560 = vpop.f32.mrb[0].mxu0
  %v561 = vpop.f32.mrb[0].mxu0
  %v562 = vadd.f32 %v85, %v561
  %v563 = vpop.f32.mrb[0].mxu0
  %564 = vmatprep.mubr.bf16.mxu0 0
  %565 = vmatmul.mubr.bf16.gmra.mrb[0].mxu0 %v318
  %v566 = vpop.f32.mrb[0].mxu0
  %v567 = vadd.f32 %v85, %v566
  %v568 = vpop.f32.mrb[0].mxu0
  %v569 = vpop.f32.mrb[0].mxu0
  %v570 = vadd.f32 %v85, %v569
  %v571 = vpop.f32.mrb[0].mxu0
  %572 = vmatprep.mubr.bf16.mxu0 0
  %573 = vmatmul.mubr.bf16.gmra.mrb[0].mxu0 %v321
  %v574 = vpop.f32.mrb[0].mxu0
  %v575 = vadd.f32 %v85, %v574
  %v576 = vpop.f32.mrb[0].mxu0
  %v577 = vpop.f32.mrb[0].mxu0
  %v578 = vadd.f32 %v85, %v577
  %v579 = vpop.f32.mrb[0].mxu0
  %580 = vmatprep.mubr.bf16.mxu0 0
  %581 = vmatmul.mubr.bf16.gmra.mrb[0].mxu0 %v324
  %v582 = vpop.f32.mrb[0].mxu0
  %v583 = vadd.f32 %v85, %v582
  %v584 = vpop.f32.mrb[0].mxu0
  %v585 = vpop.f32.mrb[0].mxu0
  %v586 = vadd.f32 %v85, %v585
  %v587 = vpop.f32.mrb[0].mxu0
  %588 = vmatprep.mubr.bf16.mxu0 0
  %589 = vmatmul.mubr.bf16.gmra.mrb[0].mxu0 %v327
  %v590 = vpop.f32.mrb[0].mxu0
  %v591 = vadd.f32 %v85, %v590
  %v592 = vpop.f32.mrb[0].mxu0
  %v593 = vpop.f32.mrb[0].mxu0
  %v594 = vadd.f32 %v85, %v593
  %v595 = vpop.f32.mrb[0].mxu0
  %596 = vmatprep.mubr.bf16.mxu0 0
  %597 = vmatmul.mubr.bf16.gmra.mrb[0].mxu0 %v330
  %v598 = vpop.f32.mrb[0].mxu0
  %v599 = vadd.f32 %v85, %v598
  %v600 = vpop.f32.mrb[0].mxu0
  %v601 = vpop.f32.mrb[0].mxu0
  %v602 = vadd.f32 %v85, %v601
  %v603 = vpop.f32.mrb[0].mxu0
  %604 = vmatprep.mubr.bf16.mxu0 0
  %605 = vmatmul.mubr.bf16.gmra.mrb[0].mxu0 %v333
  %v606 = vpop.f32.mrb[0].mxu0
  %v607 = vadd.f32 %v85, %v606
  %v608 = vpop.f32.mrb[0].mxu0
  %v609 = vpop.f32.mrb[0].mxu0
  %v610 = vadd.f32 %v85, %v609
  %v611 = vpop.f32.mrb[0].mxu0
  %612 = vmatprep.mubr.bf16.mxu0 0
  %613 = vmatmul.mubr.bf16.gmra.mrb[0].mxu0 %v336
  %v614 = vpop.f32.mrb[0].mxu0
  %v615 = vadd.f32 %v85, %v614
  %v616 = vpop.f32.mrb[0].mxu0
  %v617 = vpop.f32.mrb[0].mxu0
  %v618 = vadd.f32 %v85, %v617
  %v619 = vpop.f32.mrb[0].mxu0
  %620 = vmatprep.mubr.bf16.mxu0 0
  %621 = vmatmul.mubr.bf16.gmra.mrb[0].mxu0 %v339
  %v622 = vpop.f32.mrb[0].mxu0
  %v623 = vadd.f32 %v85, %v622
  %v624 = vpop.f32.mrb[0].mxu0
  %v625 = vpop.f32.mrb[0].mxu0
  %v626 = vadd.f32 %v85, %v625
  %v627 = vpop.f32.mrb[0].mxu0
  %628 = vmatprep.mubr.bf16.mxu0 0
  %629 = vmatmul.mubr.bf16.gmra.mrb[0].mxu0 %v342
  %v630 = vpop.f32.mrb[0].mxu0
  %v631 = vadd.f32 %v85, %v630
  %v632 = vpop.f32.mrb[0].mxu0
  %v633 = vpop.f32.mrb[0].mxu0
  %v634 = vadd.f32 %v85, %v633
  %v635 = vpop.f32.mrb[0].mxu0
  %636 = vdwg.mxu0
  %vm637 = vcmask 261120
  %638 = vst.msk [vmem:[%s3] sm:$0xff] %vm637, %v383
  %639 = vst.msk [vmem:[%s3 + $0x8] sm:$0xff] %vm637, %v386
  %640 = vst.msk [vmem:[%s3 + $0x10] sm:$0xff] %vm637, %v391
  %641 = vst.msk [vmem:[%s3 + $0x18] sm:$0xff] %vm637, %v394
  %642 = vst.msk [vmem:[%s3 + $0x20] sm:$0xff] %vm637, %v399
  %643 = vst.msk [vmem:[%s3 + $0x28] sm:$0xff] %vm637, %v402
  %644 = vst.msk [vmem:[%s3 + $0x30] sm:$0xff] %vm637, %v407
  %645 = vst.msk [vmem:[%s3 + $0x38] sm:$0xff] %vm637, %v410
  %646 = vst.msk [vmem:[%s3 + $0x40] sm:$0xff] %vm637, %v415
  %647 = vst.msk [vmem:[%s3 + $0x48] sm:$0xff] %vm637, %v418
  %648 = vst.msk [vmem:[%s3 + $0x50] sm:$0xff] %vm637, %v423
  %649 = vst.msk [vmem:[%s3 + $0x58] sm:$0xff] %vm637, %v426
  %650 = vst.msk [vmem:[%s3 + $0x60] sm:$0xff] %vm637, %v431
  %651 = vst.msk [vmem:[%s3 + $0x68] sm:$0xff] %vm637, %v434
  %652 = vst.msk [vmem:[%s3 + $0x70] sm:$0xff] %vm637, %v439
  %653 = vst.msk [vmem:[%s3 + $0x78] sm:$0xff] %vm637, %v442
  %654 = vst.msk [vmem:[%s3 + $0x80] sm:$0xff] %vm637, %v447
  %655 = vst.msk [vmem:[%s3 + $0x88] sm:$0xff] %vm637, %v450
  %656 = vst.msk [vmem:[%s3 + $0x90] sm:$0xff] %vm637, %v455
  %657 = vst.msk [vmem:[%s3 + $0x98] sm:$0xff] %vm637, %v458
  %658 = vst.msk [vmem:[%s3 + $0xa0] sm:$0xff] %vm637, %v463
  %659 = vst.msk [vmem:[%s3 + $0xa8] sm:$0xff] %vm637, %v466
  %660 = vst.msk [vmem:[%s3 + $0xb0] sm:$0xff] %vm637, %v471
  %661 = vst.msk [vmem:[%s3 + $0xb8] sm:$0xff] %vm637, %v474
  %662 = vst.msk [vmem:[%s3 + $0xc0] sm:$0xff] %vm637, %v479
  %663 = vst.msk [vmem:[%s3 + $0xc8] sm:$0xff] %vm637, %v482
  %664 = vst.msk [vmem:[%s3 + $0xd0] sm:$0xff] %vm637, %v487
  %665 = vst.msk [vmem:[%s3 + $0xd8] sm:$0xff] %vm637, %v490
  %666 = vst.msk [vmem:[%s3 + $0xe0] sm:$0xff] %vm637, %v495
  %667 = vst.msk [vmem:[%s3 + $0xe8] sm:$0xff] %vm637, %v498
  %668 = vst.msk [vmem:[%s3 + $0xf0] sm:$0xff] %vm637, %v503
  %669 = vst.msk [vmem:[%s3 + $0xf8] sm:$0xff] %vm637, %v506
  %670 = vst.msk [vmem:[%s3 + $0x100] sm:$0xff] %vm637, %v511
  %671 = vst.msk [vmem:[%s3 + $0x108] sm:$0xff] %vm637, %v514
  %672 = vst.msk [vmem:[%s3 + $0x110] sm:$0xff] %vm637, %v519
  %673 = vst.msk [vmem:[%s3 + $0x118] sm:$0xff] %vm637, %v522
  %674 = vst.msk [vmem:[%s3 + $0x120] sm:$0xff] %vm637, %v527
  %675 = vst.msk [vmem:[%s3 + $0x128] sm:$0xff] %vm637, %v530
  %676 = vst.msk [vmem:[%s3 + $0x130] sm:$0xff] %vm637, %v535
  %677 = vst.msk [vmem:[%s3 + $0x138] sm:$0xff] %vm637, %v538
  %678 = vst.msk [vmem:[%s3 + $0x140] sm:$0xff] %vm637, %v543
  %679 = vst.msk [vmem:[%s3 + $0x148] sm:$0xff] %vm637, %v546
  %680 = vst.msk [vmem:[%s3 + $0x150] sm:$0xff] %vm637, %v551
  %681 = vst.msk [vmem:[%s3 + $0x158] sm:$0xff] %vm637, %v554
  %682 = vst.msk [vmem:[%s3 + $0x160] sm:$0xff] %vm637, %v559
  %683 = vst.msk [vmem:[%s3 + $0x168] sm:$0xff] %vm637, %v562
  %684 = vst.msk [vmem:[%s3 + $0x170] sm:$0xff] %vm637, %v567
  %685 = vst.msk [vmem:[%s3 + $0x178] sm:$0xff] %vm637, %v570
  %686 = vst.msk [vmem:[%s3 + $0x180] sm:$0xff] %vm637, %v575
  %687 = vst.msk [vmem:[%s3 + $0x188] sm:$0xff] %vm637, %v578
  %688 = vst.msk [vmem:[%s3 + $0x190] sm:$0xff] %vm637, %v583
  %689 = vst.msk [vmem:[%s3 + $0x198] sm:$0xff] %vm637, %v586
  %690 = vst.msk [vmem:[%s3 + $0x1a0] sm:$0xff] %vm637, %v591
  %691 = vst.msk [vmem:[%s3 + $0x1a8] sm:$0xff] %vm637, %v594
  %692 = vst.msk [vmem:[%s3 + $0x1b0] sm:$0xff] %vm637, %v599
  %693 = vst.msk [vmem:[%s3 + $0x1b8] sm:$0xff] %vm637, %v602
  %694 = vst.msk [vmem:[%s3 + $0x1c0] sm:$0xff] %vm637, %v607
  %695 = vst.msk [vmem:[%s3 + $0x1c8] sm:$0xff] %vm637, %v610
  %696 = vst.msk [vmem:[%s3 + $0x1d0] sm:$0xff] %vm637, %v615
  %697 = vst.msk [vmem:[%s3 + $0x1d8] sm:$0xff] %vm637, %v618
  %698 = vst.msk [vmem:[%s3 + $0x1e0] sm:$0xff] %vm637, %v623
  %699 = vst.msk [vmem:[%s3 + $0x1e8] sm:$0xff] %vm637, %v626
  %700 = vst.msk [vmem:[%s3 + $0x1f0] sm:$0xff] %vm637, %v631
  %701 = vst.msk [vmem:[%s3 + $0x1f8] sm:$0xff] %vm637, %v634
  // Predicated region
  $region14: #{residual_unit_forward.4} parent=0 // pred_check
    _
  $region15: #{residual_unit_forward.4} parent=0 // pred_check_branch
    %703 = sbr.rel (0) target = $region17
  $region16: #{residual_unit_forward.4} parent=0 // pred_region
    _
  $region17: #{residual_unit_forward.4} parent=0 // pred_fallthru
    _
  // Predicated region
  $region18: #{residual_unit_forward.4} parent=0 // pred_check
    _
  $region19: #{residual_unit_forward.4} parent=0 // pred_check_branch
    %705 = sbr.rel (0) target = $region21
  $region20: #{residual_unit_forward.4} parent=0 // pred_region
    _
  $region21: #{residual_unit_forward.4} parent=0 // pred_fallthru
    _

// kernel: residual_unit_forward.3
$region0: #{residual_unit_forward.3}
  #allocation0 [shape = 'u32[]', space=smem, size = 0x4, offset = 0x4, fixed_abs, tag = 'smem constant byte address 0x4 - core index']
  #allocation1 [shape = 'u32[144,128]{1,0:T(1,128)}', space=vmem, size = 0x12000, scoped, tag = 'internal scratch']
  %s0 = inlined_call_operand.vmem [shape: bf16[512,36], index: 0, kind: input, shape index: {}]
  %s1 = inlined_call_operand.vmem [shape: bf16[36,32], index: 1, kind: input, shape index: {}]
  %s2 = inlined_call_operand.vmem [shape: f32[1,32], index: 2, kind: input, shape index: {}]
  %s3 = inlined_call_operand.vmem [shape: bf16[512,32], index: 3, kind: output, shape index: {}]
  %s4 = sld [smem:[#allocation0]]
  $region22: #{residual_unit_forward.3} parent=0
    _
  %s6 = ssub.s32 1, %s4
  %s7 = scalar_select 0, %s6, %s4
  // Predicated region
  $region2: #{residual_unit_forward.3} parent=0 // pred_check
    _
  $region3: #{residual_unit_forward.3} parent=0 // pred_check_branch
    %9 = sbr.rel (0) target = $region5
  $region4: #{residual_unit_forward.3} parent=0 // pred_region
    _
  $region5: #{residual_unit_forward.3} parent=0 // pred_fallthru
    _
  // Predicated region
  $region6: #{residual_unit_forward.3} parent=0 // pred_check
    _
  $region7: #{residual_unit_forward.3} parent=0 // pred_check_branch
    %11 = sbr.rel (0) target = $region9
  $region8: #{residual_unit_forward.3} parent=0 // pred_region
    _
  $region9: #{residual_unit_forward.3} parent=0 // pred_fallthru
    _
  // Predicated region
  $region10: #{residual_unit_forward.3} parent=0 // pred_check
    _
  $region11: #{residual_unit_forward.3} parent=0 // pred_check_branch
    %13 = sbr.rel (0) target = $region13
  $region12: #{residual_unit_forward.3} parent=0 // pred_region
    _
  $region13: #{residual_unit_forward.3} parent=0 // pred_fallthru
    _
  %v15 = vld [vmem:[%s0] sm:$0xf]
  %v16 = vld [vmem:[%s0 + $0x4] sm:$0xf]
  %v17 = vld [vmem:[%s0 + $0x8] sm:$0xf]
  %v18 = vld [vmem:[%s0 + $0xc] sm:$0xf]
  %v19 = vld [vmem:[%s0 + $0x10] sm:$0xf]
  %v20 = vld [vmem:[%s0 + $0x14] sm:$0xf]
  %v21 = vld [vmem:[%s0 + $0x18] sm:$0xf]
  %v22 = vld [vmem:[%s0 + $0x1c] sm:$0xf]
  %v23 = vld [vmem:[%s0 + $0x20] sm:$0xf]
  %v24 = vld [vmem:[%s0 + $0x24] sm:$0xf]
  %v25 = vld [vmem:[%s0 + $0x28] sm:$0xf]
  %v26 = vld [vmem:[%s0 + $0x2c] sm:$0xf]
  %v27 = vld [vmem:[%s0 + $0x30] sm:$0xf]
  %v28 = vld [vmem:[%s0 + $0x34] sm:$0xf]
  %v29 = vld [vmem:[%s0 + $0x38] sm:$0xf]
  %v30 = vld [vmem:[%s0 + $0x3c] sm:$0xf]
  %v31 = vld [vmem:[%s0 + $0x40] sm:$0xf]
  %v32 = vld [vmem:[%s0 + $0x44] sm:$0xf]
  %v33 = vld [vmem:[%s0 + $0x48] sm:$0xf]
  %v34 = vld [vmem:[%s0 + $0x4c] sm:$0xf]
  %v35 = vld [vmem:[%s0 + $0x50] sm:$0xf]
  %v36 = vld [vmem:[%s0 + $0x54] sm:$0xf]
  %v37 = vld [vmem:[%s0 + $0x58] sm:$0xf]
  %v38 = vld [vmem:[%s0 + $0x5c] sm:$0xf]
  %v39 = vld [vmem:[%s0 + $0x60] sm:$0xf]
  %v40 = vld [vmem:[%s0 + $0x64] sm:$0xf]
  %v41 = vld [vmem:[%s0 + $0x68] sm:$0xf]
  %v42 = vld [vmem:[%s0 + $0x6c] sm:$0xf]
  %v43 = vld [vmem:[%s0 + $0x70] sm:$0xf]
  %v44 = vld [vmem:[%s0 + $0x74] sm:$0xf]
  %v45 = vld [vmem:[%s0 + $0x78] sm:$0xf]
  %v46 = vld [vmem:[%s0 + $0x7c] sm:$0xf]
  %v47 = vld [vmem:[%s0 + $0x80] sm:$0xf]
  %v48 = vld [vmem:[%s0 + $0x84] sm:$0xf]
  %v49 = vld [vmem:[%s0 + $0x88] sm:$0xf]
  %v50 = vld [vmem:[%s0 + $0x8c] sm:$0xf]
  %v51 = vld [vmem:[%s0 + $0x90] sm:$0xf]
  %v52 = vld [vmem:[%s0 + $0x94] sm:$0xf]
  %v53 = vld [vmem:[%s0 + $0x98] sm:$0xf]
  %v54 = vld [vmem:[%s0 + $0x9c] sm:$0xf]
  %v55 = vld [vmem:[%s0 + $0xa0] sm:$0xf]
  %v56 = vld [vmem:[%s0 + $0xa4] sm:$0xf]
  %v57 = vld [vmem:[%s0 + $0xa8] sm:$0xf]
  %v58 = vld [vmem:[%s0 + $0xac] sm:$0xf]
  %v59 = vld [vmem:[%s0 + $0xb0] sm:$0xf]
  %v60 = vld [vmem:[%s0 + $0xb4] sm:$0xf]
  %v61 = vld [vmem:[%s0 + $0xb8] sm:$0xf]
  %v62 = vld [vmem:[%s0 + $0xbc] sm:$0xf]
  %v63 = vld [vmem:[%s0 + $0xc0] sm:$0xf]
  %v64 = vld [vmem:[%s0 + $0xc4] sm:$0xf]
  %v65 = vld [vmem:[%s0 + $0xc8] sm:$0xf]
  %v66 = vld [vmem:[%s0 + $0xcc] sm:$0xf]
  %v67 = vld [vmem:[%s0 + $0xd0] sm:$0xf]
  %v68 = vld [vmem:[%s0 + $0xd4] sm:$0xf]
  %v69 = vld [vmem:[%s0 + $0xd8] sm:$0xf]
  %v70 = vld [vmem:[%s0 + $0xdc] sm:$0xf]
  %v71 = vld [vmem:[%s0 + $0xe0] sm:$0xf]
  %v72 = vld [vmem:[%s0 + $0xe4] sm:$0xf]
  %v73 = vld [vmem:[%s0 + $0xe8] sm:$0xf]
  %v74 = vld [vmem:[%s0 + $0xec] sm:$0xf]
  %v75 = vld [vmem:[%s0 + $0xf0] sm:$0xf]
  %v76 = vld [vmem:[%s0 + $0xf4] sm:$0xf]
  %v77 = vld [vmem:[%s0 + $0xf8] sm:$0xf]
  %v78 = vld [vmem:[%s0 + $0xfc] sm:$0xf]
  %v79 = vld [vmem:[%s1] sm:$0xf]
  %v80 = vld [vmem:[%s1 + $0x4] sm:$0xf]
  %v81 = vld [vmem:[%s1 + $0x8] sm:$0xf]
  %v82 = vld [vmem:[%s1 + $0xc] sm:$0xf]
  %v83 = vld [vmem:[%s1 + $0x10] sm:$0x3]
  %v84 = vld [vmem:[%s2] sm:$0x1]
  %v86 = vlaneseq
  %v87 = vshrl.u32 %v86, 7
  %v88 = vsub.s32 0, %v87
  %v89 = vrot.slane %v84, %v88
  %v155 = vunpack.c.l.b16 %v15
  %v156 = vunpack.c.l.b16 %v16
  %v157 = vunpack.c.l.b16 %v17
  %v158 = vunpack.c.l.b16 %v18
  %v159 = vunpack.c.l.b16 %v19
  %v160 = vunpack.c.l.b16 %v20
  %v161 = vunpack.c.l.b16 %v21
  %v162 = vunpack.c.l.b16 %v22
  %v163 = vunpack.c.l.b16 %v23
  %v164 = vunpack.c.l.b16 %v24
  %v165 = vunpack.c.l.b16 %v25
  %v166 = vunpack.c.l.b16 %v26
  %v167 = vunpack.c.l.b16 %v27
  %v168 = vunpack.c.l.b16 %v28
  %v169 = vunpack.c.l.b16 %v29
  %v170 = vunpack.c.l.b16 %v30
  %v171 = vunpack.c.l.b16 %v31
  %v172 = vunpack.c.l.b16 %v32
  %v173 = vunpack.c.l.b16 %v33
  %v174 = vunpack.c.l.b16 %v34
  %v175 = vunpack.c.l.b16 %v35
  %v176 = vunpack.c.l.b16 %v36
  %v177 = vunpack.c.l.b16 %v37
  %v178 = vunpack.c.l.b16 %v38
  %v179 = vunpack.c.l.b16 %v39
  %v180 = vunpack.c.l.b16 %v40
  %v181 = vunpack.c.l.b16 %v41
  %v182 = vunpack.c.l.b16 %v42
  %v183 = vunpack.c.l.b16 %v43
  %v184 = vunpack.c.l.b16 %v44
  %v185 = vunpack.c.l.b16 %v45
  %v186 = vunpack.c.l.b16 %v46
  %v187 = vunpack.c.l.b16 %v47
  %v188 = vunpack.c.l.b16 %v48
  %v189 = vunpack.c.l.b16 %v49
  %v190 = vunpack.c.l.b16 %v50
  %v191 = vunpack.c.l.b16 %v51
  %v192 = vunpack.c.l.b16 %v52
  %v193 = vunpack.c.l.b16 %v53
  %v194 = vunpack.c.l.b16 %v54
  %v195 = vunpack.c.l.b16 %v55
  %v196 = vunpack.c.l.b16 %v56
  %v197 = vunpack.c.l.b16 %v57
  %v198 = vunpack.c.l.b16 %v58
  %v199 = vunpack.c.l.b16 %v59
  %v200 = vunpack.c.l.b16 %v60
  %v201 = vunpack.c.l.b16 %v61
  %v202 = vunpack.c.l.b16 %v62
  %v203 = vunpack.c.l.b16 %v63
  %v204 = vunpack.c.l.b16 %v64
  %v205 = vunpack.c.l.b16 %v65
  %v206 = vunpack.c.l.b16 %v66
  %v207 = vunpack.c.l.b16 %v67
  %v208 = vunpack.c.l.b16 %v68
  %v209 = vunpack.c.l.b16 %v69
  %v210 = vunpack.c.l.b16 %v70
  %v211 = vunpack.c.l.b16 %v71
  %v212 = vunpack.c.l.b16 %v72
  %v213 = vunpack.c.l.b16 %v73
  %v214 = vunpack.c.l.b16 %v74
  %v215 = vunpack.c.l.b16 %v75
  %v216 = vunpack.c.l.b16 %v76
  %v217 = vunpack.c.l.b16 %v77
  %v218 = vunpack.c.l.b16 %v78
  %v219 = vpack.c.b16 %v156, %v155
  %v220 = vpack.c.b16 %v158, %v157
  %v221 = vpack.c.b16 %v160, %v159
  %v222 = vpack.c.b16 %v162, %v161
  %v223 = vpack.c.b16 %v164, %v163
  %v224 = vpack.c.b16 %v166, %v165
  %v225 = vpack.c.b16 %v168, %v167
  %v226 = vpack.c.b16 %v170, %v169
  %v227 = vpack.c.b16 %v172, %v171
  %v228 = vpack.c.b16 %v174, %v173
  %v229 = vpack.c.b16 %v176, %v175
  %v230 = vpack.c.b16 %v178, %v177
  %v231 = vpack.c.b16 %v180, %v179
  %v232 = vpack.c.b16 %v182, %v181
  %v233 = vpack.c.b16 %v184, %v183
  %v234 = vpack.c.b16 %v186, %v185
  %v235 = vpack.c.b16 %v188, %v187
  %v236 = vpack.c.b16 %v190, %v189
  %v237 = vpack.c.b16 %v192, %v191
  %v238 = vpack.c.b16 %v194, %v193
  %v239 = vpack.c.b16 %v196, %v195
  %v240 = vpack.c.b16 %v198, %v197
  %v241 = vpack.c.b16 %v200, %v199
  %v242 = vpack.c.b16 %v202, %v201
  %v243 = vpack.c.b16 %v204, %v203
  %v244 = vpack.c.b16 %v206, %v205
  %v245 = vpack.c.b16 %v208, %v207
  %v246 = vpack.c.b16 %v210, %v209
  %v247 = vpack.c.b16 %v212, %v211
  %v248 = vpack.c.b16 %v214, %v213
  %v249 = vpack.c.b16 %v216, %v215
  %v250 = vpack.c.b16 %v218, %v217
  %v256 = vunpack.c.l.b16 %v79
  %v257 = vunpack.c.l.b16 %v80
  %v258 = vunpack.c.l.b16 %v81
  %v259 = vunpack.c.l.b16 %v82
  %v260 = vunpack.c.l.b16 %v83
  %v261 = vpack.c.b16 %v257, %v256
  %v262 = vpack.c.b16 %v259, %v258
  %v263 = vpack.c.b16 %v260, %v260
  %vm266 = vcmask 293888
  %v268 = vsel %vm266, %v219, 0
  %v271 = vsel %vm266, %v220, 0
  %v274 = vsel %vm266, %v221, 0
  %v277 = vsel %vm266, %v222, 0
  %v280 = vsel %vm266, %v223, 0
  %v283 = vsel %vm266, %v224, 0
  %v286 = vsel %vm266, %v225, 0
  %v289 = vsel %vm266, %v226, 0
  %v292 = vsel %vm266, %v227, 0
  %v295 = vsel %vm266, %v228, 0
  %v298 = vsel %vm266, %v229, 0
  %v301 = vsel %vm266, %v230, 0
  %v304 = vsel %vm266, %v231, 0
  %v307 = vsel %vm266, %v232, 0
  %v310 = vsel %vm266, %v233, 0
  %v313 = vsel %vm266, %v234, 0
  %v316 = vsel %vm266, %v235, 0
  %v319 = vsel %vm266, %v236, 0
  %v322 = vsel %vm266, %v237, 0
  %v325 = vsel %vm266, %v238, 0
  %v328 = vsel %vm266, %v239, 0
  %v331 = vsel %vm266, %v240, 0
  %v334 = vsel %vm266, %v241, 0
  %v337 = vsel %vm266, %v242, 0
  %v340 = vsel %vm266, %v243, 0
  %v343 = vsel %vm266, %v244, 0
  %v346 = vsel %vm266, %v245, 0
  %v349 = vsel %vm266, %v246, 0
  %v352 = vsel %vm266, %v247, 0
  %v355 = vsel %vm266, %v248, 0
  %v358 = vsel %vm266, %v249, 0
  %v361 = vsel %vm266, %v250, 0
  %vm363 = vcmask 1041408
  %v365 = vsel %vm363, %v263, 0
  %367 = vmatprep.subr.bf16.mxu0 0
  %368 = vmatpush1.bf16.msra.mxu0 %v261
  %369 = vmatprep.subr.bf16.mxu0 0
  %370 = vmatpush1.bf16.msra.mxu0 %v262
  %371 = vmatprep.subr.bf16.mxu0 0
  %372 = vmatpush1.bf16.msra.mxu0 %v365
  %373 = vmatprep.subr.bf16.mxu0 0
  %374 = vmatpush1.bf16.msra.mxu0 0
  %375 = vmatprep.subr.bf16.mxu0 0
  %376 = vmatpush1.bf16.msra.mxu0 0
  %377 = vmatprep.subr.bf16.mxu0 0
  %378 = vmatpush1.bf16.msra.mxu0 0
  %379 = vmatprep.subr.bf16.mxu0 0
  %380 = vmatpush1.bf16.msra.mxu0 0
  %381 = vmatprep.subr.bf16.mxu0 0
  %382 = vmatpush1.bf16.msra.mxu0 0
  %383 = vmatprep.subr.bf16.mxu0 0
  %384 = vmatpush1.bf16.msra.mxu0 0
  %385 = vmatprep.subr.bf16.mxu0 0
  %386 = vmatpush1.bf16.msra.mxu0 0
  %387 = vmatprep.subr.bf16.mxu0 0
  %388 = vmatpush1.bf16.msra.mxu0 0
  %389 = vmatprep.subr.bf16.mxu0 0
  %390 = vmatpush1.bf16.msra.mxu0 0
  %391 = vmatprep.subr.bf16.mxu0 0
  %392 = vmatpush1.bf16.msra.mxu0 0
  %393 = vmatprep.subr.bf16.mxu0 0
  %394 = vmatpush1.bf16.msra.mxu0 0
  %395 = vmatprep.subr.bf16.mxu0 0
  %396 = vmatpush1.bf16.msra.mxu0 0
  %397 = vmatprep.subr.bf16.mxu0 0
  %398 = vmatpush1.bf16.msra.mxu0 0
  %399 = vmatprep.mubr.bf16.mxu0 0
  %400 = vmatmul.mubr.bf16.gmra.mrb[0].mxu0 %v268
  %v401 = vpop.f32.mrb[0].mxu0
  %v402 = vadd.f32 %v89, %v401
  %v403 = vpop.f32.mrb[0].mxu0
  %v404 = vpop.f32.mrb[0].mxu0
  %v405 = vadd.f32 %v89, %v404
  %v406 = vpop.f32.mrb[0].mxu0
  %407 = vmatprep.mubr.bf16.mxu0 0
  %408 = vmatmul.mubr.bf16.gmra.mrb[0].mxu0 %v271
  %v409 = vpop.f32.mrb[0].mxu0
  %v410 = vadd.f32 %v89, %v409
  %v411 = vpop.f32.mrb[0].mxu0
  %v412 = vpop.f32.mrb[0].mxu0
  %v413 = vadd.f32 %v89, %v412
  %v414 = vpop.f32.mrb[0].mxu0
  %415 = vmatprep.mubr.bf16.mxu0 0
  %416 = vmatmul.mubr.bf16.gmra.mrb[0].mxu0 %v274
  %v417 = vpop.f32.mrb[0].mxu0
  %v418 = vadd.f32 %v89, %v417
  %v419 = vpop.f32.mrb[0].mxu0
  %v420 = vpop.f32.mrb[0].mxu0
  %v421 = vadd.f32 %v89, %v420
  %v422 = vpop.f32.mrb[0].mxu0
  %423 = vmatprep.mubr.bf16.mxu0 0
  %424 = vmatmul.mubr.bf16.gmra.mrb[0].mxu0 %v277
  %v425 = vpop.f32.mrb[0].mxu0
  %v426 = vadd.f32 %v89, %v425
  %v427 = vpop.f32.mrb[0].mxu0
  %v428 = vpop.f32.mrb[0].mxu0
  %v429 = vadd.f32 %v89, %v428
  %v430 = vpop.f32.mrb[0].mxu0
  %431 = vmatprep.mubr.bf16.mxu0 0
  %432 = vmatmul.mubr.bf16.gmra.mrb[0].mxu0 %v280
  %v433 = vpop.f32.mrb[0].mxu0
  %v434 = vadd.f32 %v89, %v433
  %v435 = vpop.f32.mrb[0].mxu0
  %v436 = vpop.f32.mrb[0].mxu0
  %v437 = vadd.f32 %v89, %v436
  %v438 = vpop.f32.mrb[0].mxu0
  %439 = vmatprep.mubr.bf16.mxu0 0
  %440 = vmatmul.mubr.bf16.gmra.mrb[0].mxu0 %v283
  %v441 = vpop.f32.mrb[0].mxu0
  %v442 = vadd.f32 %v89, %v441
  %v443 = vpop.f32.mrb[0].mxu0
  %v444 = vpop.f32.mrb[0].mxu0
  %v445 = vadd.f32 %v89, %v444
  %v446 = vpop.f32.mrb[0].mxu0
  %447 = vmatprep.mubr.bf16.mxu0 0
  %448 = vmatmul.mubr.bf16.gmra.mrb[0].mxu0 %v286
  %v449 = vpop.f32.mrb[0].mxu0
  %v450 = vadd.f32 %v89, %v449
  %v451 = vpop.f32.mrb[0].mxu0
  %v452 = vpop.f32.mrb[0].mxu0
  %v453 = vadd.f32 %v89, %v452
  %v454 = vpop.f32.mrb[0].mxu0
  %455 = vmatprep.mubr.bf16.mxu0 0
  %456 = vmatmul.mubr.bf16.gmra.mrb[0].mxu0 %v289
  %v457 = vpop.f32.mrb[0].mxu0
  %v458 = vadd.f32 %v89, %v457
  %v459 = vpop.f32.mrb[0].mxu0
  %v460 = vpop.f32.mrb[0].mxu0
  %v461 = vadd.f32 %v89, %v460
  %v462 = vpop.f32.mrb[0].mxu0
  %463 = vmatprep.mubr.bf16.mxu0 0
  %464 = vmatmul.mubr.bf16.gmra.mrb[0].mxu0 %v292
  %v465 = vpop.f32.mrb[0].mxu0
  %v466 = vadd.f32 %v89, %v465
  %v467 = vpop.f32.mrb[0].mxu0
  %v468 = vpop.f32.mrb[0].mxu0
  %v469 = vadd.f32 %v89, %v468
  %v470 = vpop.f32.mrb[0].mxu0
  %471 = vmatprep.mubr.bf16.mxu0 0
  %472 = vmatmul.mubr.bf16.gmra.mrb[0].mxu0 %v295
  %v473 = vpop.f32.mrb[0].mxu0
  %v474 = vadd.f32 %v89, %v473
  %v475 = vpop.f32.mrb[0].mxu0
  %v476 = vpop.f32.mrb[0].mxu0
  %v477 = vadd.f32 %v89, %v476
  %v478 = vpop.f32.mrb[0].mxu0
  %479 = vmatprep.mubr.bf16.mxu0 0
  %480 = vmatmul.mubr.bf16.gmra.mrb[0].mxu0 %v298
  %v481 = vpop.f32.mrb[0].mxu0
  %v482 = vadd.f32 %v89, %v481
  %v483 = vpop.f32.mrb[0].mxu0
  %v484 = vpop.f32.mrb[0].mxu0
  %v485 = vadd.f32 %v89, %v484
  %v486 = vpop.f32.mrb[0].mxu0
  %487 = vmatprep.mubr.bf16.mxu0 0
  %488 = vmatmul.mubr.bf16.gmra.mrb[0].mxu0 %v301
  %v489 = vpop.f32.mrb[0].mxu0
  %v490 = vadd.f32 %v89, %v489
  %v491 = vpop.f32.mrb[0].mxu0
  %v492 = vpop.f32.mrb[0].mxu0
  %v493 = vadd.f32 %v89, %v492
  %v494 = vpop.f32.mrb[0].mxu0
  %495 = vmatprep.mubr.bf16.mxu0 0
  %496 = vmatmul.mubr.bf16.gmra.mrb[0].mxu0 %v304
  %v497 = vpop.f32.mrb[0].mxu0
  %v498 = vadd.f32 %v89, %v497
  %v499 = vpop.f32.mrb[0].mxu0
  %v500 = vpop.f32.mrb[0].mxu0
  %v501 = vadd.f32 %v89, %v500
  %v502 = vpop.f32.mrb[0].mxu0
  %503 = vmatprep.mubr.bf16.mxu0 0
  %504 = vmatmul.mubr.bf16.gmra.mrb[0].mxu0 %v307
  %v505 = vpop.f32.mrb[0].mxu0
  %v506 = vadd.f32 %v89, %v505
  %v507 = vpop.f32.mrb[0].mxu0
  %v508 = vpop.f32.mrb[0].mxu0
  %v509 = vadd.f32 %v89, %v508
  %v510 = vpop.f32.mrb[0].mxu0
  %511 = vmatprep.mubr.bf16.mxu0 0
  %512 = vmatmul.mubr.bf16.gmra.mrb[0].mxu0 %v310
  %v513 = vpop.f32.mrb[0].mxu0
  %v514 = vadd.f32 %v89, %v513
  %v515 = vpop.f32.mrb[0].mxu0
  %v516 = vpop.f32.mrb[0].mxu0
  %v517 = vadd.f32 %v89, %v516
  %v518 = vpop.f32.mrb[0].mxu0
  %519 = vmatprep.mubr.bf16.mxu0 0
  %520 = vmatmul.mubr.bf16.gmra.mrb[0].mxu0 %v313
  %v521 = vpop.f32.mrb[0].mxu0
  %v522 = vadd.f32 %v89, %v521
  %v523 = vpop.f32.mrb[0].mxu0
  %v524 = vpop.f32.mrb[0].mxu0
  %v525 = vadd.f32 %v89, %v524
  %v526 = vpop.f32.mrb[0].mxu0
  %527 = vmatprep.mubr.bf16.mxu0 0
  %528 = vmatmul.mubr.bf16.gmra.mrb[0].mxu0 %v316
  %v529 = vpop.f32.mrb[0].mxu0
  %v530 = vadd.f32 %v89, %v529
  %v531 = vpop.f32.mrb[0].mxu0
  %v532 = vpop.f32.mrb[0].mxu0
  %v533 = vadd.f32 %v89, %v532
  %v534 = vpop.f32.mrb[0].mxu0
  %535 = vmatprep.mubr.bf16.mxu0 0
  %536 = vmatmul.mubr.bf16.gmra.mrb[0].mxu0 %v319
  %v537 = vpop.f32.mrb[0].mxu0
  %v538 = vadd.f32 %v89, %v537
  %v539 = vpop.f32.mrb[0].mxu0
  %v540 = vpop.f32.mrb[0].mxu0
  %v541 = vadd.f32 %v89, %v540
  %v542 = vpop.f32.mrb[0].mxu0
  %543 = vmatprep.mubr.bf16.mxu0 0
  %544 = vmatmul.mubr.bf16.gmra.mrb[0].mxu0 %v322
  %v545 = vpop.f32.mrb[0].mxu0
  %v546 = vadd.f32 %v89, %v545
  %v547 = vpop.f32.mrb[0].mxu0
  %v548 = vpop.f32.mrb[0].mxu0
  %v549 = vadd.f32 %v89, %v548
  %v550 = vpop.f32.mrb[0].mxu0
  %551 = vmatprep.mubr.bf16.mxu0 0
  %552 = vmatmul.mubr.bf16.gmra.mrb[0].mxu0 %v325
  %v553 = vpop.f32.mrb[0].mxu0
  %v554 = vadd.f32 %v89, %v553
  %v555 = vpop.f32.mrb[0].mxu0
  %v556 = vpop.f32.mrb[0].mxu0
  %v557 = vadd.f32 %v89, %v556
  %v558 = vpop.f32.mrb[0].mxu0
  %559 = vmatprep.mubr.bf16.mxu0 0
  %560 = vmatmul.mubr.bf16.gmra.mrb[0].mxu0 %v328
  %v561 = vpop.f32.mrb[0].mxu0
  %v562 = vadd.f32 %v89, %v561
  %v563 = vpop.f32.mrb[0].mxu0
  %v564 = vpop.f32.mrb[0].mxu0
  %v565 = vadd.f32 %v89, %v564
  %v566 = vpop.f32.mrb[0].mxu0
  %567 = vmatprep.mubr.bf16.mxu0 0
  %568 = vmatmul.mubr.bf16.gmra.mrb[0].mxu0 %v331
  %v569 = vpop.f32.mrb[0].mxu0
  %v570 = vadd.f32 %v89, %v569
  %v571 = vpop.f32.mrb[0].mxu0
  %v572 = vpop.f32.mrb[0].mxu0
  %v573 = vadd.f32 %v89, %v572
  %v574 = vpop.f32.mrb[0].mxu0
  %575 = vmatprep.mubr.bf16.mxu0 0
  %576 = vmatmul.mubr.bf16.gmra.mrb[0].mxu0 %v334
  %v577 = vpop.f32.mrb[0].mxu0
  %v578 = vadd.f32 %v89, %v577
  %v579 = vpop.f32.mrb[0].mxu0
  %v580 = vpop.f32.mrb[0].mxu0
  %v581 = vadd.f32 %v89, %v580
  %v582 = vpop.f32.mrb[0].mxu0
  %583 = vmatprep.mubr.bf16.mxu0 0
  %584 = vmatmul.mubr.bf16.gmra.mrb[0].mxu0 %v337
  %v585 = vpop.f32.mrb[0].mxu0
  %v586 = vadd.f32 %v89, %v585
  %v587 = vpop.f32.mrb[0].mxu0
  %v588 = vpop.f32.mrb[0].mxu0
  %v589 = vadd.f32 %v89, %v588
  %v590 = vpop.f32.mrb[0].mxu0
  %591 = vmatprep.mubr.bf16.mxu0 0
  %592 = vmatmul.mubr.bf16.gmra.mrb[0].mxu0 %v340
  %v593 = vpop.f32.mrb[0].mxu0
  %v594 = vadd.f32 %v89, %v593
  %v595 = vpop.f32.mrb[0].mxu0
  %v596 = vpop.f32.mrb[0].mxu0
  %v597 = vadd.f32 %v89, %v596
  %v598 = vpop.f32.mrb[0].mxu0
  %599 = vmatprep.mubr.bf16.mxu0 0
  %600 = vmatmul.mubr.bf16.gmra.mrb[0].mxu0 %v343
  %v601 = vpop.f32.mrb[0].mxu0
  %v602 = vadd.f32 %v89, %v601
  %v603 = vpop.f32.mrb[0].mxu0
  %v604 = vpop.f32.mrb[0].mxu0
  %v605 = vadd.f32 %v89, %v604
  %v606 = vpop.f32.mrb[0].mxu0
  %607 = vmatprep.mubr.bf16.mxu0 0
  %608 = vmatmul.mubr.bf16.gmra.mrb[0].mxu0 %v346
  %v609 = vpop.f32.mrb[0].mxu0
  %v610 = vadd.f32 %v89, %v609
  %v611 = vpop.f32.mrb[0].mxu0
  %v612 = vpop.f32.mrb[0].mxu0
  %v613 = vadd.f32 %v89, %v612
  %v614 = vpop.f32.mrb[0].mxu0
  %615 = vmatprep.mubr.bf16.mxu0 0
  %616 = vmatmul.mubr.bf16.gmra.mrb[0].mxu0 %v349
  %v617 = vpop.f32.mrb[0].mxu0
  %v618 = vadd.f32 %v89, %v617
  %v619 = vpop.f32.mrb[0].mxu0
  %v620 = vpop.f32.mrb[0].mxu0
  %v621 = vadd.f32 %v89, %v620
  %v622 = vpop.f32.mrb[0].mxu0
  %623 = vmatprep.mubr.bf16.mxu0 0
  %624 = vmatmul.mubr.bf16.gmra.mrb[0].mxu0 %v352
  %v625 = vpop.f32.mrb[0].mxu0
  %v626 = vadd.f32 %v89, %v625
  %v627 = vpop.f32.mrb[0].mxu0
  %v628 = vpop.f32.mrb[0].mxu0
  %v629 = vadd.f32 %v89, %v628
  %v630 = vpop.f32.mrb[0].mxu0
  %631 = vmatprep.mubr.bf16.mxu0 0
  %632 = vmatmul.mubr.bf16.gmra.mrb[0].mxu0 %v355
  %v633 = vpop.f32.mrb[0].mxu0
  %v634 = vadd.f32 %v89, %v633
  %v635 = vpop.f32.mrb[0].mxu0
  %v636 = vpop.f32.mrb[0].mxu0
  %v637 = vadd.f32 %v89, %v636
  %v638 = vpop.f32.mrb[0].mxu0
  %639 = vmatprep.mubr.bf16.mxu0 0
  %640 = vmatmul.mubr.bf16.gmra.mrb[0].mxu0 %v358
  %v641 = vpop.f32.mrb[0].mxu0
  %v642 = vadd.f32 %v89, %v641
  %v643 = vpop.f32.mrb[0].mxu0
  %v644 = vpop.f32.mrb[0].mxu0
  %v645 = vadd.f32 %v89, %v644
  %v646 = vpop.f32.mrb[0].mxu0
  %647 = vmatprep.mubr.bf16.mxu0 0
  %648 = vmatmul.mubr.bf16.gmra.mrb[0].mxu0 %v361
  %v649 = vpop.f32.mrb[0].mxu0
  %v650 = vadd.f32 %v89, %v649
  %v651 = vpop.f32.mrb[0].mxu0
  %v652 = vpop.f32.mrb[0].mxu0
  %v653 = vadd.f32 %v89, %v652
  %v654 = vpop.f32.mrb[0].mxu0
  %655 = vdwg.mxu0
  %v656 = vmax.f32 %v402, 0.0
  %v657 = vmax.f32 %v405, 0.0
  %v658 = vmax.f32 %v410, 0.0
  %v659 = vmax.f32 %v413, 0.0
  %v660 = vmax.f32 %v418, 0.0
  %v661 = vmax.f32 %v421, 0.0
  %v662 = vmax.f32 %v426, 0.0
  %v663 = vmax.f32 %v429, 0.0
  %v664 = vmax.f32 %v434, 0.0
  %v665 = vmax.f32 %v437, 0.0
  %v666 = vmax.f32 %v442, 0.0
  %v667 = vmax.f32 %v445, 0.0
  %v668 = vmax.f32 %v450, 0.0
  %v669 = vmax.f32 %v453, 0.0
  %v670 = vmax.f32 %v458, 0.0
  %v671 = vmax.f32 %v461, 0.0
  %v672 = vmax.f32 %v466, 0.0
  %v673 = vmax.f32 %v469, 0.0
  %v674 = vmax.f32 %v474, 0.0
  %v675 = vmax.f32 %v477, 0.0
  %v676 = vmax.f32 %v482, 0.0
  %v677 = vmax.f32 %v485, 0.0
  %v678 = vmax.f32 %v490, 0.0
  %v679 = vmax.f32 %v493, 0.0
  %v680 = vmax.f32 %v498, 0.0
  %v681 = vmax.f32 %v501, 0.0
  %v682 = vmax.f32 %v506, 0.0
  %v683 = vmax.f32 %v509, 0.0
  %v684 = vmax.f32 %v514, 0.0
  %v685 = vmax.f32 %v517, 0.0
  %v686 = vmax.f32 %v522, 0.0
  %v687 = vmax.f32 %v525, 0.0
  %v688 = vmax.f32 %v530, 0.0
  %v689 = vmax.f32 %v533, 0.0
  %v690 = vmax.f32 %v538, 0.0
  %v691 = vmax.f32 %v541, 0.0
  %v692 = vmax.f32 %v546, 0.0
  %v693 = vmax.f32 %v549, 0.0
  %v694 = vmax.f32 %v554, 0.0
  %v695 = vmax.f32 %v557, 0.0
  %v696 = vmax.f32 %v562, 0.0
  %v697 = vmax.f32 %v565, 0.0
  %v698 = vmax.f32 %v570, 0.0
  %v699 = vmax.f32 %v573, 0.0
  %v700 = vmax.f32 %v578, 0.0
  %v701 = vmax.f32 %v581, 0.0
  %v702 = vmax.f32 %v586, 0.0
  %v703 = vmax.f32 %v589, 0.0
  %v704 = vmax.f32 %v594, 0.0
  %v705 = vmax.f32 %v597, 0.0
  %v706 = vmax.f32 %v602, 0.0
  %v707 = vmax.f32 %v605, 0.0
  %v708 = vmax.f32 %v610, 0.0
  %v709 = vmax.f32 %v613, 0.0
  %v710 = vmax.f32 %v618, 0.0
  %v711 = vmax.f32 %v621, 0.0
  %v712 = vmax.f32 %v626, 0.0
  %v713 = vmax.f32 %v629, 0.0
  %v714 = vmax.f32 %v634, 0.0
  %v715 = vmax.f32 %v637, 0.0
  %v716 = vmax.f32 %v642, 0.0
  %v717 = vmax.f32 %v645, 0.0
  %v718 = vmax.f32 %v650, 0.0
  %v719 = vmax.f32 %v653, 0.0
  %v720 = vpack.c.bf16 %v657, %v656
  %v721 = vpack.c.bf16 %v659, %v658
  %v722 = vpack.c.bf16 %v661, %v660
  %v723 = vpack.c.bf16 %v663, %v662
  %v724 = vpack.c.bf16 %v665, %v664
  %v725 = vpack.c.bf16 %v667, %v666
  %v726 = vpack.c.bf16 %v669, %v668
  %v727 = vpack.c.bf16 %v671, %v670
  %v728 = vpack.c.bf16 %v673, %v672
  %v729 = vpack.c.bf16 %v675, %v674
  %v730 = vpack.c.bf16 %v677, %v676
  %v731 = vpack.c.bf16 %v679, %v678
  %v732 = vpack.c.bf16 %v681, %v680
  %v733 = vpack.c.bf16 %v683, %v682
  %v734 = vpack.c.bf16 %v685, %v684
  %v735 = vpack.c.bf16 %v687, %v686
  %v736 = vpack.c.bf16 %v689, %v688
  %v737 = vpack.c.bf16 %v691, %v690
  %v738 = vpack.c.bf16 %v693, %v692
  %v739 = vpack.c.bf16 %v695, %v694
  %v740 = vpack.c.bf16 %v697, %v696
  %v741 = vpack.c.bf16 %v699, %v698
  %v742 = vpack.c.bf16 %v701, %v700
  %v743 = vpack.c.bf16 %v703, %v702
  %v744 = vpack.c.bf16 %v705, %v704
  %v745 = vpack.c.bf16 %v707, %v706
  %v746 = vpack.c.bf16 %v709, %v708
  %v747 = vpack.c.bf16 %v711, %v710
  %v748 = vpack.c.bf16 %v713, %v712
  %v749 = vpack.c.bf16 %v715, %v714
  %v750 = vpack.c.bf16 %v717, %v716
  %v751 = vpack.c.bf16 %v719, %v718
  %v784 = vunpack.c.l.b16 %v720
  %v785 = vunpack.c.h.b16 %v720
  %v786 = vunpack.c.l.b16 %v721
  %v787 = vunpack.c.h.b16 %v721
  %v788 = vunpack.c.l.b16 %v722
  %v789 = vunpack.c.h.b16 %v722
  %v790 = vunpack.c.l.b16 %v723
  %v791 = vunpack.c.h.b16 %v723
  %v792 = vunpack.c.l.b16 %v724
  %v793 = vunpack.c.h.b16 %v724
  %v794 = vunpack.c.l.b16 %v725
  %v795 = vunpack.c.h.b16 %v725
  %v796 = vunpack.c.l.b16 %v726
  %v797 = vunpack.c.h.b16 %v726
  %v798 = vunpack.c.l.b16 %v727
  %v799 = vunpack.c.h.b16 %v727
  %v800 = vunpack.c.l.b16 %v728
  %v801 = vunpack.c.h.b16 %v728
  %v802 = vunpack.c.l.b16 %v729
  %v803 = vunpack.c.h.b16 %v729
  %v804 = vunpack.c.l.b16 %v730
  %v805 = vunpack.c.h.b16 %v730
  %v806 = vunpack.c.l.b16 %v731
  %v807 = vunpack.c.h.b16 %v731
  %v808 = vunpack.c.l.b16 %v732
  %v809 = vunpack.c.h.b16 %v732
  %v810 = vunpack.c.l.b16 %v733
  %v811 = vunpack.c.h.b16 %v733
  %v812 = vunpack.c.l.b16 %v734
  %v813 = vunpack.c.h.b16 %v734
  %v814 = vunpack.c.l.b16 %v735
  %v815 = vunpack.c.h.b16 %v735
  %v816 = vunpack.c.l.b16 %v736
  %v817 = vunpack.c.h.b16 %v736
  %v818 = vunpack.c.l.b16 %v737
  %v819 = vunpack.c.h.b16 %v737
  %v820 = vunpack.c.l.b16 %v738
  %v821 = vunpack.c.h.b16 %v738
  %v822 = vunpack.c.l.b16 %v739
  %v823 = vunpack.c.h.b16 %v739
  %v824 = vunpack.c.l.b16 %v740
  %v825 = vunpack.c.h.b16 %v740
  %v826 = vunpack.c.l.b16 %v741
  %v827 = vunpack.c.h.b16 %v741
  %v828 = vunpack.c.l.b16 %v742
  %v829 = vunpack.c.h.b16 %v742
  %v830 = vunpack.c.l.b16 %v743
  %v831 = vunpack.c.h.b16 %v743
  %v832 = vunpack.c.l.b16 %v744
  %v833 = vunpack.c.h.b16 %v744
  %v834 = vunpack.c.l.b16 %v745
  %v835 = vunpack.c.h.b16 %v745
  %v836 = vunpack.c.l.b16 %v746
  %v837 = vunpack.c.h.b16 %v746
  %v838 = vunpack.c.l.b16 %v747
  %v839 = vunpack.c.h.b16 %v747
  %v840 = vunpack.c.l.b16 %v748
  %v841 = vunpack.c.h.b16 %v748
  %v842 = vunpack.c.l.b16 %v749
  %v843 = vunpack.c.h.b16 %v749
  %v844 = vunpack.c.l.b16 %v750
  %v845 = vunpack.c.h.b16 %v750
  %v846 = vunpack.c.l.b16 %v751
  %v847 = vunpack.c.h.b16 %v751
  %v848 = vpack.c.b16 %v784, %v784
  %v849 = vpack.c.b16 %v785, %v785
  %v850 = vpack.c.b16 %v786, %v786
  %v851 = vpack.c.b16 %v787, %v787
  %v852 = vpack.c.b16 %v788, %v788
  %v853 = vpack.c.b16 %v789, %v789
  %v854 = vpack.c.b16 %v790, %v790
  %v855 = vpack.c.b16 %v791, %v791
  %v856 = vpack.c.b16 %v792, %v792
  %v857 = vpack.c.b16 %v793, %v793
  %v858 = vpack.c.b16 %v794, %v794
  %v859 = vpack.c.b16 %v795, %v795
  %v860 = vpack.c.b16 %v796, %v796
  %v861 = vpack.c.b16 %v797, %v797
  %v862 = vpack.c.b16 %v798, %v798
  %v863 = vpack.c.b16 %v799, %v799
  %v864 = vpack.c.b16 %v800, %v800
  %v865 = vpack.c.b16 %v801, %v801
  %v866 = vpack.c.b16 %v802, %v802
  %v867 = vpack.c.b16 %v803, %v803
  %v868 = vpack.c.b16 %v804, %v804
  %v869 = vpack.c.b16 %v805, %v805
  %v870 = vpack.c.b16 %v806, %v806
  %v871 = vpack.c.b16 %v807, %v807
  %v872 = vpack.c.b16 %v808, %v808
  %v873 = vpack.c.b16 %v809, %v809
  %v874 = vpack.c.b16 %v810, %v810
  %v875 = vpack.c.b16 %v811, %v811
  %v876 = vpack.c.b16 %v812, %v812
  %v877 = vpack.c.b16 %v813, %v813
  %v878 = vpack.c.b16 %v814, %v814
  %v879 = vpack.c.b16 %v815, %v815
  %v880 = vpack.c.b16 %v816, %v816
  %v881 = vpack.c.b16 %v817, %v817
  %v882 = vpack.c.b16 %v818, %v818
  %v883 = vpack.c.b16 %v819, %v819
  %v884 = vpack.c.b16 %v820, %v820
  %v885 = vpack.c.b16 %v821, %v821
  %v886 = vpack.c.b16 %v822, %v822
  %v887 = vpack.c.b16 %v823, %v823
  %v888 = vpack.c.b16 %v824, %v824
  %v889 = vpack.c.b16 %v825, %v825
  %v890 = vpack.c.b16 %v826, %v826
  %v891 = vpack.c.b16 %v827, %v827
  %v892 = vpack.c.b16 %v828, %v828
  %v893 = vpack.c.b16 %v829, %v829
  %v894 = vpack.c.b16 %v830, %v830
  %v895 = vpack.c.b16 %v831, %v831
  %v896 = vpack.c.b16 %v832, %v832
  %v897 = vpack.c.b16 %v833, %v833
  %v898 = vpack.c.b16 %v834, %v834
  %v899 = vpack.c.b16 %v835, %v835
  %v900 = vpack.c.b16 %v836, %v836
  %v901 = vpack.c.b16 %v837, %v837
  %v902 = vpack.c.b16 %v838, %v838
  %v903 = vpack.c.b16 %v839, %v839
  %v904 = vpack.c.b16 %v840, %v840
  %v905 = vpack.c.b16 %v841, %v841
  %v906 = vpack.c.b16 %v842, %v842
  %v907 = vpack.c.b16 %v843, %v843
  %v908 = vpack.c.b16 %v844, %v844
  %v909 = vpack.c.b16 %v845, %v845
  %v910 = vpack.c.b16 %v846, %v846
  %v911 = vpack.c.b16 %v847, %v847
  %vm976 = vcmask 257024
  %977 = vst.msk [vmem:[%s3] sm:$0xf] %vm976, %v848
  %978 = vst.msk [vmem:[%s3 + $0x4] sm:$0xf] %vm976, %v849
  %979 = vst.msk [vmem:[%s3 + $0x8] sm:$0xf] %vm976, %v850
  %980 = vst.msk [vmem:[%s3 + $0xc] sm:$0xf] %vm976, %v851
  %981 = vst.msk [vmem:[%s3 + $0x10] sm:$0xf] %vm976, %v852
  %982 = vst.msk [vmem:[%s3 + $0x14] sm:$0xf] %vm976, %v853
  %983 = vst.msk [vmem:[%s3 + $0x18] sm:$0xf] %vm976, %v854
  %984 = vst.msk [vmem:[%s3 + $0x1c] sm:$0xf] %vm976, %v855
  %985 = vst.msk [vmem:[%s3 + $0x20] sm:$0xf] %vm976, %v856
  %986 = vst.msk [vmem:[%s3 + $0x24] sm:$0xf] %vm976, %v857
  %987 = vst.msk [vmem:[%s3 + $0x28] sm:$0xf] %vm976, %v858
  %988 = vst.msk [vmem:[%s3 + $0x2c] sm:$0xf] %vm976, %v859
  %989 = vst.msk [vmem:[%s3 + $0x30] sm:$0xf] %vm976, %v860
  %990 = vst.msk [vmem:[%s3 + $0x34] sm:$0xf] %vm976, %v861
  %991 = vst.msk [vmem:[%s3 + $0x38] sm:$0xf] %vm976, %v862
  %992 = vst.msk [vmem:[%s3 + $0x3c] sm:$0xf] %vm976, %v863
  %993 = vst.msk [vmem:[%s3 + $0x40] sm:$0xf] %vm976, %v864
  %994 = vst.msk [vmem:[%s3 + $0x44] sm:$0xf] %vm976, %v865
  %995 = vst.msk [vmem:[%s3 + $0x48] sm:$0xf] %vm976, %v866
  %996 = vst.msk [vmem:[%s3 + $0x4c] sm:$0xf] %vm976, %v867
  %997 = vst.msk [vmem:[%s3 + $0x50] sm:$0xf] %vm976, %v868
  %998 = vst.msk [vmem:[%s3 + $0x54] sm:$0xf] %vm976, %v869
  %999 = vst.msk [vmem:[%s3 + $0x58] sm:$0xf] %vm976, %v870
  %1000 = vst.msk [vmem:[%s3 + $0x5c] sm:$0xf] %vm976, %v871
  %1001 = vst.msk [vmem:[%s3 + $0x60] sm:$0xf] %vm976, %v872
  %1002 = vst.msk [vmem:[%s3 + $0x64] sm:$0xf] %vm976, %v873
  %1003 = vst.msk [vmem:[%s3 + $0x68] sm:$0xf] %vm976, %v874
  %1004 = vst.msk [vmem:[%s3 + $0x6c] sm:$0xf] %vm976, %v875
  %1005 = vst.msk [vmem:[%s3 + $0x70] sm:$0xf] %vm976, %v876
  %1006 = vst.msk [vmem:[%s3 + $0x74] sm:$0xf] %vm976, %v877
  %1007 = vst.msk [vmem:[%s3 + $0x78] sm:$0xf] %vm976, %v878
  %1008 = vst.msk [vmem:[%s3 + $0x7c] sm:$0xf] %vm976, %v879
  %1009 = vst.msk [vmem:[%s3 + $0x80] sm:$0xf] %vm976, %v880
  %1010 = vst.msk [vmem:[%s3 + $0x84] sm:$0xf] %vm976, %v881
  %1011 = vst.msk [vmem:[%s3 + $0x88] sm:$0xf] %vm976, %v882
  %1012 = vst.msk [vmem:[%s3 + $0x8c] sm:$0xf] %vm976, %v883
  %1013 = vst.msk [vmem:[%s3 + $0x90] sm:$0xf] %vm976, %v884
  %1014 = vst.msk [vmem:[%s3 + $0x94] sm:$0xf] %vm976, %v885
  %1015 = vst.msk [vmem:[%s3 + $0x98] sm:$0xf] %vm976, %v886
  %1016 = vst.msk [vmem:[%s3 + $0x9c] sm:$0xf] %vm976, %v887
  %1017 = vst.msk [vmem:[%s3 + $0xa0] sm:$0xf] %vm976, %v888
  %1018 = vst.msk [vmem:[%s3 + $0xa4] sm:$0xf] %vm976, %v889
  %1019 = vst.msk [vmem:[%s3 + $0xa8] sm:$0xf] %vm976, %v890
  %1020 = vst.msk [vmem:[%s3 + $0xac] sm:$0xf] %vm976, %v891
  %1021 = vst.msk [vmem:[%s3 + $0xb0] sm:$0xf] %vm976, %v892
  %1022 = vst.msk [vmem:[%s3 + $0xb4] sm:$0xf] %vm976, %v893
  %1023 = vst.msk [vmem:[%s3 + $0xb8] sm:$0xf] %vm976, %v894
  %1024 = vst.msk [vmem:[%s3 + $0xbc] sm:$0xf] %vm976, %v895
  %1025 = vst.msk [vmem:[%s3 + $0xc0] sm:$0xf] %vm976, %v896
  %1026 = vst.msk [vmem:[%s3 + $0xc4] sm:$0xf] %vm976, %v897
  %1027 = vst.msk [vmem:[%s3 + $0xc8] sm:$0xf] %vm976, %v898
  %1028 = vst.msk [vmem:[%s3 + $0xcc] sm:$0xf] %vm976, %v899
  %1029 = vst.msk [vmem:[%s3 + $0xd0] sm:$0xf] %vm976, %v900
  %1030 = vst.msk [vmem:[%s3 + $0xd4] sm:$0xf] %vm976, %v901
  %1031 = vst.msk [vmem:[%s3 + $0xd8] sm:$0xf] %vm976, %v902
  %1032 = vst.msk [vmem:[%s3 + $0xdc] sm:$0xf] %vm976, %v903
  %1033 = vst.msk [vmem:[%s3 + $0xe0] sm:$0xf] %vm976, %v904
  %1034 = vst.msk [vmem:[%s3 + $0xe4] sm:$0xf] %vm976, %v905
  %1035 = vst.msk [vmem:[%s3 + $0xe8] sm:$0xf] %vm976, %v906
  %1036 = vst.msk [vmem:[%s3 + $0xec] sm:$0xf] %vm976, %v907
  %1037 = vst.msk [vmem:[%s3 + $0xf0] sm:$0xf] %vm976, %v908
  %1038 = vst.msk [vmem:[%s3 + $0xf4] sm:$0xf] %vm976, %v909
  %1039 = vst.msk [vmem:[%s3 + $0xf8] sm:$0xf] %vm976, %v910
  %1040 = vst.msk [vmem:[%s3 + $0xfc] sm:$0xf] %vm976, %v911
  // Predicated region
  $region14: #{residual_unit_forward.3} parent=0 // pred_check
    _
  $region15: #{residual_unit_forward.3} parent=0 // pred_check_branch
    %1042 = sbr.rel (0) target = $region17
  $region16: #{residual_unit_forward.3} parent=0 // pred_region
    _
  $region17: #{residual_unit_forward.3} parent=0 // pred_fallthru
    _
  // Predicated region
  $region18: #{residual_unit_forward.3} parent=0 // pred_check
    _
  $region19: #{residual_unit_forward.3} parent=0 // pred_check_branch
    %1044 = sbr.rel (0) target = $region21
  $region20: #{residual_unit_forward.3} parent=0 // pred_region
    _
  $region21: #{residual_unit_forward.3} parent=0 // pred_fallthru
    _

// kernel: residual_unit_forward.5
$region0: #{residual_unit_forward.5}
  #allocation0 [shape = 'u32[]', space=smem, size = 0x4, offset = 0x4, fixed_abs, tag = 'smem constant byte address 0x4 - core index']
  #allocation1 [shape = 'u32[144,128]{1,0:T(1,128)}', space=vmem, size = 0x12000, scoped, tag = 'internal scratch']
  %s0 = inlined_call_operand.vmem [shape: bf16[512,288], index: 0, kind: input, shape index: {}]
  %s1 = inlined_call_operand.vmem [shape: bf16[288,32], index: 1, kind: input, shape index: {}]
  %s2 = inlined_call_operand.vmem [shape: f32[1,32], index: 2, kind: input, shape index: {}]
  %s3 = inlined_call_operand.vmem [shape: f32[512,32], index: 3, kind: input, shape index: {}]
  %s4 = inlined_call_operand.hbm [shape: f32[512,32], index: 4, kind: output, shape index: {}]
  %s5 = sld [smem:[#allocation0]]
  $region26: #{residual_unit_forward.5} parent=0
    _
  %s7 = ssub.s32 1, %s5
  %s8 = scalar_select 0, %s7, %s5
  $region1: #{residual_unit_forward.5} parent=0
    #allocation2 [shape = 'u8[262144]{0}', space=vmem, size = 0x40000, scoped, tag = 'output window, operand 0, single buffered']
    #allocation3 [shape = 's32[1]{0}', space=sflag, size = 0x4, scoped, tag = 'scoped memory for residual_unit_forward.5']
    %9 = vsyncpa [#allocation3], 0
    // Predicated region
    $region2: #{residual_unit_forward.5} parent=1 // pred_check
      _
    $region3: #{residual_unit_forward.5} parent=1 // pred_check_branch
      %11 = sbr.rel (0) target = $region5
    $region4: #{residual_unit_forward.5} parent=1 // pred_region
      _
    $region5: #{residual_unit_forward.5} parent=1 // pred_fallthru
      _
    // Predicated region
    $region6: #{residual_unit_forward.5} parent=1 // pred_check
      _
    $region7: #{residual_unit_forward.5} parent=1 // pred_check_branch
      %13 = sbr.rel (0) target = $region9
    $region8: #{residual_unit_forward.5} parent=1 // pred_region
      _
    $region9: #{residual_unit_forward.5} parent=1 // pred_fallthru
      _
    // Predicated region
    $region10: #{residual_unit_forward.5} parent=1 // pred_check
      _
    $region11: #{residual_unit_forward.5} parent=1 // pred_check_branch
      %15 = sbr.rel (0) target = $region13
    $region12: #{residual_unit_forward.5} parent=1 // pred_region
      _
    $region13: #{residual_unit_forward.5} parent=1 // pred_fallthru
      _
    // Predicated region
    $region14: #{residual_unit_forward.5} parent=1 // pred_check
      _
    $region15: #{residual_unit_forward.5} parent=1 // pred_check_branch
      %17 = sbr.rel (0) target = $region17
    $region16: #{residual_unit_forward.5} parent=1 // pred_region
      _
    $region17: #{residual_unit_forward.5} parent=1 // pred_fallthru
      _
    %v19 = vld [vmem:[%s0] sm:$0xff]
    %v20 = vld [vmem:[%s0 + $0x8] sm:$0xf]
    %v21 = vld [vmem:[%s0 + $0xc] sm:$0xff]
    %v22 = vld [vmem:[%s0 + $0x14] sm:$0xf]
    %v23 = vld [vmem:[%s0 + $0x18] sm:$0xff]
    %v24 = vld [vmem:[%s0 + $0x20] sm:$0xf]
    %v25 = vld [vmem:[%s0 + $0x24] sm:$0xff]
    %v26 = vld [vmem:[%s0 + $0x2c] sm:$0xf]
    %v27 = vld [vmem:[%s0 + $0x30] sm:$0xff]
    %v28 = vld [vmem:[%s0 + $0x38] sm:$0xf]
    %v29 = vld [vmem:[%s0 + $0x3c] sm:$0xff]
    %v30 = vld [vmem:[%s0 + $0x44] sm:$0xf]
    %v31 = vld [vmem:[%s0 + $0x48] sm:$0xff]
    %v32 = vld [vmem:[%s0 + $0x50] sm:$0xf]
    %v33 = vld [vmem:[%s0 + $0x54] sm:$0xff]
    %v34 = vld [vmem:[%s0 + $0x5c] sm:$0xf]
    %v35 = vld [vmem:[%s0 + $0x60] sm:$0xff]
    %v36 = vld [vmem:[%s0 + $0x68] sm:$0xf]
    %v37 = vld [vmem:[%s0 + $0x6c] sm:$0xff]
    %v38 = vld [vmem:[%s0 + $0x74] sm:$0xf]
    %v39 = vld [vmem:[%s0 + $0x78] sm:$0xff]
    %v40 = vld [vmem:[%s0 + $0x80] sm:$0xf]
    %v41 = vld [vmem:[%s0 + $0x84] sm:$0xff]
    %v42 = vld [vmem:[%s0 + $0x8c] sm:$0xf]
    %v43 = vld [vmem:[%s0 + $0x90] sm:$0xff]
    %v44 = vld [vmem:[%s0 + $0x98] sm:$0xf]
    %v45 = vld [vmem:[%s0 + $0x9c] sm:$0xff]
    %v46 = vld [vmem:[%s0 + $0xa4] sm:$0xf]
    %v47 = vld [vmem:[%s0 + $0xa8] sm:$0xff]
    %v48 = vld [vmem:[%s0 + $0xb0] sm:$0xf]
    %v49 = vld [vmem:[%s0 + $0xb4] sm:$0xff]
    %v50 = vld [vmem:[%s0 + $0xbc] sm:$0xf]
    %v51 = vld [vmem:[%s0 + $0xc0] sm:$0xff]
    %v52 = vld [vmem:[%s0 + $0xc8] sm:$0xf]
    %v53 = vld [vmem:[%s0 + $0xcc] sm:$0xff]
    %v54 = vld [vmem:[%s0 + $0xd4] sm:$0xf]
    %v55 = vld [vmem:[%s0 + $0xd8] sm:$0xff]
    %v56 = vld [vmem:[%s0 + $0xe0] sm:$0xf]
    %v57 = vld [vmem:[%s0 + $0xe4] sm:$0xff]
    %v58 = vld [vmem:[%s0 + $0xec] sm:$0xf]
    %v59 = vld [vmem:[%s0 + $0xf0] sm:$0xff]
    %v60 = vld [vmem:[%s0 + $0xf8] sm:$0xf]
    %v61 = vld [vmem:[%s0 + $0xfc] sm:$0xff]
    %v62 = vld [vmem:[%s0 + $0x104] sm:$0xf]
    %v63 = vld [vmem:[%s0 + $0x108] sm:$0xff]
    %v64 = vld [vmem:[%s0 + $0x110] sm:$0xf]
    %v65 = vld [vmem:[%s0 + $0x114] sm:$0xff]
    %v66 = vld [vmem:[%s0 + $0x11c] sm:$0xf]
    %v67 = vld [vmem:[%s0 + $0x120] sm:$0xff]
    %v68 = vld [vmem:[%s0 + $0x128] sm:$0xf]
    %v69 = vld [vmem:[%s0 + $0x12c] sm:$0xff]
    %v70 = vld [vmem:[%s0 + $0x134] sm:$0xf]
    %v71 = vld [vmem:[%s0 + $0x138] sm:$0xff]
    %v72 = vld [vmem:[%s0 + $0x140] sm:$0xf]
    %v73 = vld [vmem:[%s0 + $0x144] sm:$0xff]
    %v74 = vld [vmem:[%s0 + $0x14c] sm:$0xf]
    %v75 = vld [vmem:[%s0 + $0x150] sm:$0xff]
    %v76 = vld [vmem:[%s0 + $0x158] sm:$0xf]
    %v77 = vld [vmem:[%s0 + $0x15c] sm:$0xff]
    %v78 = vld [vmem:[%s0 + $0x164] sm:$0xf]
    %v79 = vld [vmem:[%s0 + $0x168] sm:$0xff]
    %v80 = vld [vmem:[%s0 + $0x170] sm:$0xf]
    %v81 = vld [vmem:[%s0 + $0x174] sm:$0xff]
    %v82 = vld [vmem:[%s0 + $0x17c] sm:$0xf]
    %v83 = vld [vmem:[%s0 + $0x180] sm:$0xff]
    %v84 = vld [vmem:[%s0 + $0x188] sm:$0xf]
    %v85 = vld [vmem:[%s0 + $0x18c] sm:$0xff]
    %v86 = vld [vmem:[%s0 + $0x194] sm:$0xf]
    %v87 = vld [vmem:[%s0 + $0x198] sm:$0xff]
    %v88 = vld [vmem:[%s0 + $0x1a0] sm:$0xf]
    %v89 = vld [vmem:[%s0 + $0x1a4] sm:$0xff]
    %v90 = vld [vmem:[%s0 + $0x1ac] sm:$0xf]
    %v91 = vld [vmem:[%s0 + $0x1b0] sm:$0xff]
    %v92 = vld [vmem:[%s0 + $0x1b8] sm:$0xf]
    %v93 = vld [vmem:[%s0 + $0x1bc] sm:$0xff]
    %v94 = vld [vmem:[%s0 + $0x1c4] sm:$0xf]
    %v95 = vld [vmem:[%s0 + $0x1c8] sm:$0xff]
    %v96 = vld [vmem:[%s0 + $0x1d0] sm:$0xf]
    %v97 = vld [vmem:[%s0 + $0x1d4] sm:$0xff]
    %v98 = vld [vmem:[%s0 + $0x1dc] sm:$0xf]
    %v99 = vld [vmem:[%s0 + $0x1e0] sm:$0xff]
    %v100 = vld [vmem:[%s0 + $0x1e8] sm:$0xf]
    %v101 = vld [vmem:[%s0 + $0x1ec] sm:$0xff]
    %v102 = vld [vmem:[%s0 + $0x1f4] sm:$0xf]
    %v103 = vld [vmem:[%s0 + $0x1f8] sm:$0xff]
    %v104 = vld [vmem:[%s0 + $0x200] sm:$0xf]
    %v105 = vld [vmem:[%s0 + $0x204] sm:$0xff]
    %v106 = vld [vmem:[%s0 + $0x20c] sm:$0xf]
    %v107 = vld [vmem:[%s0 + $0x210] sm:$0xff]
    %v108 = vld [vmem:[%s0 + $0x218] sm:$0xf]
    %v109 = vld [vmem:[%s0 + $0x21c] sm:$0xff]
    %v110 = vld [vmem:[%s0 + $0x224] sm:$0xf]
    %v111 = vld [vmem:[%s0 + $0x228] sm:$0xff]
    %v112 = vld [vmem:[%s0 + $0x230] sm:$0xf]
    %v113 = vld [vmem:[%s0 + $0x234] sm:$0xff]
    %v114 = vld [vmem:[%s0 + $0x23c] sm:$0xf]
    %v115 = vld [vmem:[%s0 + $0x240] sm:$0xff]
    %v116 = vld [vmem:[%s0 + $0x248] sm:$0xf]
    %v117 = vld [vmem:[%s0 + $0x24c] sm:$0xff]
    %v118 = vld [vmem:[%s0 + $0x254] sm:$0xf]
    %v119 = vld [vmem:[%s0 + $0x258] sm:$0xff]
    %v120 = vld [vmem:[%s0 + $0x260] sm:$0xf]
    %v121 = vld [vmem:[%s0 + $0x264] sm:$0xff]
    %v122 = vld [vmem:[%s0 + $0x26c] sm:$0xf]
    %v123 = vld [vmem:[%s0 + $0x270] sm:$0xff]
    %v124 = vld [vmem:[%s0 + $0x278] sm:$0xf]
    %v125 = vld [vmem:[%s0 + $0x27c] sm:$0xff]
    %v126 = vld [vmem:[%s0 + $0x284] sm:$0xf]
    %v127 = vld [vmem:[%s0 + $0x288] sm:$0xff]
    %v128 = vld [vmem:[%s0 + $0x290] sm:$0xf]
    %v129 = vld [vmem:[%s0 + $0x294] sm:$0xff]
    %v130 = vld [vmem:[%s0 + $0x29c] sm:$0xf]
    %v131 = vld [vmem:[%s0 + $0x2a0] sm:$0xff]
    %v132 = vld [vmem:[%s0 + $0x2a8] sm:$0xf]
    %v133 = vld [vmem:[%s0 + $0x2ac] sm:$0xff]
    %v134 = vld [vmem:[%s0 + $0x2b4] sm:$0xf]
    %v135 = vld [vmem:[%s0 + $0x2b8] sm:$0xff]
    %v136 = vld [vmem:[%s0 + $0x2c0] sm:$0xf]
    %v137 = vld [vmem:[%s0 + $0x2c4] sm:$0xff]
    %v138 = vld [vmem:[%s0 + $0x2cc] sm:$0xf]
    %v139 = vld [vmem:[%s0 + $0x2d0] sm:$0xff]
    %v140 = vld [vmem:[%s0 + $0x2d8] sm:$0xf]
    %v141 = vld [vmem:[%s0 + $0x2dc] sm:$0xff]
    %v142 = vld [vmem:[%s0 + $0x2e4] sm:$0xf]
    %v143 = vld [vmem:[%s0 + $0x2e8] sm:$0xff]
    %v144 = vld [vmem:[%s0 + $0x2f0] sm:$0xf]
    %v145 = vld [vmem:[%s0 + $0x2f4] sm:$0xff]
    %v146 = vld [vmem:[%s0 + $0x2fc] sm:$0xf]
    %v147 = vld [vmem:[%s1] sm:$0xf]
    %v148 = vld [vmem:[%s1 + $0x4] sm:$0xf]
    %v149 = vld [vmem:[%s1 + $0x8] sm:$0xf]
    %v150 = vld [vmem:[%s1 + $0xc] sm:$0xf]
    %v151 = vld [vmem:[%s1 + $0x10] sm:$0xf]
    %v152 = vld [vmem:[%s1 + $0x14] sm:$0xf]
    %v153 = vld [vmem:[%s1 + $0x18] sm:$0xf]
    %v154 = vld [vmem:[%s1 + $0x1c] sm:$0xf]
    %v155 = vld [vmem:[%s1 + $0x20] sm:$0xf]
    %v156 = vld [vmem:[%s1 + $0x24] sm:$0xf]
    %v157 = vld [vmem:[%s1 + $0x28] sm:$0xf]
    %v158 = vld [vmem:[%s1 + $0x2c] sm:$0xf]
    %v159 = vld [vmem:[%s1 + $0x30] sm:$0xf]
    %v160 = vld [vmem:[%s1 + $0x34] sm:$0xf]
    %v161 = vld [vmem:[%s1 + $0x38] sm:$0xf]
    %v162 = vld [vmem:[%s1 + $0x3c] sm:$0xf]
    %v163 = vld [vmem:[%s1 + $0x40] sm:$0xf]
    %v164 = vld [vmem:[%s1 + $0x44] sm:$0xf]
    %v165 = vld [vmem:[%s1 + $0x48] sm:$0xf]
    %v166 = vld [vmem:[%s1 + $0x4c] sm:$0xf]
    %v167 = vld [vmem:[%s1 + $0x50] sm:$0xf]
    %v168 = vld [vmem:[%s1 + $0x54] sm:$0xf]
    %v169 = vld [vmem:[%s1 + $0x58] sm:$0xf]
    %v170 = vld [vmem:[%s1 + $0x5c] sm:$0xf]
    %v171 = vld [vmem:[%s1 + $0x60] sm:$0xf]
    %v172 = vld [vmem:[%s1 + $0x64] sm:$0xf]
    %v173 = vld [vmem:[%s1 + $0x68] sm:$0xf]
    %v174 = vld [vmem:[%s1 + $0x6c] sm:$0xf]
    %v175 = vld [vmem:[%s1 + $0x70] sm:$0xf]
    %v176 = vld [vmem:[%s1 + $0x74] sm:$0xf]
    %v177 = vld [vmem:[%s1 + $0x78] sm:$0xf]
    %v178 = vld [vmem:[%s1 + $0x7c] sm:$0xf]
    %v179 = vld [vmem:[%s1 + $0x80] sm:$0xf]
    %v180 = vld [vmem:[%s1 + $0x84] sm:$0xf]
    %v181 = vld [vmem:[%s1 + $0x88] sm:$0xf]
    %v182 = vld [vmem:[%s1 + $0x8c] sm:$0xf]
    %v183 = vld [vmem:[%s2] sm:$0x1]
    %v185 = vlaneseq
    %v186 = vshrl.u32 %v185, 7
    %v187 = vsub.s32 0, %v186
    %v188 = vrot.slane %v183, %v187
    %v318 = vunpack.c.l.b16 %v19
    %v319 = vunpack.c.h.b16 %v19
    %v320 = vunpack.c.l.b16 %v20
    %v321 = vunpack.c.l.b16 %v21
    %v322 = vunpack.c.h.b16 %v21
    %v323 = vunpack.c.l.b16 %v22
    %v324 = vunpack.c.l.b16 %v23
    %v325 = vunpack.c.h.b16 %v23
    %v326 = vunpack.c.l.b16 %v24
    %v327 = vunpack.c.l.b16 %v25
    %v328 = vunpack.c.h.b16 %v25
    %v329 = vunpack.c.l.b16 %v26
    %v330 = vunpack.c.l.b16 %v27
    %v331 = vunpack.c.h.b16 %v27
    %v332 = vunpack.c.l.b16 %v28
    %v333 = vunpack.c.l.b16 %v29
    %v334 = vunpack.c.h.b16 %v29
    %v335 = vunpack.c.l.b16 %v30
    %v336 = vunpack.c.l.b16 %v31
    %v337 = vunpack.c.h.b16 %v31
    %v338 = vunpack.c.l.b16 %v32
    %v339 = vunpack.c.l.b16 %v33
    %v340 = vunpack.c.h.b16 %v33
    %v341 = vunpack.c.l.b16 %v34
    %v342 = vunpack.c.l.b16 %v35
    %v343 = vunpack.c.h.b16 %v35
    %v344 = vunpack.c.l.b16 %v36
    %v345 = vunpack.c.l.b16 %v37
    %v346 = vunpack.c.h.b16 %v37
    %v347 = vunpack.c.l.b16 %v38
    %v348 = vunpack.c.l.b16 %v39
    %v349 = vunpack.c.h.b16 %v39
    %v350 = vunpack.c.l.b16 %v40
    %v351 = vunpack.c.l.b16 %v41
    %v352 = vunpack.c.h.b16 %v41
    %v353 = vunpack.c.l.b16 %v42
    %v354 = vunpack.c.l.b16 %v43
    %v355 = vunpack.c.h.b16 %v43
    %v356 = vunpack.c.l.b16 %v44
    %v357 = vunpack.c.l.b16 %v45
    %v358 = vunpack.c.h.b16 %v45
    %v359 = vunpack.c.l.b16 %v46
    %v360 = vunpack.c.l.b16 %v47
    %v361 = vunpack.c.h.b16 %v47
    %v362 = vunpack.c.l.b16 %v48
    %v363 = vunpack.c.l.b16 %v49
    %v364 = vunpack.c.h.b16 %v49
    %v365 = vunpack.c.l.b16 %v50
    %v366 = vunpack.c.l.b16 %v51
    %v367 = vunpack.c.h.b16 %v51
    %v368 = vunpack.c.l.b16 %v52
    %v369 = vunpack.c.l.b16 %v53
    %v370 = vunpack.c.h.b16 %v53
    %v371 = vunpack.c.l.b16 %v54
    %v372 = vunpack.c.l.b16 %v55
    %v373 = vunpack.c.h.b16 %v55
    %v374 = vunpack.c.l.b16 %v56
    %v375 = vunpack.c.l.b16 %v57
    %v376 = vunpack.c.h.b16 %v57
    %v377 = vunpack.c.l.b16 %v58
    %v378 = vunpack.c.l.b16 %v59
    %v379 = vunpack.c.h.b16 %v59
    %v380 = vunpack.c.l.b16 %v60
    %v381 = vunpack.c.l.b16 %v61
    %v382 = vunpack.c.h.b16 %v61
    %v383 = vunpack.c.l.b16 %v62
    %v384 = vunpack.c.l.b16 %v63
    %v385 = vunpack.c.h.b16 %v63
    %v386 = vunpack.c.l.b16 %v64
    %v387 = vunpack.c.l.b16 %v65
    %v388 = vunpack.c.h.b16 %v65
    %v389 = vunpack.c.l.b16 %v66
    %v390 = vunpack.c.l.b16 %v67
    %v391 = vunpack.c.h.b16 %v67
    %v392 = vunpack.c.l.b16 %v68
    %v393 = vunpack.c.l.b16 %v69
    %v394 = vunpack.c.h.b16 %v69
    %v395 = vunpack.c.l.b16 %v70
    %v396 = vunpack.c.l.b16 %v71
    %v397 = vunpack.c.h.b16 %v71
    %v398 = vunpack.c.l.b16 %v72
    %v399 = vunpack.c.l.b16 %v73
    %v400 = vunpack.c.h.b16 %v73
    %v401 = vunpack.c.l.b16 %v74
    %v402 = vunpack.c.l.b16 %v75
    %v403 = vunpack.c.h.b16 %v75
    %v404 = vunpack.c.l.b16 %v76
    %v405 = vunpack.c.l.b16 %v77
    %v406 = vunpack.c.h.b16 %v77
    %v407 = vunpack.c.l.b16 %v78
    %v408 = vunpack.c.l.b16 %v79
    %v409 = vunpack.c.h.b16 %v79
    %v410 = vunpack.c.l.b16 %v80
    %v411 = vunpack.c.l.b16 %v81
    %v412 = vunpack.c.h.b16 %v81
    %v413 = vunpack.c.l.b16 %v82
    %v414 = vunpack.c.l.b16 %v83
    %v415 = vunpack.c.h.b16 %v83
    %v416 = vunpack.c.l.b16 %v84
    %v417 = vunpack.c.l.b16 %v85
    %v418 = vunpack.c.h.b16 %v85
    %v419 = vunpack.c.l.b16 %v86
    %v420 = vunpack.c.l.b16 %v87
    %v421 = vunpack.c.h.b16 %v87
    %v422 = vunpack.c.l.b16 %v88
    %v423 = vunpack.c.l.b16 %v89
    %v424 = vunpack.c.h.b16 %v89
    %v425 = vunpack.c.l.b16 %v90
    %v426 = vunpack.c.l.b16 %v91
    %v427 = vunpack.c.h.b16 %v91
    %v428 = vunpack.c.l.b16 %v92
    %v429 = vunpack.c.l.b16 %v93
    %v430 = vunpack.c.h.b16 %v93
    %v431 = vunpack.c.l.b16 %v94
    %v432 = vunpack.c.l.b16 %v95
    %v433 = vunpack.c.h.b16 %v95
    %v434 = vunpack.c.l.b16 %v96
    %v435 = vunpack.c.l.b16 %v97
    %v436 = vunpack.c.h.b16 %v97
    %v437 = vunpack.c.l.b16 %v98
    %v438 = vunpack.c.l.b16 %v99
    %v439 = vunpack.c.h.b16 %v99
    %v440 = vunpack.c.l.b16 %v100
    %v441 = vunpack.c.l.b16 %v101
    %v442 = vunpack.c.h.b16 %v101
    %v443 = vunpack.c.l.b16 %v102
    %v444 = vunpack.c.l.b16 %v103
    %v445 = vunpack.c.h.b16 %v103
    %v446 = vunpack.c.l.b16 %v104
    %v447 = vunpack.c.l.b16 %v105
    %v448 = vunpack.c.h.b16 %v105
    %v449 = vunpack.c.l.b16 %v106
    %v450 = vunpack.c.l.b16 %v107
    %v451 = vunpack.c.h.b16 %v107
    %v452 = vunpack.c.l.b16 %v108
    %v453 = vunpack.c.l.b16 %v109
    %v454 = vunpack.c.h.b16 %v109
    %v455 = vunpack.c.l.b16 %v110
    %v456 = vunpack.c.l.b16 %v111
    %v457 = vunpack.c.h.b16 %v111
    %v458 = vunpack.c.l.b16 %v112
    %v459 = vunpack.c.l.b16 %v113
    %v460 = vunpack.c.h.b16 %v113
    %v461 = vunpack.c.l.b16 %v114
    %v462 = vunpack.c.l.b16 %v115
    %v463 = vunpack.c.h.b16 %v115
    %v464 = vunpack.c.l.b16 %v116
    %v465 = vunpack.c.l.b16 %v117
    %v466 = vunpack.c.h.b16 %v117
    %v467 = vunpack.c.l.b16 %v118
    %v468 = vunpack.c.l.b16 %v119
    %v469 = vunpack.c.h.b16 %v119
    %v470 = vunpack.c.l.b16 %v120
    %v471 = vunpack.c.l.b16 %v121
    %v472 = vunpack.c.h.b16 %v121
    %v473 = vunpack.c.l.b16 %v122
    %v474 = vunpack.c.l.b16 %v123
    %v475 = vunpack.c.h.b16 %v123
    %v476 = vunpack.c.l.b16 %v124
    %v477 = vunpack.c.l.b16 %v125
    %v478 = vunpack.c.h.b16 %v125
    %v479 = vunpack.c.l.b16 %v126
    %v480 = vunpack.c.l.b16 %v127
    %v481 = vunpack.c.h.b16 %v127
    %v482 = vunpack.c.l.b16 %v128
    %v483 = vunpack.c.l.b16 %v129
    %v484 = vunpack.c.h.b16 %v129
    %v485 = vunpack.c.l.b16 %v130
    %v486 = vunpack.c.l.b16 %v131
    %v487 = vunpack.c.h.b16 %v131
    %v488 = vunpack.c.l.b16 %v132
    %v489 = vunpack.c.l.b16 %v133
    %v490 = vunpack.c.h.b16 %v133
    %v491 = vunpack.c.l.b16 %v134
    %v492 = vunpack.c.l.b16 %v135
    %v493 = vunpack.c.h.b16 %v135
    %v494 = vunpack.c.l.b16 %v136
    %v495 = vunpack.c.l.b16 %v137
    %v496 = vunpack.c.h.b16 %v137
    %v497 = vunpack.c.l.b16 %v138
    %v498 = vunpack.c.l.b16 %v139
    %v499 = vunpack.c.h.b16 %v139
    %v500 = vunpack.c.l.b16 %v140
    %v501 = vunpack.c.l.b16 %v141
    %v502 = vunpack.c.h.b16 %v141
    %v503 = vunpack.c.l.b16 %v142
    %v504 = vunpack.c.l.b16 %v143
    %v505 = vunpack.c.h.b16 %v143
    %v506 = vunpack.c.l.b16 %v144
    %v507 = vunpack.c.l.b16 %v145
    %v508 = vunpack.c.h.b16 %v145
    %v509 = vunpack.c.l.b16 %v146
    %v510 = vpack.c.b16 %v321, %v318
    %v511 = vpack.c.b16 %v322, %v319
    %v512 = vpack.c.b16 %v323, %v320
    %v513 = vpack.c.b16 %v327, %v324
    %v514 = vpack.c.b16 %v328, %v325
    %v515 = vpack.c.b16 %v329, %v326
    %v516 = vpack.c.b16 %v333, %v330
    %v517 = vpack.c.b16 %v334, %v331
    %v518 = vpack.c.b16 %v335, %v332
    %v519 = vpack.c.b16 %v339, %v336
    %v520 = vpack.c.b16 %v340, %v337
    %v521 = vpack.c.b16 %v341, %v338
    %v522 = vpack.c.b16 %v345, %v342
    %v523 = vpack.c.b16 %v346, %v343
    %v524 = vpack.c.b16 %v347, %v344
    %v525 = vpack.c.b16 %v351, %v348
    %v526 = vpack.c.b16 %v352, %v349
    %v527 = vpack.c.b16 %v353, %v350
    %v528 = vpack.c.b16 %v357, %v354
    %v529 = vpack.c.b16 %v358, %v355
    %v530 = vpack.c.b16 %v359, %v356
    %v531 = vpack.c.b16 %v363, %v360
    %v532 = vpack.c.b16 %v364, %v361
    %v533 = vpack.c.b16 %v365, %v362
    %v534 = vpack.c.b16 %v369, %v366
    %v535 = vpack.c.b16 %v370, %v367
    %v536 = vpack.c.b16 %v371, %v368
    %v537 = vpack.c.b16 %v375, %v372
    %v538 = vpack.c.b16 %v376, %v373
    %v539 = vpack.c.b16 %v377, %v374
    %v540 = vpack.c.b16 %v381, %v378
    %v541 = vpack.c.b16 %v382, %v379
    %v542 = vpack.c.b16 %v383, %v380
    %v543 = vpack.c.b16 %v387, %v384
    %v544 = vpack.c.b16 %v388, %v385
    %v545 = vpack.c.b16 %v389, %v386
    %v546 = vpack.c.b16 %v393, %v390
    %v547 = vpack.c.b16 %v394, %v391
    %v548 = vpack.c.b16 %v395, %v392
    %v549 = vpack.c.b16 %v399, %v396
    %v550 = vpack.c.b16 %v400, %v397
    %v551 = vpack.c.b16 %v401, %v398
    %v552 = vpack.c.b16 %v405, %v402
    %v553 = vpack.c.b16 %v406, %v403
    %v554 = vpack.c.b16 %v407, %v404
    %v555 = vpack.c.b16 %v411, %v408
    %v556 = vpack.c.b16 %v412, %v409
    %v557 = vpack.c.b16 %v413, %v410
    %v558 = vpack.c.b16 %v417, %v414
    %v559 = vpack.c.b16 %v418, %v415
    %v560 = vpack.c.b16 %v419, %v416
    %v561 = vpack.c.b16 %v423, %v420
    %v562 = vpack.c.b16 %v424, %v421
    %v563 = vpack.c.b16 %v425, %v422
    %v564 = vpack.c.b16 %v429, %v426
    %v565 = vpack.c.b16 %v430, %v427
    %v566 = vpack.c.b16 %v431, %v428
    %v567 = vpack.c.b16 %v435, %v432
    %v568 = vpack.c.b16 %v436, %v433
    %v569 = vpack.c.b16 %v437, %v434
    %v570 = vpack.c.b16 %v441, %v438
    %v571 = vpack.c.b16 %v442, %v439
    %v572 = vpack.c.b16 %v443, %v440
    %v573 = vpack.c.b16 %v447, %v444
    %v574 = vpack.c.b16 %v448, %v445
    %v575 = vpack.c.b16 %v449, %v446
    %v576 = vpack.c.b16 %v453, %v450
    %v577 = vpack.c.b16 %v454, %v451
    %v578 = vpack.c.b16 %v455, %v452
    %v579 = vpack.c.b16 %v459, %v456
    %v580 = vpack.c.b16 %v460, %v457
    %v581 = vpack.c.b16 %v461, %v458
    %v582 = vpack.c.b16 %v465, %v462
    %v583 = vpack.c.b16 %v466, %v463
    %v584 = vpack.c.b16 %v467, %v464
    %v585 = vpack.c.b16 %v471, %v468
    %v586 = vpack.c.b16 %v472, %v469
    %v587 = vpack.c.b16 %v473, %v470
    %v588 = vpack.c.b16 %v477, %v474
    %v589 = vpack.c.b16 %v478, %v475
    %v590 = vpack.c.b16 %v479, %v476
    %v591 = vpack.c.b16 %v483, %v480
    %v592 = vpack.c.b16 %v484, %v481
    %v593 = vpack.c.b16 %v485, %v482
    %v594 = vpack.c.b16 %v489, %v486
    %v595 = vpack.c.b16 %v490, %v487
    %v596 = vpack.c.b16 %v491, %v488
    %v597 = vpack.c.b16 %v495, %v492
    %v598 = vpack.c.b16 %v496, %v493
    %v599 = vpack.c.b16 %v497, %v494
    %v600 = vpack.c.b16 %v501, %v498
    %v601 = vpack.c.b16 %v502, %v499
    %v602 = vpack.c.b16 %v503, %v500
    %v603 = vpack.c.b16 %v507, %v504
    %v604 = vpack.c.b16 %v508, %v505
    %v605 = vpack.c.b16 %v509, %v506
    %v706 = vunpack.c.l.b16 %v147
    %v707 = vunpack.c.l.b16 %v148
    %v708 = vunpack.c.l.b16 %v149
    %v709 = vunpack.c.l.b16 %v150
    %v710 = vunpack.c.l.b16 %v151
    %v711 = vunpack.c.l.b16 %v152
    %v712 = vunpack.c.l.b16 %v153
    %v713 = vunpack.c.l.b16 %v154
    %v714 = vunpack.c.l.b16 %v155
    %v715 = vunpack.c.l.b16 %v156
    %v716 = vunpack.c.l.b16 %v157
    %v717 = vunpack.c.l.b16 %v158
    %v718 = vunpack.c.l.b16 %v159
    %v719 = vunpack.c.l.b16 %v160
    %v720 = vunpack.c.l.b16 %v161
    %v721 = vunpack.c.l.b16 %v162
    %v722 = vunpack.c.l.b16 %v163
    %v723 = vunpack.c.l.b16 %v164
    %v724 = vunpack.c.l.b16 %v165
    %v725 = vunpack.c.l.b16 %v166
    %v726 = vunpack.c.l.b16 %v167
    %v727 = vunpack.c.l.b16 %v168
    %v728 = vunpack.c.l.b16 %v169
    %v729 = vunpack.c.l.b16 %v170
    %v730 = vunpack.c.l.b16 %v171
    %v731 = vunpack.c.l.b16 %v172
    %v732 = vunpack.c.l.b16 %v173
    %v733 = vunpack.c.l.b16 %v174
    %v734 = vunpack.c.l.b16 %v175
    %v735 = vunpack.c.l.b16 %v176
    %v736 = vunpack.c.l.b16 %v177
    %v737 = vunpack.c.l.b16 %v178
    %v738 = vunpack.c.l.b16 %v179
    %v739 = vunpack.c.l.b16 %v180
    %v740 = vunpack.c.l.b16 %v181
    %v741 = vunpack.c.l.b16 %v182
    %v742 = vpack.c.b16 %v707, %v706
    %v743 = vpack.c.b16 %v709, %v708
    %v744 = vpack.c.b16 %v711, %v710
    %v745 = vpack.c.b16 %v713, %v712
    %v746 = vpack.c.b16 %v715, %v714
    %v747 = vpack.c.b16 %v717, %v716
    %v748 = vpack.c.b16 %v719, %v718
    %v749 = vpack.c.b16 %v721, %v720
    %v750 = vpack.c.b16 %v723, %v722
    %v751 = vpack.c.b16 %v725, %v724
    %v752 = vpack.c.b16 %v727, %v726
    %v753 = vpack.c.b16 %v729, %v728
    %v754 = vpack.c.b16 %v731, %v730
    %v755 = vpack.c.b16 %v733, %v732
    %v756 = vpack.c.b16 %v735, %v734
    %v757 = vpack.c.b16 %v737, %v736
    %v758 = vpack.c.b16 %v739, %v738
    %v759 = vpack.c.b16 %v741, %v740
    %vm778 = vcmask 261120
    %v780 = vsel %vm778, %v512, 0
    %v783 = vsel %vm778, %v515, 0
    %v786 = vsel %vm778, %v518, 0
    %v789 = vsel %vm778, %v521, 0
    %v792 = vsel %vm778, %v524, 0
    %v795 = vsel %vm778, %v527, 0
    %v798 = vsel %vm778, %v530, 0
    %v801 = vsel %vm778, %v533, 0
    %v804 = vsel %vm778, %v536, 0
    %v807 = vsel %vm778, %v539, 0
    %v810 = vsel %vm778, %v542, 0
    %v813 = vsel %vm778, %v545, 0
    %v816 = vsel %vm778, %v548, 0
    %v819 = vsel %vm778, %v551, 0
    %v822 = vsel %vm778, %v554, 0
    %v825 = vsel %vm778, %v557, 0
    %v828 = vsel %vm778, %v560, 0
    %v831 = vsel %vm778, %v563, 0
    %v834 = vsel %vm778, %v566, 0
    %v837 = vsel %vm778, %v569, 0
    %v840 = vsel %vm778, %v572, 0
    %v843 = vsel %vm778, %v575, 0
    %v846 = vsel %vm778, %v578, 0
    %v849 = vsel %vm778, %v581, 0
    %v852 = vsel %vm778, %v584, 0
    %v855 = vsel %vm778, %v587, 0
    %v858 = vsel %vm778, %v590, 0
    %v861 = vsel %vm778, %v593, 0
    %v864 = vsel %vm778, %v596, 0
    %v867 = vsel %vm778, %v599, 0
    %v870 = vsel %vm778, %v602, 0
    %v873 = vsel %vm778, %v605, 0
    %875 = vmatprep.subr.bf16.mxu0 0
    %876 = vmatpush1.bf16.msra.mxu0 %v742
    %877 = vmatprep.subr.bf16.mxu0 0
    %878 = vmatpush1.bf16.msra.mxu0 %v743
    %879 = vmatprep.subr.bf16.mxu0 0
    %880 = vmatpush1.bf16.msra.mxu0 %v744
    %881 = vmatprep.subr.bf16.mxu0 0
    %882 = vmatpush1.bf16.msra.mxu0 %v745
    %883 = vmatprep.subr.bf16.mxu0 0
    %884 = vmatpush1.bf16.msra.mxu0 %v746
    %885 = vmatprep.subr.bf16.mxu0 0
    %886 = vmatpush1.bf16.msra.mxu0 %v747
    %887 = vmatprep.subr.bf16.mxu0 0
    %888 = vmatpush1.bf16.msra.mxu0 %v748
    %889 = vmatprep.subr.bf16.mxu0 0
    %890 = vmatpush1.bf16.msra.mxu0 %v749
    %891 = vmatprep.subr.bf16.mxu0 0
    %892 = vmatpush1.bf16.msra.mxu0 %v750
    %893 = vmatprep.subr.bf16.mxu0 0
    %894 = vmatpush1.bf16.msra.mxu0 %v751
    %895 = vmatprep.subr.bf16.mxu0 0
    %896 = vmatpush1.bf16.msra.mxu0 %v752
    %897 = vmatprep.subr.bf16.mxu0 0
    %898 = vmatpush1.bf16.msra.mxu0 %v753
    %899 = vmatprep.subr.bf16.mxu0 0
    %900 = vmatpush1.bf16.msra.mxu0 %v754
    %901 = vmatprep.subr.bf16.mxu0 0
    %902 = vmatpush1.bf16.msra.mxu0 %v755
    %903 = vmatprep.subr.bf16.mxu0 0
    %904 = vmatpush1.bf16.msra.mxu0 %v756
    %905 = vmatprep.subr.bf16.mxu0 0
    %906 = vmatpush1.bf16.msra.mxu0 %v757
    %907 = vmatprep.mubr.bf16.mxu0 %v511
    %908 = vmatmul.mubr.bf16.gmra.mrb[0].mxu0 %v510
    %v909 = vpop.f32.mrb[0].mxu0
    %v910 = vadd.f32 %v188, %v909
    %v911 = vpop.f32.mrb[0].mxu0
    %v912 = vpop.f32.mrb[0].mxu0
    %v913 = vadd.f32 %v188, %v912
    %v914 = vpop.f32.mrb[0].mxu0
    %915 = vmatprep.mubr.bf16.mxu0 %v514
    %916 = vmatmul.mubr.bf16.gmra.mrb[0].mxu0 %v513
    %v917 = vpop.f32.mrb[0].mxu0
    %v918 = vadd.f32 %v188, %v917
    %v919 = vpop.f32.mrb[0].mxu0
    %v920 = vpop.f32.mrb[0].mxu0
    %v921 = vadd.f32 %v188, %v920
    %v922 = vpop.f32.mrb[0].mxu0
    %923 = vmatprep.mubr.bf16.mxu0 %v517
    %924 = vmatmul.mubr.bf16.gmra.mrb[0].mxu0 %v516
    %v925 = vpop.f32.mrb[0].mxu0
    %v926 = vadd.f32 %v188, %v925
    %v927 = vpop.f32.mrb[0].mxu0
    %v928 = vpop.f32.mrb[0].mxu0
    %v929 = vadd.f32 %v188, %v928
    %v930 = vpop.f32.mrb[0].mxu0
    %931 = vmatprep.mubr.bf16.mxu0 %v520
    %932 = vmatmul.mubr.bf16.gmra.mrb[0].mxu0 %v519
    %v933 = vpop.f32.mrb[0].mxu0
    %v934 = vadd.f32 %v188, %v933
    %v935 = vpop.f32.mrb[0].mxu0
    %v936 = vpop.f32.mrb[0].mxu0
    %v937 = vadd.f32 %v188, %v936
    %v938 = vpop.f32.mrb[0].mxu0
    %939 = vmatprep.mubr.bf16.mxu0 %v523
    %940 = vmatmul.mubr.bf16.gmra.mrb[0].mxu0 %v522
    %v941 = vpop.f32.mrb[0].mxu0
    %v942 = vadd.f32 %v188, %v941
    %v943 = vpop.f32.mrb[0].mxu0
    %v944 = vpop.f32.mrb[0].mxu0
    %v945 = vadd.f32 %v188, %v944
    %v946 = vpop.f32.mrb[0].mxu0
    %947 = vmatprep.mubr.bf16.mxu0 %v526
    %948 = vmatmul.mubr.bf16.gmra.mrb[0].mxu0 %v525
    %v949 = vpop.f32.mrb[0].mxu0
    %v950 = vadd.f32 %v188, %v949
    %v951 = vpop.f32.mrb[0].mxu0
    %v952 = vpop.f32.mrb[0].mxu0
    %v953 = vadd.f32 %v188, %v952
    %v954 = vpop.f32.mrb[0].mxu0
    %955 = vmatprep.mubr.bf16.mxu0 %v529
    %956 = vmatmul.mubr.bf16.gmra.mrb[0].mxu0 %v528
    %v957 = vpop.f32.mrb[0].mxu0
    %v958 = vadd.f32 %v188, %v957
    %v959 = vpop.f32.mrb[0].mxu0
    %v960 = vpop.f32.mrb[0].mxu0
    %v961 = vadd.f32 %v188, %v960
    %v962 = vpop.f32.mrb[0].mxu0
    %963 = vmatprep.mubr.bf16.mxu0 %v532
    %964 = vmatmul.mubr.bf16.gmra.mrb[0].mxu0 %v531
    %v965 = vpop.f32.mrb[0].mxu0
    %v966 = vadd.f32 %v188, %v965
    %v967 = vpop.f32.mrb[0].mxu0
    %v968 = vpop.f32.mrb[0].mxu0
    %v969 = vadd.f32 %v188, %v968
    %v970 = vpop.f32.mrb[0].mxu0
    %971 = vmatprep.mubr.bf16.mxu0 %v535
    %972 = vmatmul.mubr.bf16.gmra.mrb[0].mxu0 %v534
    %v973 = vpop.f32.mrb[0].mxu0
    %v974 = vadd.f32 %v188, %v973
    %v975 = vpop.f32.mrb[0].mxu0
    %v976 = vpop.f32.mrb[0].mxu0
    %v977 = vadd.f32 %v188, %v976
    %v978 = vpop.f32.mrb[0].mxu0
    %979 = vmatprep.mubr.bf16.mxu0 %v538
    %980 = vmatmul.mubr.bf16.gmra.mrb[0].mxu0 %v537
    %v981 = vpop.f32.mrb[0].mxu0
    %v982 = vadd.f32 %v188, %v981
    %v983 = vpop.f32.mrb[0].mxu0
    %v984 = vpop.f32.mrb[0].mxu0
    %v985 = vadd.f32 %v188, %v984
    %v986 = vpop.f32.mrb[0].mxu0
    %987 = vmatprep.mubr.bf16.mxu0 %v541
    %988 = vmatmul.mubr.bf16.gmra.mrb[0].mxu0 %v540
    %v989 = vpop.f32.mrb[0].mxu0
    %v990 = vadd.f32 %v188, %v989
    %v991 = vpop.f32.mrb[0].mxu0
    %v992 = vpop.f32.mrb[0].mxu0
    %v993 = vadd.f32 %v188, %v992
    %v994 = vpop.f32.mrb[0].mxu0
    %995 = vmatprep.mubr.bf16.mxu0 %v544
    %996 = vmatmul.mubr.bf16.gmra.mrb[0].mxu0 %v543
    %v997 = vpop.f32.mrb[0].mxu0
    %v998 = vadd.f32 %v188, %v997
    %v999 = vpop.f32.mrb[0].mxu0
    %v1000 = vpop.f32.mrb[0].mxu0
    %v1001 = vadd.f32 %v188, %v1000
    %v1002 = vpop.f32.mrb[0].mxu0
    %1003 = vmatprep.mubr.bf16.mxu0 %v547
    %1004 = vmatmul.mubr.bf16.gmra.mrb[0].mxu0 %v546
    %v1005 = vpop.f32.mrb[0].mxu0
    %v1006 = vadd.f32 %v188, %v1005
    %v1007 = vpop.f32.mrb[0].mxu0
    %v1008 = vpop.f32.mrb[0].mxu0
    %v1009 = vadd.f32 %v188, %v1008
    %v1010 = vpop.f32.mrb[0].mxu0
    %1011 = vmatprep.mubr.bf16.mxu0 %v550
    %1012 = vmatmul.mubr.bf16.gmra.mrb[0].mxu0 %v549
    %v1013 = vpop.f32.mrb[0].mxu0
    %v1014 = vadd.f32 %v188, %v1013
    %v1015 = vpop.f32.mrb[0].mxu0
    %v1016 = vpop.f32.mrb[0].mxu0
    %v1017 = vadd.f32 %v188, %v1016
    %v1018 = vpop.f32.mrb[0].mxu0
    %1019 = vmatprep.mubr.bf16.mxu0 %v553
    %1020 = vmatmul.mubr.bf16.gmra.mrb[0].mxu0 %v552
    %v1021 = vpop.f32.mrb[0].mxu0
    %v1022 = vadd.f32 %v188, %v1021
    %v1023 = vpop.f32.mrb[0].mxu0
    %v1024 = vpop.f32.mrb[0].mxu0
    %v1025 = vadd.f32 %v188, %v1024
    %v1026 = vpop.f32.mrb[0].mxu0
    %1027 = vmatprep.mubr.bf16.mxu0 %v556
    %1028 = vmatmul.mubr.bf16.gmra.mrb[0].mxu0 %v555
    %v1029 = vpop.f32.mrb[0].mxu0
    %v1030 = vadd.f32 %v188, %v1029
    %v1031 = vpop.f32.mrb[0].mxu0
    %v1032 = vpop.f32.mrb[0].mxu0
    %v1033 = vadd.f32 %v188, %v1032
    %v1034 = vpop.f32.mrb[0].mxu0
    %1035 = vmatprep.mubr.bf16.mxu0 %v559
    %1036 = vmatmul.mubr.bf16.gmra.mrb[0].mxu0 %v558
    %v1037 = vpop.f32.mrb[0].mxu0
    %v1038 = vadd.f32 %v188, %v1037
    %v1039 = vpop.f32.mrb[0].mxu0
    %v1040 = vpop.f32.mrb[0].mxu0
    %v1041 = vadd.f32 %v188, %v1040
    %v1042 = vpop.f32.mrb[0].mxu0
    %1043 = vmatprep.mubr.bf16.mxu0 %v562
    %1044 = vmatmul.mubr.bf16.gmra.mrb[0].mxu0 %v561
    %v1045 = vpop.f32.mrb[0].mxu0
    %v1046 = vadd.f32 %v188, %v1045
    %v1047 = vpop.f32.mrb[0].mxu0
    %v1048 = vpop.f32.mrb[0].mxu0
    %v1049 = vadd.f32 %v188, %v1048
    %v1050 = vpop.f32.mrb[0].mxu0
    %1051 = vmatprep.mubr.bf16.mxu0 %v565
    %1052 = vmatmul.mubr.bf16.gmra.mrb[0].mxu0 %v564
    %v1053 = vpop.f32.mrb[0].mxu0
    %v1054 = vadd.f32 %v188, %v1053
    %v1055 = vpop.f32.mrb[0].mxu0
    %v1056 = vpop.f32.mrb[0].mxu0
    %v1057 = vadd.f32 %v188, %v1056
    %v1058 = vpop.f32.mrb[0].mxu0
    %1059 = vmatprep.mubr.bf16.mxu0 %v568
    %1060 = vmatmul.mubr.bf16.gmra.mrb[0].mxu0 %v567
    %v1061 = vpop.f32.mrb[0].mxu0
    %v1062 = vadd.f32 %v188, %v1061
    %v1063 = vpop.f32.mrb[0].mxu0
    %v1064 = vpop.f32.mrb[0].mxu0
    %v1065 = vadd.f32 %v188, %v1064
    %v1066 = vpop.f32.mrb[0].mxu0
    %1067 = vmatprep.mubr.bf16.mxu0 %v571
    %1068 = vmatmul.mubr.bf16.gmra.mrb[0].mxu0 %v570
    %v1069 = vpop.f32.mrb[0].mxu0
    %v1070 = vadd.f32 %v188, %v1069
    %v1071 = vpop.f32.mrb[0].mxu0
    %v1072 = vpop.f32.mrb[0].mxu0
    %v1073 = vadd.f32 %v188, %v1072
    %v1074 = vpop.f32.mrb[0].mxu0
    %1075 = vmatprep.mubr.bf16.mxu0 %v574
    %1076 = vmatmul.mubr.bf16.gmra.mrb[0].mxu0 %v573
    %v1077 = vpop.f32.mrb[0].mxu0
    %v1078 = vadd.f32 %v188, %v1077
    %v1079 = vpop.f32.mrb[0].mxu0
    %v1080 = vpop.f32.mrb[0].mxu0
    %v1081 = vadd.f32 %v188, %v1080
    %v1082 = vpop.f32.mrb[0].mxu0
    %1083 = vmatprep.mubr.bf16.mxu0 %v577
    %1084 = vmatmul.mubr.bf16.gmra.mrb[0].mxu0 %v576
    %v1085 = vpop.f32.mrb[0].mxu0
    %v1086 = vadd.f32 %v188, %v1085
    %v1087 = vpop.f32.mrb[0].mxu0
    %v1088 = vpop.f32.mrb[0].mxu0
    %v1089 = vadd.f32 %v188, %v1088
    %v1090 = vpop.f32.mrb[0].mxu0
    %1091 = vmatprep.mubr.bf16.mxu0 %v580
    %1092 = vmatmul.mubr.bf16.gmra.mrb[0].mxu0 %v579
    %v1093 = vpop.f32.mrb[0].mxu0
    %v1094 = vadd.f32 %v188, %v1093
    %v1095 = vpop.f32.mrb[0].mxu0
    %v1096 = vpop.f32.mrb[0].mxu0
    %v1097 = vadd.f32 %v188, %v1096
    %v1098 = vpop.f32.mrb[0].mxu0
    %1099 = vmatprep.mubr.bf16.mxu0 %v583
    %1100 = vmatmul.mubr.bf16.gmra.mrb[0].mxu0 %v582
    %v1101 = vpop.f32.mrb[0].mxu0
    %v1102 = vadd.f32 %v188, %v1101
    %v1103 = vpop.f32.mrb[0].mxu0
    %v1104 = vpop.f32.mrb[0].mxu0
    %v1105 = vadd.f32 %v188, %v1104
    %v1106 = vpop.f32.mrb[0].mxu0
    %1107 = vmatprep.mubr.bf16.mxu0 %v586
    %1108 = vmatmul.mubr.bf16.gmra.mrb[0].mxu0 %v585
    %v1109 = vpop.f32.mrb[0].mxu0
    %v1110 = vadd.f32 %v188, %v1109
    %v1111 = vpop.f32.mrb[0].mxu0
    %v1112 = vpop.f32.mrb[0].mxu0
    %v1113 = vadd.f32 %v188, %v1112
    %v1114 = vpop.f32.mrb[0].mxu0
    %1115 = vmatprep.mubr.bf16.mxu0 %v589
    %1116 = vmatmul.mubr.bf16.gmra.mrb[0].mxu0 %v588
    %v1117 = vpop.f32.mrb[0].mxu0
    %v1118 = vadd.f32 %v188, %v1117
    %v1119 = vpop.f32.mrb[0].mxu0
    %v1120 = vpop.f32.mrb[0].mxu0
    %v1121 = vadd.f32 %v188, %v1120
    %v1122 = vpop.f32.mrb[0].mxu0
    %1123 = vmatprep.mubr.bf16.mxu0 %v592
    %1124 = vmatmul.mubr.bf16.gmra.mrb[0].mxu0 %v591
    %v1125 = vpop.f32.mrb[0].mxu0
    %v1126 = vadd.f32 %v188, %v1125
    %v1127 = vpop.f32.mrb[0].mxu0
    %v1128 = vpop.f32.mrb[0].mxu0
    %v1129 = vadd.f32 %v188, %v1128
    %v1130 = vpop.f32.mrb[0].mxu0
    %1131 = vmatprep.mubr.bf16.mxu0 %v595
    %1132 = vmatmul.mubr.bf16.gmra.mrb[0].mxu0 %v594
    %v1133 = vpop.f32.mrb[0].mxu0
    %v1134 = vadd.f32 %v188, %v1133
    %v1135 = vpop.f32.mrb[0].mxu0
    %v1136 = vpop.f32.mrb[0].mxu0
    %v1137 = vadd.f32 %v188, %v1136
    %v1138 = vpop.f32.mrb[0].mxu0
    %1139 = vmatprep.mubr.bf16.mxu0 %v598
    %1140 = vmatmul.mubr.bf16.gmra.mrb[0].mxu0 %v597
    %v1141 = vpop.f32.mrb[0].mxu0
    %v1142 = vadd.f32 %v188, %v1141
    %v1143 = vpop.f32.mrb[0].mxu0
    %v1144 = vpop.f32.mrb[0].mxu0
    %v1145 = vadd.f32 %v188, %v1144
    %v1146 = vpop.f32.mrb[0].mxu0
    %1147 = vmatprep.mubr.bf16.mxu0 %v601
    %1148 = vmatmul.mubr.bf16.gmra.mrb[0].mxu0 %v600
    %v1149 = vpop.f32.mrb[0].mxu0
    %v1150 = vadd.f32 %v188, %v1149
    %v1151 = vpop.f32.mrb[0].mxu0
    %v1152 = vpop.f32.mrb[0].mxu0
    %v1153 = vadd.f32 %v188, %v1152
    %v1154 = vpop.f32.mrb[0].mxu0
    %1155 = vmatprep.mubr.bf16.mxu0 %v604
    %1156 = vmatmul.mubr.bf16.gmra.mrb[0].mxu0 %v603
    %v1157 = vpop.f32.mrb[0].mxu0
    %v1158 = vadd.f32 %v188, %v1157
    %v1159 = vpop.f32.mrb[0].mxu0
    %v1160 = vpop.f32.mrb[0].mxu0
    %v1161 = vadd.f32 %v188, %v1160
    %v1162 = vpop.f32.mrb[0].mxu0
    %1163 = vdwg.mxu0
    %1164 = vmatprep.subr.bf16.mxu0 0
    %1165 = vmatpush1.bf16.msra.mxu0 %v758
    %1166 = vmatprep.subr.bf16.mxu0 0
    %1167 = vmatpush1.bf16.msra.mxu0 %v759
    %1168 = vmatprep.subr.bf16.mxu0 0
    %1169 = vmatpush1.bf16.msra.mxu0 0
    %1170 = vmatprep.subr.bf16.mxu0 0
    %1171 = vmatpush1.bf16.msra.mxu0 0
    %1172 = vmatprep.subr.bf16.mxu0 0
    %1173 = vmatpush1.bf16.msra.mxu0 0
    %1174 = vmatprep.subr.bf16.mxu0 0
    %1175 = vmatpush1.bf16.msra.mxu0 0
    %1176 = vmatprep.subr.bf16.mxu0 0
    %1177 = vmatpush1.bf16.msra.mxu0 0
    %1178 = vmatprep.subr.bf16.mxu0 0
    %1179 = vmatpush1.bf16.msra.mxu0 0
    %1180 = vmatprep.subr.bf16.mxu0 0
    %1181 = vmatpush1.bf16.msra.mxu0 0
    %1182 = vmatprep.subr.bf16.mxu0 0
    %1183 = vmatpush1.bf16.msra.mxu0 0
    %1184 = vmatprep.subr.bf16.mxu0 0
    %1185 = vmatpush1.bf16.msra.mxu0 0
    %1186 = vmatprep.subr.bf16.mxu0 0
    %1187 = vmatpush1.bf16.msra.mxu0 0
    %1188 = vmatprep.subr.bf16.mxu0 0
    %1189 = vmatpush1.bf16.msra.mxu0 0
    %1190 = vmatprep.subr.bf16.mxu0 0
    %1191 = vmatpush1.bf16.msra.mxu0 0
    %1192 = vmatprep.subr.bf16.mxu0 0
    %1193 = vmatpush1.bf16.msra.mxu0 0
    %1194 = vmatprep.subr.bf16.mxu0 0
    %1195 = vmatpush1.bf16.msra.mxu0 0
    %1196 = vmatprep.mubr.bf16.mxu0 0
    %1197 = vmatmul.mubr.bf16.gmra.mrb[0].mxu0 %v780
    %v1198 = vpop.f32.mrb[0].mxu0
    %v1199 = vadd.f32 %v910, %v1198
    %v1200 = vpop.f32.mrb[0].mxu0
    %v1201 = vpop.f32.mrb[0].mxu0
    %v1202 = vadd.f32 %v913, %v1201
    %v1203 = vpop.f32.mrb[0].mxu0
    %1204 = vmatprep.mubr.bf16.mxu0 0
    %1205 = vmatmul.mubr.bf16.gmra.mrb[0].mxu0 %v783
    %v1206 = vpop.f32.mrb[0].mxu0
    %v1207 = vadd.f32 %v918, %v1206
    %v1208 = vpop.f32.mrb[0].mxu0
    %v1209 = vpop.f32.mrb[0].mxu0
    %v1210 = vadd.f32 %v921, %v1209
    %v1211 = vpop.f32.mrb[0].mxu0
    %1212 = vmatprep.mubr.bf16.mxu0 0
    %1213 = vmatmul.mubr.bf16.gmra.mrb[0].mxu0 %v786
    %v1214 = vpop.f32.mrb[0].mxu0
    %v1215 = vadd.f32 %v926, %v1214
    %v1216 = vpop.f32.mrb[0].mxu0
    %v1217 = vpop.f32.mrb[0].mxu0
    %v1218 = vadd.f32 %v929, %v1217
    %v1219 = vpop.f32.mrb[0].mxu0
    %1220 = vmatprep.mubr.bf16.mxu0 0
    %1221 = vmatmul.mubr.bf16.gmra.mrb[0].mxu0 %v789
    %v1222 = vpop.f32.mrb[0].mxu0
    %v1223 = vadd.f32 %v934, %v1222
    %v1224 = vpop.f32.mrb[0].mxu0
    %v1225 = vpop.f32.mrb[0].mxu0
    %v1226 = vadd.f32 %v937, %v1225
    %v1227 = vpop.f32.mrb[0].mxu0
    %1228 = vmatprep.mubr.bf16.mxu0 0
    %1229 = vmatmul.mubr.bf16.gmra.mrb[0].mxu0 %v792
    %v1230 = vpop.f32.mrb[0].mxu0
    %v1231 = vadd.f32 %v942, %v1230
    %v1232 = vpop.f32.mrb[0].mxu0
    %v1233 = vpop.f32.mrb[0].mxu0
    %v1234 = vadd.f32 %v945, %v1233
    %v1235 = vpop.f32.mrb[0].mxu0
    %1236 = vmatprep.mubr.bf16.mxu0 0
    %1237 = vmatmul.mubr.bf16.gmra.mrb[0].mxu0 %v795
    %v1238 = vpop.f32.mrb[0].mxu0
    %v1239 = vadd.f32 %v950, %v1238
    %v1240 = vpop.f32.mrb[0].mxu0
    %v1241 = vpop.f32.mrb[0].mxu0
    %v1242 = vadd.f32 %v953, %v1241
    %v1243 = vpop.f32.mrb[0].mxu0
    %1244 = vmatprep.mubr.bf16.mxu0 0
    %1245 = vmatmul.mubr.bf16.gmra.mrb[0].mxu0 %v798
    %v1246 = vpop.f32.mrb[0].mxu0
    %v1247 = vadd.f32 %v958, %v1246
    %v1248 = vpop.f32.mrb[0].mxu0
    %v1249 = vpop.f32.mrb[0].mxu0
    %v1250 = vadd.f32 %v961, %v1249
    %v1251 = vpop.f32.mrb[0].mxu0
    %1252 = vmatprep.mubr.bf16.mxu0 0
    %1253 = vmatmul.mubr.bf16.gmra.mrb[0].mxu0 %v801
    %v1254 = vpop.f32.mrb[0].mxu0
    %v1255 = vadd.f32 %v966, %v1254
    %v1256 = vpop.f32.mrb[0].mxu0
    %v1257 = vpop.f32.mrb[0].mxu0
    %v1258 = vadd.f32 %v969, %v1257
    %v1259 = vpop.f32.mrb[0].mxu0
    %1260 = vmatprep.mubr.bf16.mxu0 0
    %1261 = vmatmul.mubr.bf16.gmra.mrb[0].mxu0 %v804
    %v1262 = vpop.f32.mrb[0].mxu0
    %v1263 = vadd.f32 %v974, %v1262
    %v1264 = vpop.f32.mrb[0].mxu0
    %v1265 = vpop.f32.mrb[0].mxu0
    %v1266 = vadd.f32 %v977, %v1265
    %v1267 = vpop.f32.mrb[0].mxu0
    %1268 = vmatprep.mubr.bf16.mxu0 0
    %1269 = vmatmul.mubr.bf16.gmra.mrb[0].mxu0 %v807
    %v1270 = vpop.f32.mrb[0].mxu0
    %v1271 = vadd.f32 %v982, %v1270
    %v1272 = vpop.f32.mrb[0].mxu0
    %v1273 = vpop.f32.mrb[0].mxu0
    %v1274 = vadd.f32 %v985, %v1273
    %v1275 = vpop.f32.mrb[0].mxu0
    %1276 = vmatprep.mubr.bf16.mxu0 0
    %1277 = vmatmul.mubr.bf16.gmra.mrb[0].mxu0 %v810
    %v1278 = vpop.f32.mrb[0].mxu0
    %v1279 = vadd.f32 %v990, %v1278
    %v1280 = vpop.f32.mrb[0].mxu0
    %v1281 = vpop.f32.mrb[0].mxu0
    %v1282 = vadd.f32 %v993, %v1281
    %v1283 = vpop.f32.mrb[0].mxu0
    %1284 = vmatprep.mubr.bf16.mxu0 0
    %1285 = vmatmul.mubr.bf16.gmra.mrb[0].mxu0 %v813
    %v1286 = vpop.f32.mrb[0].mxu0
    %v1287 = vadd.f32 %v998, %v1286
    %v1288 = vpop.f32.mrb[0].mxu0
    %v1289 = vpop.f32.mrb[0].mxu0
    %v1290 = vadd.f32 %v1001, %v1289
    %v1291 = vpop.f32.mrb[0].mxu0
    %1292 = vmatprep.mubr.bf16.mxu0 0
    %1293 = vmatmul.mubr.bf16.gmra.mrb[0].mxu0 %v816
    %v1294 = vpop.f32.mrb[0].mxu0
    %v1295 = vadd.f32 %v1006, %v1294
    %v1296 = vpop.f32.mrb[0].mxu0
    %v1297 = vpop.f32.mrb[0].mxu0
    %v1298 = vadd.f32 %v1009, %v1297
    %v1299 = vpop.f32.mrb[0].mxu0
    %1300 = vmatprep.mubr.bf16.mxu0 0
    %1301 = vmatmul.mubr.bf16.gmra.mrb[0].mxu0 %v819
    %v1302 = vpop.f32.mrb[0].mxu0
    %v1303 = vadd.f32 %v1014, %v1302
    %v1304 = vpop.f32.mrb[0].mxu0
    %v1305 = vpop.f32.mrb[0].mxu0
    %v1306 = vadd.f32 %v1017, %v1305
    %v1307 = vpop.f32.mrb[0].mxu0
    %1308 = vmatprep.mubr.bf16.mxu0 0
    %1309 = vmatmul.mubr.bf16.gmra.mrb[0].mxu0 %v822
    %v1310 = vpop.f32.mrb[0].mxu0
    %v1311 = vadd.f32 %v1022, %v1310
    %v1312 = vpop.f32.mrb[0].mxu0
    %v1313 = vpop.f32.mrb[0].mxu0
    %v1314 = vadd.f32 %v1025, %v1313
    %v1315 = vpop.f32.mrb[0].mxu0
    %1316 = vmatprep.mubr.bf16.mxu0 0
    %1317 = vmatmul.mubr.bf16.gmra.mrb[0].mxu0 %v825
    %v1318 = vpop.f32.mrb[0].mxu0
    %v1319 = vadd.f32 %v1030, %v1318
    %v1320 = vpop.f32.mrb[0].mxu0
    %v1321 = vpop.f32.mrb[0].mxu0
    %v1322 = vadd.f32 %v1033, %v1321
    %v1323 = vpop.f32.mrb[0].mxu0
    %1324 = vmatprep.mubr.bf16.mxu0 0
    %1325 = vmatmul.mubr.bf16.gmra.mrb[0].mxu0 %v828
    %v1326 = vpop.f32.mrb[0].mxu0
    %v1327 = vadd.f32 %v1038, %v1326
    %v1328 = vpop.f32.mrb[0].mxu0
    %v1329 = vpop.f32.mrb[0].mxu0
    %v1330 = vadd.f32 %v1041, %v1329
    %v1331 = vpop.f32.mrb[0].mxu0
    %1332 = vmatprep.mubr.bf16.mxu0 0
    %1333 = vmatmul.mubr.bf16.gmra.mrb[0].mxu0 %v831
    %v1334 = vpop.f32.mrb[0].mxu0
    %v1335 = vadd.f32 %v1046, %v1334
    %v1336 = vpop.f32.mrb[0].mxu0
    %v1337 = vpop.f32.mrb[0].mxu0
    %v1338 = vadd.f32 %v1049, %v1337
    %v1339 = vpop.f32.mrb[0].mxu0
    %1340 = vmatprep.mubr.bf16.mxu0 0
    %1341 = vmatmul.mubr.bf16.gmra.mrb[0].mxu0 %v834
    %v1342 = vpop.f32.mrb[0].mxu0
    %v1343 = vadd.f32 %v1054, %v1342
    %v1344 = vpop.f32.mrb[0].mxu0
    %v1345 = vpop.f32.mrb[0].mxu0
    %v1346 = vadd.f32 %v1057, %v1345
    %v1347 = vpop.f32.mrb[0].mxu0
    %1348 = vmatprep.mubr.bf16.mxu0 0
    %1349 = vmatmul.mubr.bf16.gmra.mrb[0].mxu0 %v837
    %v1350 = vpop.f32.mrb[0].mxu0
    %v1351 = vadd.f32 %v1062, %v1350
    %v1352 = vpop.f32.mrb[0].mxu0
    %v1353 = vpop.f32.mrb[0].mxu0
    %v1354 = vadd.f32 %v1065, %v1353
    %v1355 = vpop.f32.mrb[0].mxu0
    %1356 = vmatprep.mubr.bf16.mxu0 0
    %1357 = vmatmul.mubr.bf16.gmra.mrb[0].mxu0 %v840
    %v1358 = vpop.f32.mrb[0].mxu0
    %v1359 = vadd.f32 %v1070, %v1358
    %v1360 = vpop.f32.mrb[0].mxu0
    %v1361 = vpop.f32.mrb[0].mxu0
    %v1362 = vadd.f32 %v1073, %v1361
    %v1363 = vpop.f32.mrb[0].mxu0
    %1364 = vmatprep.mubr.bf16.mxu0 0
    %1365 = vmatmul.mubr.bf16.gmra.mrb[0].mxu0 %v843
    %v1366 = vpop.f32.mrb[0].mxu0
    %v1367 = vadd.f32 %v1078, %v1366
    %v1368 = vpop.f32.mrb[0].mxu0
    %v1369 = vpop.f32.mrb[0].mxu0
    %v1370 = vadd.f32 %v1081, %v1369
    %v1371 = vpop.f32.mrb[0].mxu0
    %1372 = vmatprep.mubr.bf16.mxu0 0
    %1373 = vmatmul.mubr.bf16.gmra.mrb[0].mxu0 %v846
    %v1374 = vpop.f32.mrb[0].mxu0
    %v1375 = vadd.f32 %v1086, %v1374
    %v1376 = vpop.f32.mrb[0].mxu0
    %v1377 = vpop.f32.mrb[0].mxu0
    %v1378 = vadd.f32 %v1089, %v1377
    %v1379 = vpop.f32.mrb[0].mxu0
    %1380 = vmatprep.mubr.bf16.mxu0 0
    %1381 = vmatmul.mubr.bf16.gmra.mrb[0].mxu0 %v849
    %v1382 = vpop.f32.mrb[0].mxu0
    %v1383 = vadd.f32 %v1094, %v1382
    %v1384 = vpop.f32.mrb[0].mxu0
    %v1385 = vpop.f32.mrb[0].mxu0
    %v1386 = vadd.f32 %v1097, %v1385
    %v1387 = vpop.f32.mrb[0].mxu0
    %1388 = vmatprep.mubr.bf16.mxu0 0
    %1389 = vmatmul.mubr.bf16.gmra.mrb[0].mxu0 %v852
    %v1390 = vpop.f32.mrb[0].mxu0
    %v1391 = vadd.f32 %v1102, %v1390
    %v1392 = vpop.f32.mrb[0].mxu0
    %v1393 = vpop.f32.mrb[0].mxu0
    %v1394 = vadd.f32 %v1105, %v1393
    %v1395 = vpop.f32.mrb[0].mxu0
    %1396 = vmatprep.mubr.bf16.mxu0 0
    %1397 = vmatmul.mubr.bf16.gmra.mrb[0].mxu0 %v855
    %v1398 = vpop.f32.mrb[0].mxu0
    %v1399 = vadd.f32 %v1110, %v1398
    %v1400 = vpop.f32.mrb[0].mxu0
    %v1401 = vpop.f32.mrb[0].mxu0
    %v1402 = vadd.f32 %v1113, %v1401
    %v1403 = vpop.f32.mrb[0].mxu0
    %1404 = vmatprep.mubr.bf16.mxu0 0
    %1405 = vmatmul.mubr.bf16.gmra.mrb[0].mxu0 %v858
    %v1406 = vpop.f32.mrb[0].mxu0
    %v1407 = vadd.f32 %v1118, %v1406
    %v1408 = vpop.f32.mrb[0].mxu0
    %v1409 = vpop.f32.mrb[0].mxu0
    %v1410 = vadd.f32 %v1121, %v1409
    %v1411 = vpop.f32.mrb[0].mxu0
    %1412 = vmatprep.mubr.bf16.mxu0 0
    %1413 = vmatmul.mubr.bf16.gmra.mrb[0].mxu0 %v861
    %v1414 = vpop.f32.mrb[0].mxu0
    %v1415 = vadd.f32 %v1126, %v1414
    %v1416 = vpop.f32.mrb[0].mxu0
    %v1417 = vpop.f32.mrb[0].mxu0
    %v1418 = vadd.f32 %v1129, %v1417
    %v1419 = vpop.f32.mrb[0].mxu0
    %1420 = vmatprep.mubr.bf16.mxu0 0
    %1421 = vmatmul.mubr.bf16.gmra.mrb[0].mxu0 %v864
    %v1422 = vpop.f32.mrb[0].mxu0
    %v1423 = vadd.f32 %v1134, %v1422
    %v1424 = vpop.f32.mrb[0].mxu0
    %v1425 = vpop.f32.mrb[0].mxu0
    %v1426 = vadd.f32 %v1137, %v1425
    %v1427 = vpop.f32.mrb[0].mxu0
    %1428 = vmatprep.mubr.bf16.mxu0 0
    %1429 = vmatmul.mubr.bf16.gmra.mrb[0].mxu0 %v867
    %v1430 = vpop.f32.mrb[0].mxu0
    %v1431 = vadd.f32 %v1142, %v1430
    %v1432 = vpop.f32.mrb[0].mxu0
    %v1433 = vpop.f32.mrb[0].mxu0
    %v1434 = vadd.f32 %v1145, %v1433
    %v1435 = vpop.f32.mrb[0].mxu0
    %1436 = vmatprep.mubr.bf16.mxu0 0
    %1437 = vmatmul.mubr.bf16.gmra.mrb[0].mxu0 %v870
    %v1438 = vpop.f32.mrb[0].mxu0
    %v1439 = vadd.f32 %v1150, %v1438
    %v1440 = vpop.f32.mrb[0].mxu0
    %v1441 = vpop.f32.mrb[0].mxu0
    %v1442 = vadd.f32 %v1153, %v1441
    %v1443 = vpop.f32.mrb[0].mxu0
    %1444 = vmatprep.mubr.bf16.mxu0 0
    %1445 = vmatmul.mubr.bf16.gmra.mrb[0].mxu0 %v873
    %v1446 = vpop.f32.mrb[0].mxu0
    %v1447 = vadd.f32 %v1158, %v1446
    %v1448 = vpop.f32.mrb[0].mxu0
    %v1449 = vpop.f32.mrb[0].mxu0
    %v1450 = vadd.f32 %v1161, %v1449
    %v1451 = vpop.f32.mrb[0].mxu0
    %1452 = vdwg.mxu0
    %v1453 = vld [vmem:[%s3] sm:$0xff]
    %v1454 = vld [vmem:[%s3 + $0x8] sm:$0xff]
    %v1455 = vld [vmem:[%s3 + $0x10] sm:$0xff]
    %v1456 = vld [vmem:[%s3 + $0x18] sm:$0xff]
    %v1457 = vld [vmem:[%s3 + $0x20] sm:$0xff]
    %v1458 = vld [vmem:[%s3 + $0x28] sm:$0xff]
    %v1459 = vld [vmem:[%s3 + $0x30] sm:$0xff]
    %v1460 = vld [vmem:[%s3 + $0x38] sm:$0xff]
    %v1461 = vld [vmem:[%s3 + $0x40] sm:$0xff]
    %v1462 = vld [vmem:[%s3 + $0x48] sm:$0xff]
    %v1463 = vld [vmem:[%s3 + $0x50] sm:$0xff]
    %v1464 = vld [vmem:[%s3 + $0x58] sm:$0xff]
    %v1465 = vld [vmem:[%s3 + $0x60] sm:$0xff]
    %v1466 = vld [vmem:[%s3 + $0x68] sm:$0xff]
    %v1467 = vld [vmem:[%s3 + $0x70] sm:$0xff]
    %v1468 = vld [vmem:[%s3 + $0x78] sm:$0xff]
    %v1469 = vld [vmem:[%s3 + $0x80] sm:$0xff]
    %v1470 = vld [vmem:[%s3 + $0x88] sm:$0xff]
    %v1471 = vld [vmem:[%s3 + $0x90] sm:$0xff]
    %v1472 = vld [vmem:[%s3 + $0x98] sm:$0xff]
    %v1473 = vld [vmem:[%s3 + $0xa0] sm:$0xff]
    %v1474 = vld [vmem:[%s3 + $0xa8] sm:$0xff]
    %v1475 = vld [vmem:[%s3 + $0xb0] sm:$0xff]
    %v1476 = vld [vmem:[%s3 + $0xb8] sm:$0xff]
    %v1477 = vld [vmem:[%s3 + $0xc0] sm:$0xff]
    %v1478 = vld [vmem:[%s3 + $0xc8] sm:$0xff]
    %v1479 = vld [vmem:[%s3 + $0xd0] sm:$0xff]
    %v1480 = vld [vmem:[%s3 + $0xd8] sm:$0xff]
    %v1481 = vld [vmem:[%s3 + $0xe0] sm:$0xff]
    %v1482 = vld [vmem:[%s3 + $0xe8] sm:$0xff]
    %v1483 = vld [vmem:[%s3 + $0xf0] sm:$0xff]
    %v1484 = vld [vmem:[%s3 + $0xf8] sm:$0xff]
    %v1485 = vld [vmem:[%s3 + $0x100] sm:$0xff]
    %v1486 = vld [vmem:[%s3 + $0x108] sm:$0xff]
    %v1487 = vld [vmem:[%s3 + $0x110] sm:$0xff]
    %v1488 = vld [vmem:[%s3 + $0x118] sm:$0xff]
    %v1489 = vld [vmem:[%s3 + $0x120] sm:$0xff]
    %v1490 = vld [vmem:[%s3 + $0x128] sm:$0xff]
    %v1491 = vld [vmem:[%s3 + $0x130] sm:$0xff]
    %v1492 = vld [vmem:[%s3 + $0x138] sm:$0xff]
    %v1493 = vld [vmem:[%s3 + $0x140] sm:$0xff]
    %v1494 = vld [vmem:[%s3 + $0x148] sm:$0xff]
    %v1495 = vld [vmem:[%s3 + $0x150] sm:$0xff]
    %v1496 = vld [vmem:[%s3 + $0x158] sm:$0xff]
    %v1497 = vld [vmem:[%s3 + $0x160] sm:$0xff]
    %v1498 = vld [vmem:[%s3 + $0x168] sm:$0xff]
    %v1499 = vld [vmem:[%s3 + $0x170] sm:$0xff]
    %v1500 = vld [vmem:[%s3 + $0x178] sm:$0xff]
    %v1501 = vld [vmem:[%s3 + $0x180] sm:$0xff]
    %v1502 = vld [vmem:[%s3 + $0x188] sm:$0xff]
    %v1503 = vld [vmem:[%s3 + $0x190] sm:$0xff]
    %v1504 = vld [vmem:[%s3 + $0x198] sm:$0xff]
    %v1505 = vld [vmem:[%s3 + $0x1a0] sm:$0xff]
    %v1506 = vld [vmem:[%s3 + $0x1a8] sm:$0xff]
    %v1507 = vld [vmem:[%s3 + $0x1b0] sm:$0xff]
    %v1508 = vld [vmem:[%s3 + $0x1b8] sm:$0xff]
    %v1509 = vld [vmem:[%s3 + $0x1c0] sm:$0xff]
    %v1510 = vld [vmem:[%s3 + $0x1c8] sm:$0xff]
    %v1511 = vld [vmem:[%s3 + $0x1d0] sm:$0xff]
    %v1512 = vld [vmem:[%s3 + $0x1d8] sm:$0xff]
    %v1513 = vld [vmem:[%s3 + $0x1e0] sm:$0xff]
    %v1514 = vld [vmem:[%s3 + $0x1e8] sm:$0xff]
    %v1515 = vld [vmem:[%s3 + $0x1f0] sm:$0xff]
    %v1516 = vld [vmem:[%s3 + $0x1f8] sm:$0xff]
    %v1517 = vadd.f32 %v1199, %v1453
    %v1518 = vadd.f32 %v1202, %v1454
    %v1519 = vadd.f32 %v1207, %v1455
    %v1520 = vadd.f32 %v1210, %v1456
    %v1521 = vadd.f32 %v1215, %v1457
    %v1522 = vadd.f32 %v1218, %v1458
    %v1523 = vadd.f32 %v1223, %v1459
    %v1524 = vadd.f32 %v1226, %v1460
    %v1525 = vadd.f32 %v1231, %v1461
    %v1526 = vadd.f32 %v1234, %v1462
    %v1527 = vadd.f32 %v1239, %v1463
    %v1528 = vadd.f32 %v1242, %v1464
    %v1529 = vadd.f32 %v1247, %v1465
    %v1530 = vadd.f32 %v1250, %v1466
    %v1531 = vadd.f32 %v1255, %v1467
    %v1532 = vadd.f32 %v1258, %v1468
    %v1533 = vadd.f32 %v1263, %v1469
    %v1534 = vadd.f32 %v1266, %v1470
    %v1535 = vadd.f32 %v1271, %v1471
    %v1536 = vadd.f32 %v1274, %v1472
    %v1537 = vadd.f32 %v1279, %v1473
    %v1538 = vadd.f32 %v1282, %v1474
    %v1539 = vadd.f32 %v1287, %v1475
    %v1540 = vadd.f32 %v1290, %v1476
    %v1541 = vadd.f32 %v1295, %v1477
    %v1542 = vadd.f32 %v1298, %v1478
    %v1543 = vadd.f32 %v1303, %v1479
    %v1544 = vadd.f32 %v1306, %v1480
    %v1545 = vadd.f32 %v1311, %v1481
    %v1546 = vadd.f32 %v1314, %v1482
    %v1547 = vadd.f32 %v1319, %v1483
    %v1548 = vadd.f32 %v1322, %v1484
    %v1549 = vadd.f32 %v1327, %v1485
    %v1550 = vadd.f32 %v1330, %v1486
    %v1551 = vadd.f32 %v1335, %v1487
    %v1552 = vadd.f32 %v1338, %v1488
    %v1553 = vadd.f32 %v1343, %v1489
    %v1554 = vadd.f32 %v1346, %v1490
    %v1555 = vadd.f32 %v1351, %v1491
    %v1556 = vadd.f32 %v1354, %v1492
    %v1557 = vadd.f32 %v1359, %v1493
    %v1558 = vadd.f32 %v1362, %v1494
    %v1559 = vadd.f32 %v1367, %v1495
    %v1560 = vadd.f32 %v1370, %v1496
    %v1561 = vadd.f32 %v1375, %v1497
    %v1562 = vadd.f32 %v1378, %v1498
    %v1563 = vadd.f32 %v1383, %v1499
    %v1564 = vadd.f32 %v1386, %v1500
    %v1565 = vadd.f32 %v1391, %v1501
    %v1566 = vadd.f32 %v1394, %v1502
    %v1567 = vadd.f32 %v1399, %v1503
    %v1568 = vadd.f32 %v1402, %v1504
    %v1569 = vadd.f32 %v1407, %v1505
    %v1570 = vadd.f32 %v1410, %v1506
    %v1571 = vadd.f32 %v1415, %v1507
    %v1572 = vadd.f32 %v1418, %v1508
    %v1573 = vadd.f32 %v1423, %v1509
    %v1574 = vadd.f32 %v1426, %v1510
    %v1575 = vadd.f32 %v1431, %v1511
    %v1576 = vadd.f32 %v1434, %v1512
    %v1577 = vadd.f32 %v1439, %v1513
    %v1578 = vadd.f32 %v1442, %v1514
    %v1579 = vadd.f32 %v1447, %v1515
    %v1580 = vadd.f32 %v1450, %v1516
    %v1581 = vmax.f32 %v1517, 0.0
    %v1582 = vmax.f32 %v1518, 0.0
    %v1583 = vmax.f32 %v1519, 0.0
    %v1584 = vmax.f32 %v1520, 0.0
    %v1585 = vmax.f32 %v1521, 0.0
    %v1586 = vmax.f32 %v1522, 0.0
    %v1587 = vmax.f32 %v1523, 0.0
    %v1588 = vmax.f32 %v1524, 0.0
    %v1589 = vmax.f32 %v1525, 0.0
    %v1590 = vmax.f32 %v1526, 0.0
    %v1591 = vmax.f32 %v1527, 0.0
    %v1592 = vmax.f32 %v1528, 0.0
    %v1593 = vmax.f32 %v1529, 0.0
    %v1594 = vmax.f32 %v1530, 0.0
    %v1595 = vmax.f32 %v1531, 0.0
    %v1596 = vmax.f32 %v1532, 0.0
    %v1597 = vmax.f32 %v1533, 0.0
    %v1598 = vmax.f32 %v1534, 0.0
    %v1599 = vmax.f32 %v1535, 0.0
    %v1600 = vmax.f32 %v1536, 0.0
    %v1601 = vmax.f32 %v1537, 0.0
    %v1602 = vmax.f32 %v1538, 0.0
    %v1603 = vmax.f32 %v1539, 0.0
    %v1604 = vmax.f32 %v1540, 0.0
    %v1605 = vmax.f32 %v1541, 0.0
    %v1606 = vmax.f32 %v1542, 0.0
    %v1607 = vmax.f32 %v1543, 0.0
    %v1608 = vmax.f32 %v1544, 0.0
    %v1609 = vmax.f32 %v1545, 0.0
    %v1610 = vmax.f32 %v1546, 0.0
    %v1611 = vmax.f32 %v1547, 0.0
    %v1612 = vmax.f32 %v1548, 0.0
    %v1613 = vmax.f32 %v1549, 0.0
    %v1614 = vmax.f32 %v1550, 0.0
    %v1615 = vmax.f32 %v1551, 0.0
    %v1616 = vmax.f32 %v1552, 0.0
    %v1617 = vmax.f32 %v1553, 0.0
    %v1618 = vmax.f32 %v1554, 0.0
    %v1619 = vmax.f32 %v1555, 0.0
    %v1620 = vmax.f32 %v1556, 0.0
    %v1621 = vmax.f32 %v1557, 0.0
    %v1622 = vmax.f32 %v1558, 0.0
    %v1623 = vmax.f32 %v1559, 0.0
    %v1624 = vmax.f32 %v1560, 0.0
    %v1625 = vmax.f32 %v1561, 0.0
    %v1626 = vmax.f32 %v1562, 0.0
    %v1627 = vmax.f32 %v1563, 0.0
    %v1628 = vmax.f32 %v1564, 0.0
    %v1629 = vmax.f32 %v1565, 0.0
    %v1630 = vmax.f32 %v1566, 0.0
    %v1631 = vmax.f32 %v1567, 0.0
    %v1632 = vmax.f32 %v1568, 0.0
    %v1633 = vmax.f32 %v1569, 0.0
    %v1634 = vmax.f32 %v1570, 0.0
    %v1635 = vmax.f32 %v1571, 0.0
    %v1636 = vmax.f32 %v1572, 0.0
    %v1637 = vmax.f32 %v1573, 0.0
    %v1638 = vmax.f32 %v1574, 0.0
    %v1639 = vmax.f32 %v1575, 0.0
    %v1640 = vmax.f32 %v1576, 0.0
    %v1641 = vmax.f32 %v1577, 0.0
    %v1642 = vmax.f32 %v1578, 0.0
    %v1643 = vmax.f32 %v1579, 0.0
    %v1644 = vmax.f32 %v1580, 0.0
    %1645 = vst.msk [vmem:[#allocation2] sm:$0xff] %vm778, %v1581
    %1646 = vst.msk [vmem:[#allocation2 + $0x8] sm:$0xff] %vm778, %v1582
    %1647 = vst.msk [vmem:[#allocation2 + $0x10] sm:$0xff] %vm778, %v1583
    %1648 = vst.msk [vmem:[#allocation2 + $0x18] sm:$0xff] %vm778, %v1584
    %1649 = vst.msk [vmem:[#allocation2 + $0x20] sm:$0xff] %vm778, %v1585
    %1650 = vst.msk [vmem:[#allocation2 + $0x28] sm:$0xff] %vm778, %v1586
    %1651 = vst.msk [vmem:[#allocation2 + $0x30] sm:$0xff] %vm778, %v1587
    %1652 = vst.msk [vmem:[#allocation2 + $0x38] sm:$0xff] %vm778, %v1588
    %1653 = vst.msk [vmem:[#allocation2 + $0x40] sm:$0xff] %vm778, %v1589
    %1654 = vst.msk [vmem:[#allocation2 + $0x48] sm:$0xff] %vm778, %v1590
    %1655 = vst.msk [vmem:[#allocation2 + $0x50] sm:$0xff] %vm778, %v1591
    %1656 = vst.msk [vmem:[#allocation2 + $0x58] sm:$0xff] %vm778, %v1592
    %1657 = vst.msk [vmem:[#allocation2 + $0x60] sm:$0xff] %vm778, %v1593
    %1658 = vst.msk [vmem:[#allocation2 + $0x68] sm:$0xff] %vm778, %v1594
    %1659 = vst.msk [vmem:[#allocation2 + $0x70] sm:$0xff] %vm778, %v1595
    %1660 = vst.msk [vmem:[#allocation2 + $0x78] sm:$0xff] %vm778, %v1596
    %1661 = vst.msk [vmem:[#allocation2 + $0x80] sm:$0xff] %vm778, %v1597
    %1662 = vst.msk [vmem:[#allocation2 + $0x88] sm:$0xff] %vm778, %v1598
    %1663 = vst.msk [vmem:[#allocation2 + $0x90] sm:$0xff] %vm778, %v1599
    %1664 = vst.msk [vmem:[#allocation2 + $0x98] sm:$0xff] %vm778, %v1600
    %1665 = vst.msk [vmem:[#allocation2 + $0xa0] sm:$0xff] %vm778, %v1601
    %1666 = vst.msk [vmem:[#allocation2 + $0xa8] sm:$0xff] %vm778, %v1602
    %1667 = vst.msk [vmem:[#allocation2 + $0xb0] sm:$0xff] %vm778, %v1603
    %1668 = vst.msk [vmem:[#allocation2 + $0xb8] sm:$0xff] %vm778, %v1604
    %1669 = vst.msk [vmem:[#allocation2 + $0xc0] sm:$0xff] %vm778, %v1605
    %1670 = vst.msk [vmem:[#allocation2 + $0xc8] sm:$0xff] %vm778, %v1606
    %1671 = vst.msk [vmem:[#allocation2 + $0xd0] sm:$0xff] %vm778, %v1607
    %1672 = vst.msk [vmem:[#allocation2 + $0xd8] sm:$0xff] %vm778, %v1608
    %1673 = vst.msk [vmem:[#allocation2 + $0xe0] sm:$0xff] %vm778, %v1609
    %1674 = vst.msk [vmem:[#allocation2 + $0xe8] sm:$0xff] %vm778, %v1610
    %1675 = vst.msk [vmem:[#allocation2 + $0xf0] sm:$0xff] %vm778, %v1611
    %1676 = vst.msk [vmem:[#allocation2 + $0xf8] sm:$0xff] %vm778, %v1612
    %1677 = vst.msk [vmem:[#allocation2 + $0x100] sm:$0xff] %vm778, %v1613
    %1678 = vst.msk [vmem:[#allocation2 + $0x108] sm:$0xff] %vm778, %v1614
    %1679 = vst.msk [vmem:[#allocation2 + $0x110] sm:$0xff] %vm778, %v1615
    %1680 = vst.msk [vmem:[#allocation2 + $0x118] sm:$0xff] %vm778, %v1616
    %1681 = vst.msk [vmem:[#allocation2 + $0x120] sm:$0xff] %vm778, %v1617
    %1682 = vst.msk [vmem:[#allocation2 + $0x128] sm:$0xff] %vm778, %v1618
    %1683 = vst.msk [vmem:[#allocation2 + $0x130] sm:$0xff] %vm778, %v1619
    %1684 = vst.msk [vmem:[#allocation2 + $0x138] sm:$0xff] %vm778, %v1620
    %1685 = vst.msk [vmem:[#allocation2 + $0x140] sm:$0xff] %vm778, %v1621
    %1686 = vst.msk [vmem:[#allocation2 + $0x148] sm:$0xff] %vm778, %v1622
    %1687 = vst.msk [vmem:[#allocation2 + $0x150] sm:$0xff] %vm778, %v1623
    %1688 = vst.msk [vmem:[#allocation2 + $0x158] sm:$0xff] %vm778, %v1624
    %1689 = vst.msk [vmem:[#allocation2 + $0x160] sm:$0xff] %vm778, %v1625
    %1690 = vst.msk [vmem:[#allocation2 + $0x168] sm:$0xff] %vm778, %v1626
    %1691 = vst.msk [vmem:[#allocation2 + $0x170] sm:$0xff] %vm778, %v1627
    %1692 = vst.msk [vmem:[#allocation2 + $0x178] sm:$0xff] %vm778, %v1628
    %1693 = vst.msk [vmem:[#allocation2 + $0x180] sm:$0xff] %vm778, %v1629
    %1694 = vst.msk [vmem:[#allocation2 + $0x188] sm:$0xff] %vm778, %v1630
    %1695 = vst.msk [vmem:[#allocation2 + $0x190] sm:$0xff] %vm778, %v1631
    %1696 = vst.msk [vmem:[#allocation2 + $0x198] sm:$0xff] %vm778, %v1632
    %1697 = vst.msk [vmem:[#allocation2 + $0x1a0] sm:$0xff] %vm778, %v1633
    %1698 = vst.msk [vmem:[#allocation2 + $0x1a8] sm:$0xff] %vm778, %v1634
    %1699 = vst.msk [vmem:[#allocation2 + $0x1b0] sm:$0xff] %vm778, %v1635
    %1700 = vst.msk [vmem:[#allocation2 + $0x1b8] sm:$0xff] %vm778, %v1636
    %1701 = vst.msk [vmem:[#allocation2 + $0x1c0] sm:$0xff] %vm778, %v1637
    %1702 = vst.msk [vmem:[#allocation2 + $0x1c8] sm:$0xff] %vm778, %v1638
    %1703 = vst.msk [vmem:[#allocation2 + $0x1d0] sm:$0xff] %vm778, %v1639
    %1704 = vst.msk [vmem:[#allocation2 + $0x1d8] sm:$0xff] %vm778, %v1640
    %1705 = vst.msk [vmem:[#allocation2 + $0x1e0] sm:$0xff] %vm778, %v1641
    %1706 = vst.msk [vmem:[#allocation2 + $0x1e8] sm:$0xff] %vm778, %v1642
    %1707 = vst.msk [vmem:[#allocation2 + $0x1f0] sm:$0xff] %vm778, %v1643
    %1708 = vst.msk [vmem:[#allocation2 + $0x1f8] sm:$0xff] %vm778, %v1644
    // Predicated region
    $region18: #{residual_unit_forward.5} parent=1 // pred_check
      _
    $region19: #{residual_unit_forward.5} parent=1 // pred_check_branch
      %1710 = sbr.rel (0) target = $region21
    $region20: #{residual_unit_forward.5} parent=1 // pred_region
      %s1712 = ssub.s32 8192, 8192
      %1713 = vsyncadd [#allocation3], %s1712
      %s1714 = sshll.u32 [#allocation2], 4
      %s1715 = int_to_ptr.vmem [resolvable:$true] %s1714
      %1720 = dma.vmem_to_hbm [thread:$0]  %s1715, 8192, %s4, [#allocation3], 128, 128, 8
    $region21: #{residual_unit_forward.5} parent=1 // pred_fallthru
      _
    // Predicated region
    $region22: #{residual_unit_forward.5} parent=1 // pred_check
      _
    $region23: #{residual_unit_forward.5} parent=1 // pred_check_branch
      %1722 = sbr.rel (0) target = $region25
    $region24: #{residual_unit_forward.5} parent=1 // pred_region
      %1723 = dma.done [#allocation3], 8192
    $region25: #{residual_unit_forward.5} parent=1 // pred_fallthru
      _
    %1724 = vsyncpa [#allocation3], 1

</llo_original>
